<compile_context>
chip_gen: v7x
topology: tpu7x:2x2x1
jax: 0.10.0
libtpu: 0.0.40
codegen_flags: <defaults>
</compile_context>

<pallas_src>
import functools

import jax
import jax.numpy as jnp
from jax.experimental import pallas as pl
from jax.experimental.pallas import tpu as pltpu

HIDDEN = 512  # fixed by the module definition


def _round_up(x, m):
    return ((x + m - 1) // m) * m


def _top_decoder_kernel(z_ref, w1_ref, b1_ref, w2_ref, b2_ref,
                        w3_ref, b3_ref, w4_ref, b4_ref, o_ref):
    def dense(x, w_ref, b_ref, relu):
        # Cast activation to the weight dtype (f32 or bf16) for the MXU;
        # always accumulate in f32. Bias add / ReLU stay f32 on the VPU.
        acc = jnp.dot(x.astype(w_ref.dtype), w_ref[...],
                      preferred_element_type=jnp.float32)
        acc = acc + b_ref[...].astype(jnp.float32)
        if relu:
            acc = jnp.maximum(acc, 0.0)
        return acc

    h = dense(z_ref[...], w1_ref, b1_ref, relu=True)   # fc1 + ReLU
    h = dense(h, w2_ref, b2_ref, relu=True)            # fc2 + ReLU
    h = dense(h, w3_ref, b3_ref, relu=True)            # fc3 + ReLU
    out = dense(h, w4_ref, b4_ref, relu=False)         # fc4
    o_ref[...] = out.astype(o_ref.dtype)


@functools.partial(jax.jit, static_argnames=("batch_tile",))
def top_decoder_forward(z, params, batch_tile=256):
    """z: [B, latent_dim] float32. params: dict of w1..w4 ([in,out]), b1..b4 ([1,out]).

    Weights may be float32 or bfloat16; biases should be float32."""
    B, latent_dim = z.shape
    w1, b1 = params["w1"], params["b1"]
    w2, b2 = params["w2"], params["b2"]
    w3, b3 = params["w3"], params["b3"]
    w4, b4 = params["w4"], params["b4"]
    hidden = w1.shape[1]
    out_dim = w4.shape[1]

    # Lane/contraction-friendly padding (free: zeros contribute nothing).
    k_pad = _round_up(latent_dim, 128)     # K of fc1
    n_pad = _round_up(out_dim, 128)        # lanes of fc4 / output store
    b_pad = _round_up(B, batch_tile)       # batch rows

    z_p = jnp.pad(z, ((0, b_pad - B), (0, k_pad - latent_dim)))
    w1_p = jnp.pad(w1, ((0, k_pad - latent_dim), (0, 0)))
    w4_p = jnp.pad(w4, ((0, 0), (0, n_pad - out_dim)))
    b4_p = jnp.pad(b4, ((0, 0), (0, n_pad - out_dim)))

    grid = (b_pad // batch_tile,)

    def const_spec(arr):
        # Weights / biases: same full block for every grid step (stay VMEM-resident).
        return pl.BlockSpec(arr.shape, lambda i: (0, 0))

    flops = 2 * b_pad * (k_pad * hidden + 2 * hidden * hidden + hidden * n_pad)
    operands = (z_p, w1_p, b1, w2, b2, w3, b3, w4_p, b4_p)
    bytes_accessed = sum(int(a.size) * a.dtype.itemsize for a in operands)
    bytes_accessed += b_pad * n_pad * z.dtype.itemsize

    out_padded = pl.pallas_call(
        _top_decoder_kernel,
        out_shape=jax.ShapeDtypeStruct((b_pad, n_pad), z.dtype),
        grid_spec=pltpu.PrefetchScalarGridSpec(
            num_scalar_prefetch=0,
            grid=grid,
            in_specs=[
                pl.BlockSpec((batch_tile, k_pad), lambda i: (i, 0)),  # z tile
                const_spec(w1_p), const_spec(b1),
                const_spec(w2), const_spec(b2),
                const_spec(w3), const_spec(b3),
                const_spec(w4_p), const_spec(b4_p),
            ],
            out_specs=pl.BlockSpec((batch_tile, n_pad), lambda i: (i, 0)),
        ),
        compiler_params=pltpu.CompilerParams(
            dimension_semantics=("parallel",),
            vmem_limit_bytes=64 * 1024 * 1024,
        ),
        cost_estimate=pl.CostEstimate(
            flops=flops, transcendentals=0, bytes_accessed=bytes_accessed),
    )(*operands)

    # Strip batch and lane padding.
    return out_padded[:B, :out_dim]


def init_params(key, latent_dim, out_dim):
    """Deterministic PyTorch-nn.Linear-style init (uniform +/- 1/sqrt(fan_in)).

    Weights are stored [in, out] (transposed vs. torch) for x @ W."""
    dims = [(latent_dim, HIDDEN), (HIDDEN, HIDDEN), (HIDDEN, HIDDEN), (HIDDEN, out_dim)]
    params = {}
    keys = jax.random.split(key, 2 * len(dims))
    for idx, (fan_in, fan_out) in enumerate(dims):
        bound = 1.0 / (fan_in ** 0.5)
        w = jax.random.uniform(keys[2 * idx], (fan_in, fan_out),
                               minval=-bound, maxval=bound, dtype=jnp.float32)
        b = jax.random.uniform(keys[2 * idx + 1], (1, fan_out),
                               minval=-bound, maxval=bound, dtype=jnp.float32)
        params[f"w{idx + 1}"] = w
        params[f"b{idx + 1}"] = b
    return params


def cast_weights(params, dtype):
    """Cast weights (not biases) to `dtype` — bf16 fast path for v6e/v7x."""
    return {k: (v.astype(dtype) if k.startswith("w") else v) for k, v in params.items()}


def reference_forward(z, params):
    h = jax.nn.relu(z @ params["w1"] + params["b1"])
    h = jax.nn.relu(h @ params["w2"] + params["b2"])
    h = jax.nn.relu(h @ params["w3"] + params["b3"])
    return h @ params["w4"] + params["b4"]


if __name__ == "__main__":
    key = jax.random.PRNGKey(0)
    k_param, k_z = jax.random.split(key)

    batch = 8
    latent_dim = 32
    out_dim = 64

    params = init_params(k_param, latent_dim, out_dim)
    z = jax.random.normal(k_z, (batch, latent_dim), dtype=jnp.float32)

    ref = reference_forward(z, params)

    # f32 path (exact module semantics).
    out = top_decoder_forward(z, params)
    out = jax.block_until_ready(out)
    assert out.shape == (batch, out_dim)
    assert jnp.allclose(out, ref, atol=1e-4, rtol=1e-4), "f32 mismatch vs. JAX reference"

    # bf16-weight fast path (v6e/v7x MXU throughput); f32 accumulation inside.
    out_bf16 = top_decoder_forward(z, cast_weights(params, jnp.bfloat16))
    out_bf16 = jax.block_until_ready(out_bf16)
    assert out_bf16.shape == (batch, out_dim)
    assert jnp.allclose(out_bf16, ref, atol=5e-2, rtol=5e-2), "bf16 mismatch vs. JAX reference"

    print("KERNEL_OK")
</pallas_src>

<mosaic_0001>
module attributes {stable_mosaic.version = 11 : i64} {
  func.func @_top_decoder_kernel(%arg0: i32, %arg1: memref<256x128xf32, #tpu.memory_space<vmem>>, %arg2: memref<128x512xf32, #tpu.memory_space<vmem>>, %arg3: memref<1x512xf32, #tpu.memory_space<vmem>>, %arg4: memref<512x512xf32, #tpu.memory_space<vmem>>, %arg5: memref<1x512xf32, #tpu.memory_space<vmem>>, %arg6: memref<512x512xf32, #tpu.memory_space<vmem>>, %arg7: memref<1x512xf32, #tpu.memory_space<vmem>>, %arg8: memref<512x128xf32, #tpu.memory_space<vmem>>, %arg9: memref<1x128xf32, #tpu.memory_space<vmem>>, %arg10: memref<256x128xf32, #tpu.memory_space<vmem>>) attributes {dimension_semantics = [#tpu.dimension_semantics<parallel>], iteration_bounds = array<i64: 1>, scalar_prefetch = 0 : i64, scratch_operands = 0 : i64, tpu.core_type = #tpu.core_type<tc>, window_params = [{transform_indices = @transform_0, window_bounds = array<i64: 256, 128>}, {pipeline_mode = #tpu.pipeline_mode<synchronous>, transform_indices = @transform_1, window_bounds = array<i64: 128, 512>}, {pipeline_mode = #tpu.pipeline_mode<synchronous>, transform_indices = @transform_2, window_bounds = array<i64: 1, 512>}, {pipeline_mode = #tpu.pipeline_mode<synchronous>, transform_indices = @transform_3, window_bounds = array<i64: 512, 512>}, {pipeline_mode = #tpu.pipeline_mode<synchronous>, transform_indices = @transform_4, window_bounds = array<i64: 1, 512>}, {pipeline_mode = #tpu.pipeline_mode<synchronous>, transform_indices = @transform_5, window_bounds = array<i64: 512, 512>}, {pipeline_mode = #tpu.pipeline_mode<synchronous>, transform_indices = @transform_6, window_bounds = array<i64: 1, 512>}, {pipeline_mode = #tpu.pipeline_mode<synchronous>, transform_indices = @transform_7, window_bounds = array<i64: 512, 128>}, {pipeline_mode = #tpu.pipeline_mode<synchronous>, transform_indices = @transform_8, window_bounds = array<i64: 1, 128>}, {transform_indices = @transform_9, window_bounds = array<i64: 256, 128>}]} {
    %c0 = arith.constant 0 : index
    %c0_0 = arith.constant 0 : index
    %0 = vector.load %arg1[%c0, %c0_0] : memref<256x128xf32, #tpu.memory_space<vmem>>, vector<256x128xf32>
    %c0_1 = arith.constant 0 : index
    %c0_2 = arith.constant 0 : index
    %1 = vector.load %arg2[%c0_1, %c0_2] : memref<128x512xf32, #tpu.memory_space<vmem>>, vector<128x512xf32>
    %cst = arith.constant dense<0.000000e+00> : vector<256x512xf32>
    %2 = tpu.matmul %0, %1, %cst {dimension_numbers = #tpu.dot_dimension_numbers<[1], [0], [0], [1], [0, 0, 1, 1], [], []>} : vector<256x128xf32>, vector<128x512xf32>, vector<256x512xf32> -> vector<256x512xf32>
    %c0_3 = arith.constant 0 : index
    %c0_4 = arith.constant 0 : index
    %3 = vector.load %arg3[%c0_3, %c0_4] : memref<1x512xf32, #tpu.memory_space<vmem>>, vector<1x512xf32>
    %4 = vector.broadcast %3 : vector<1x512xf32> to vector<256x512xf32>
    %5 = arith.addf %2, %4 : vector<256x512xf32>
    %cst_5 = arith.constant 0.000000e+00 : f32
    %6 = vector.broadcast %cst_5 : f32 to vector<256x512xf32>
    %7 = arith.maximumf %5, %6 : vector<256x512xf32>
    %c0_6 = arith.constant 0 : index
    %c0_7 = arith.constant 0 : index
    %8 = vector.load %arg4[%c0_6, %c0_7] : memref<512x512xf32, #tpu.memory_space<vmem>>, vector<512x512xf32>
    %cst_8 = arith.constant dense<0.000000e+00> : vector<256x512xf32>
    %9 = tpu.matmul %7, %8, %cst_8 {dimension_numbers = #tpu.dot_dimension_numbers<[1], [0], [0], [1], [0, 0, 1, 1], [], []>} : vector<256x512xf32>, vector<512x512xf32>, vector<256x512xf32> -> vector<256x512xf32>
    %c0_9 = arith.constant 0 : index
    %c0_10 = arith.constant 0 : index
    %10 = vector.load %arg5[%c0_9, %c0_10] : memref<1x512xf32, #tpu.memory_space<vmem>>, vector<1x512xf32>
    %11 = vector.broadcast %10 : vector<1x512xf32> to vector<256x512xf32>
    %12 = arith.addf %9, %11 : vector<256x512xf32>
    %cst_11 = arith.constant 0.000000e+00 : f32
    %13 = vector.broadcast %cst_11 : f32 to vector<256x512xf32>
    %14 = arith.maximumf %12, %13 : vector<256x512xf32>
    %c0_12 = arith.constant 0 : index
    %c0_13 = arith.constant 0 : index
    %15 = vector.load %arg6[%c0_12, %c0_13] : memref<512x512xf32, #tpu.memory_space<vmem>>, vector<512x512xf32>
    %cst_14 = arith.constant dense<0.000000e+00> : vector<256x512xf32>
    %16 = tpu.matmul %14, %15, %cst_14 {dimension_numbers = #tpu.dot_dimension_numbers<[1], [0], [0], [1], [0, 0, 1, 1], [], []>} : vector<256x512xf32>, vector<512x512xf32>, vector<256x512xf32> -> vector<256x512xf32>
    %c0_15 = arith.constant 0 : index
    %c0_16 = arith.constant 0 : index
    %17 = vector.load %arg7[%c0_15, %c0_16] : memref<1x512xf32, #tpu.memory_space<vmem>>, vector<1x512xf32>
    %18 = vector.broadcast %17 : vector<1x512xf32> to vector<256x512xf32>
    %19 = arith.addf %16, %18 : vector<256x512xf32>
    %cst_17 = arith.constant 0.000000e+00 : f32
    %20 = vector.broadcast %cst_17 : f32 to vector<256x512xf32>
    %21 = arith.maximumf %19, %20 : vector<256x512xf32>
    %c0_18 = arith.constant 0 : index
    %c0_19 = arith.constant 0 : index
    %22 = vector.load %arg8[%c0_18, %c0_19] : memref<512x128xf32, #tpu.memory_space<vmem>>, vector<512x128xf32>
    %cst_20 = arith.constant dense<0.000000e+00> : vector<256x128xf32>
    %23 = tpu.matmul %21, %22, %cst_20 {dimension_numbers = #tpu.dot_dimension_numbers<[1], [0], [0], [1], [0, 0, 1, 1], [], []>} : vector<256x512xf32>, vector<512x128xf32>, vector<256x128xf32> -> vector<256x128xf32>
    %c0_21 = arith.constant 0 : index
    %c0_22 = arith.constant 0 : index
    %24 = vector.load %arg9[%c0_21, %c0_22] : memref<1x128xf32, #tpu.memory_space<vmem>>, vector<1x128xf32>
    %25 = vector.broadcast %24 : vector<1x128xf32> to vector<256x128xf32>
    %26 = arith.addf %23, %25 : vector<256x128xf32>
    %c0_23 = arith.constant 0 : index
    %c0_24 = arith.constant 0 : index
    %27 = vector.load %arg10[%c0_23, %c0_24] : memref<256x128xf32, #tpu.memory_space<vmem>>, vector<256x128xf32>
    tpu.vector_store %arg10[%c0_23, %c0_24], %26 {strides = array<i32>} : memref<256x128xf32, #tpu.memory_space<vmem>>, vector<256x128xf32>,
    return
  }
  func.func @transform_0(%arg0: i32) -> (i32, i32) {
    %c0_i32 = arith.constant 0 : i32
    %c0_i32_0 = arith.constant 0 : i32
    return %arg0, %c0_i32 : i32, i32
  }
  func.func @transform_1(%arg0: i32) -> (i32, i32) {
    %c0_i32 = arith.constant 0 : i32
    %c0_i32_0 = arith.constant 0 : i32
    %c0_i32_1 = arith.constant 0 : i32
    return %c0_i32, %c0_i32_0 : i32, i32
  }
  func.func @transform_2(%arg0: i32) -> (i32, i32) {
    %c0_i32 = arith.constant 0 : i32
    %c0_i32_0 = arith.constant 0 : i32
    %c0_i32_1 = arith.constant 0 : i32
    return %c0_i32, %c0_i32_0 : i32, i32
  }
  func.func @transform_3(%arg0: i32) -> (i32, i32) {
    %c0_i32 = arith.constant 0 : i32
    %c0_i32_0 = arith.constant 0 : i32
    %c0_i32_1 = arith.constant 0 : i32
    return %c0_i32, %c0_i32_0 : i32, i32
  }
  func.func @transform_4(%arg0: i32) -> (i32, i32) {
    %c0_i32 = arith.constant 0 : i32
    %c0_i32_0 = arith.constant 0 : i32
    %c0_i32_1 = arith.constant 0 : i32
    return %c0_i32, %c0_i32_0 : i32, i32
  }
  func.func @transform_5(%arg0: i32) -> (i32, i32) {
    %c0_i32 = arith.constant 0 : i32
    %c0_i32_0 = arith.constant 0 : i32
    %c0_i32_1 = arith.constant 0 : i32
    return %c0_i32, %c0_i32_0 : i32, i32
  }
  func.func @transform_6(%arg0: i32) -> (i32, i32) {
    %c0_i32 = arith.constant 0 : i32
    %c0_i32_0 = arith.constant 0 : i32
    %c0_i32_1 = arith.constant 0 : i32
    return %c0_i32, %c0_i32_0 : i32, i32
  }
  func.func @transform_7(%arg0: i32) -> (i32, i32) {
    %c0_i32 = arith.constant 0 : i32
    %c0_i32_0 = arith.constant 0 : i32
    %c0_i32_1 = arith.constant 0 : i32
    return %c0_i32, %c0_i32_0 : i32, i32
  }
  func.func @transform_8(%arg0: i32) -> (i32, i32) {
    %c0_i32 = arith.constant 0 : i32
    %c0_i32_0 = arith.constant 0 : i32
    %c0_i32_1 = arith.constant 0 : i32
    return %c0_i32, %c0_i32_0 : i32, i32
  }
  func.func @transform_9(%arg0: i32) -> (i32, i32) {
    %c0_i32 = arith.constant 0 : i32
    %c0_i32_0 = arith.constant 0 : i32
    return %arg0, %c0_i32 : i32, i32
  }
}

</mosaic_0001>

<llo_original>
// kernel: top_decoder_forward.1
$region0: #{top_decoder_forward.1}
  #allocation0 [shape = 'u32[]', space=smem, size = 0x4, offset = 0x4, fixed_abs, tag = 'smem constant byte address 0x4 - core index']
  #allocation1 [shape = 'u32[144,128]{1,0:T(1,128)}', space=vmem, size = 0x12000, scoped, tag = 'internal scratch']
  %s0 = inlined_call_operand.hbm [shape: f32[256,128], index: 0, kind: input, shape index: {}]
  %s1 = inlined_call_operand.hbm [shape: f32[128,512], index: 1, kind: input, shape index: {}]
  %s2 = inlined_call_operand.hbm [shape: f32[1,512], index: 2, kind: input, shape index: {}]
  %s3 = inlined_call_operand.hbm [shape: f32[512,512], index: 3, kind: input, shape index: {}]
  %s4 = inlined_call_operand.hbm [shape: f32[1,512], index: 4, kind: input, shape index: {}]
  %s5 = inlined_call_operand.hbm [shape: f32[512,512], index: 5, kind: input, shape index: {}]
  %s6 = inlined_call_operand.hbm [shape: f32[1,512], index: 6, kind: input, shape index: {}]
  %s7 = inlined_call_operand.hbm [shape: f32[512,128], index: 7, kind: input, shape index: {}]
  %s8 = inlined_call_operand.hbm [shape: f32[1,128], index: 8, kind: input, shape index: {}]
  %s9 = inlined_call_operand.hbm [shape: f32[256,128], index: 9, kind: output, shape index: {}]
  %s10 = sld [smem:[#allocation0]]
  $region82: #{top_decoder_forward.1} parent=0
    _
  %s12 = ssub.s32 1, %s10
  %s13 = scalar_select 0, %s12, %s10
  $region1: #{top_decoder_forward.1} parent=0
    #allocation2 [shape = 'u8[131072]{0}', space=vmem, size = 0x20000, scoped, tag = 'input window, operand 0, single buffered']
    #allocation3 [shape = 's32[1]{0}', space=sflag, size = 0x4, scoped, tag = 'scoped memory for top_decoder_forward.1']
    #allocation4 [shape = 's32[1]{0}', space=sflag, size = 0x4, scoped, tag = 'scoped memory for top_decoder_forward.1']
    #allocation5 [shape = 'u8[262144]{0}', space=vmem, size = 0x40000, scoped, tag = 'input window, operand 1, single buffered']
    #allocation6 [shape = 's32[1]{0}', space=sflag, size = 0x4, scoped, tag = 'scoped memory for top_decoder_forward.1']
    #allocation7 [shape = 'u8[2048]{0}', space=vmem, size = 0x800, scoped, tag = 'input window, operand 2, single buffered']
    #allocation8 [shape = 'u8[1048576]{0}', space=vmem, size = 0x100000, scoped, tag = 'input window, operand 3, single buffered']
    #allocation9 [shape = 's32[1]{0}', space=sflag, size = 0x4, scoped, tag = 'scoped memory for top_decoder_forward.1']
    #allocation10 [shape = 'u8[2048]{0}', space=vmem, size = 0x800, scoped, tag = 'input window, operand 4, single buffered']
    #allocation11 [shape = 'u8[1048576]{0}', space=vmem, size = 0x100000, scoped, tag = 'input window, operand 5, single buffered']
    #allocation12 [shape = 's32[1]{0}', space=sflag, size = 0x4, scoped, tag = 'scoped memory for top_decoder_forward.1']
    #allocation13 [shape = 'u8[2048]{0}', space=vmem, size = 0x800, scoped, tag = 'input window, operand 6, single buffered']
    #allocation14 [shape = 'u8[262144]{0}', space=vmem, size = 0x40000, scoped, tag = 'input window, operand 7, single buffered']
    #allocation15 [shape = 's32[1]{0}', space=sflag, size = 0x4, scoped, tag = 'scoped memory for top_decoder_forward.1']
    #allocation16 [shape = 'u8[512]{0}', space=vmem, size = 0x400, scoped, tag = 'input window, operand 8, single buffered']
    #allocation17 [shape = 'u8[131072]{0}', space=vmem, size = 0x20000, scoped, tag = 'output window, operand 0, single buffered']
    %14 = vsyncpa [#allocation3], 0
    %15 = vsyncpa [#allocation6], 0
    %16 = vsyncpa [#allocation9], 0
    %17 = vsyncpa [#allocation12], 0
    %18 = vsyncpa [#allocation15], 0
    %19 = vsyncpa [#allocation4], 0
    // Predicated region
    $region2: #{top_decoder_forward.1} parent=1 // pred_check
      _
    $region3: #{top_decoder_forward.1} parent=1 // pred_check_branch
      %21 = sbr.rel (0) target = $region5
    $region4: #{top_decoder_forward.1} parent=1 // pred_region
      %s23 = ssub.s32 4096, 4096
      %24 = vsyncadd [#allocation3], %s23
      %s25 = sshll.u32 [#allocation2], 4
      %s26 = int_to_ptr.vmem [resolvable:$true] %s25
      %31 = dma.hbm_to_vmem [thread:$0]  %s0, 4096, %s26, [#allocation3], 128, 128, 8
    $region5: #{top_decoder_forward.1} parent=1 // pred_fallthru
      _
    // Predicated region
    $region6: #{top_decoder_forward.1} parent=1 // pred_check
      _
    $region7: #{top_decoder_forward.1} parent=1 // pred_check_branch
      %33 = sbr.rel (0) target = $region9
    $region8: #{top_decoder_forward.1} parent=1 // pred_region
      %s35 = ssub.s32 8192, 8192
      %36 = vsyncadd [#allocation6], %s35
      %s37 = sshll.u32 [#allocation5], 4
      %s38 = int_to_ptr.vmem [resolvable:$true] %s37
      %43 = dma.hbm_to_vmem [thread:$0]  %s1, 8192, %s38, [#allocation6], 512, 512, 32
    $region9: #{top_decoder_forward.1} parent=1 // pred_fallthru
      _
    // Predicated region
    $region10: #{top_decoder_forward.1} parent=1 // pred_check
      _
    $region11: #{top_decoder_forward.1} parent=1 // pred_check_branch
      %45 = sbr.rel (0) target = $region13
    $region12: #{top_decoder_forward.1} parent=1 // pred_region
      %s47 = ssub.s32 64, 64
      %48 = vsyncadd [#allocation6], %s47
      %s50 = sshll.u32 [#allocation7], 4
      %s51 = int_to_ptr.vmem [resolvable:$true] %s50
      %53 = dma.hbm_to_vmem [thread:$0]  %s2, 64, %s51, [#allocation6]
    $region13: #{top_decoder_forward.1} parent=1 // pred_fallthru
      _
    // Predicated region
    $region14: #{top_decoder_forward.1} parent=1 // pred_check
      _
    $region15: #{top_decoder_forward.1} parent=1 // pred_check_branch
      %55 = sbr.rel (0) target = $region17
    $region16: #{top_decoder_forward.1} parent=1 // pred_region
      %s57 = ssub.s32 32768, 32768
      %58 = vsyncadd [#allocation9], %s57
      %s59 = sshll.u32 [#allocation8], 4
      %s60 = int_to_ptr.vmem [resolvable:$true] %s59
      %65 = dma.hbm_to_vmem [thread:$0]  %s3, 32768, %s60, [#allocation9], 512, 512, 32
    $region17: #{top_decoder_forward.1} parent=1 // pred_fallthru
      _
    // Predicated region
    $region18: #{top_decoder_forward.1} parent=1 // pred_check
      _
    $region19: #{top_decoder_forward.1} parent=1 // pred_check_branch
      %67 = sbr.rel (0) target = $region21
    $region20: #{top_decoder_forward.1} parent=1 // pred_region
      %s69 = ssub.s32 64, 64
      %70 = vsyncadd [#allocation9], %s69
      %s72 = sshll.u32 [#allocation10], 4
      %s73 = int_to_ptr.vmem [resolvable:$true] %s72
      %75 = dma.hbm_to_vmem [thread:$0]  %s4, 64, %s73, [#allocation9]
    $region21: #{top_decoder_forward.1} parent=1 // pred_fallthru
      _
    // Predicated region
    $region22: #{top_decoder_forward.1} parent=1 // pred_check
      _
    $region23: #{top_decoder_forward.1} parent=1 // pred_check_branch
      %77 = sbr.rel (0) target = $region25
    $region24: #{top_decoder_forward.1} parent=1 // pred_region
      %s79 = ssub.s32 32768, 32768
      %80 = vsyncadd [#allocation12], %s79
      %s81 = sshll.u32 [#allocation11], 4
      %s82 = int_to_ptr.vmem [resolvable:$true] %s81
      %87 = dma.hbm_to_vmem [thread:$0]  %s5, 32768, %s82, [#allocation12], 512, 512, 32
    $region25: #{top_decoder_forward.1} parent=1 // pred_fallthru
      _
    // Predicated region
    $region26: #{top_decoder_forward.1} parent=1 // pred_check
      _
    $region27: #{top_decoder_forward.1} parent=1 // pred_check_branch
      %89 = sbr.rel (0) target = $region29
    $region28: #{top_decoder_forward.1} parent=1 // pred_region
      %s91 = ssub.s32 64, 64
      %92 = vsyncadd [#allocation12], %s91
      %s94 = sshll.u32 [#allocation13], 4
      %s95 = int_to_ptr.vmem [resolvable:$true] %s94
      %97 = dma.hbm_to_vmem [thread:$0]  %s6, 64, %s95, [#allocation12]
    $region29: #{top_decoder_forward.1} parent=1 // pred_fallthru
      _
    // Predicated region
    $region30: #{top_decoder_forward.1} parent=1 // pred_check
      _
    $region31: #{top_decoder_forward.1} parent=1 // pred_check_branch
      %99 = sbr.rel (0) target = $region33
    $region32: #{top_decoder_forward.1} parent=1 // pred_region
      %s101 = ssub.s32 8192, 8192
      %102 = vsyncadd [#allocation15], %s101
      %s103 = sshll.u32 [#allocation14], 4
      %s104 = int_to_ptr.vmem [resolvable:$true] %s103
      %109 = dma.hbm_to_vmem [thread:$0]  %s7, 8192, %s104, [#allocation15], 128, 128, 8
    $region33: #{top_decoder_forward.1} parent=1 // pred_fallthru
      _
    // Predicated region
    $region34: #{top_decoder_forward.1} parent=1 // pred_check
      _
    $region35: #{top_decoder_forward.1} parent=1 // pred_check_branch
      %111 = sbr.rel (0) target = $region37
    $region36: #{top_decoder_forward.1} parent=1 // pred_region
      %s113 = ssub.s32 16, 16
      %114 = vsyncadd [#allocation15], %s113
      %s116 = sshll.u32 [#allocation16], 4
      %s117 = int_to_ptr.vmem [resolvable:$true] %s116
      %119 = dma.hbm_to_vmem [thread:$0]  %s8, 16, %s117, [#allocation15]
    $region37: #{top_decoder_forward.1} parent=1 // pred_fallthru
      _
    // Predicated region
    $region38: #{top_decoder_forward.1} parent=1 // pred_check
      _
    $region39: #{top_decoder_forward.1} parent=1 // pred_check_branch
      %121 = sbr.rel (0) target = $region41
    $region40: #{top_decoder_forward.1} parent=1 // pred_region
      %122 = dma.done [#allocation3], 4096
    $region41: #{top_decoder_forward.1} parent=1 // pred_fallthru
      _
    // Predicated region
    $region42: #{top_decoder_forward.1} parent=1 // pred_check
      _
    $region43: #{top_decoder_forward.1} parent=1 // pred_check_branch
      %124 = sbr.rel (0) target = $region45
    $region44: #{top_decoder_forward.1} parent=1 // pred_region
      %125 = dma.done [#allocation6], 8192
    $region45: #{top_decoder_forward.1} parent=1 // pred_fallthru
      _
    // Predicated region
    $region46: #{top_decoder_forward.1} parent=1 // pred_check
      _
    $region47: #{top_decoder_forward.1} parent=1 // pred_check_branch
      %127 = sbr.rel (0) target = $region49
    $region48: #{top_decoder_forward.1} parent=1 // pred_region
      %128 = dma.done [#allocation6], 64
    $region49: #{top_decoder_forward.1} parent=1 // pred_fallthru
      _
    // Predicated region
    $region50: #{top_decoder_forward.1} parent=1 // pred_check
      _
    $region51: #{top_decoder_forward.1} parent=1 // pred_check_branch
      %130 = sbr.rel (0) target = $region53
    $region52: #{top_decoder_forward.1} parent=1 // pred_region
      %131 = dma.done [#allocation9], 32768
    $region53: #{top_decoder_forward.1} parent=1 // pred_fallthru
      _
    // Predicated region
    $region54: #{top_decoder_forward.1} parent=1 // pred_check
      _
    $region55: #{top_decoder_forward.1} parent=1 // pred_check_branch
      %133 = sbr.rel (0) target = $region57
    $region56: #{top_decoder_forward.1} parent=1 // pred_region
      %134 = dma.done [#allocation9], 64
    $region57: #{top_decoder_forward.1} parent=1 // pred_fallthru
      _
    // Predicated region
    $region58: #{top_decoder_forward.1} parent=1 // pred_check
      _
    $region59: #{top_decoder_forward.1} parent=1 // pred_check_branch
      %136 = sbr.rel (0) target = $region61
    $region60: #{top_decoder_forward.1} parent=1 // pred_region
      %137 = dma.done [#allocation12], 32768
    $region61: #{top_decoder_forward.1} parent=1 // pred_fallthru
      _
    // Predicated region
    $region62: #{top_decoder_forward.1} parent=1 // pred_check
      _
    $region63: #{top_decoder_forward.1} parent=1 // pred_check_branch
      %139 = sbr.rel (0) target = $region65
    $region64: #{top_decoder_forward.1} parent=1 // pred_region
      %140 = dma.done [#allocation12], 64
    $region65: #{top_decoder_forward.1} parent=1 // pred_fallthru
      _
    // Predicated region
    $region66: #{top_decoder_forward.1} parent=1 // pred_check
      _
    $region67: #{top_decoder_forward.1} parent=1 // pred_check_branch
      %142 = sbr.rel (0) target = $region69
    $region68: #{top_decoder_forward.1} parent=1 // pred_region
      %143 = dma.done [#allocation15], 8192
    $region69: #{top_decoder_forward.1} parent=1 // pred_fallthru
      _
    // Predicated region
    $region70: #{top_decoder_forward.1} parent=1 // pred_check
      _
    $region71: #{top_decoder_forward.1} parent=1 // pred_check_branch
      %145 = sbr.rel (0) target = $region73
    $region72: #{top_decoder_forward.1} parent=1 // pred_region
      %146 = dma.done [#allocation15], 16
    $region73: #{top_decoder_forward.1} parent=1 // pred_fallthru
      _
    %v147 = vld [vmem:[#allocation2] sm:$0xff]
    %v148 = vld [vmem:[#allocation2 + $0x8] sm:$0xff]
    %v149 = vld [vmem:[#allocation2 + $0x10] sm:$0xff]
    %v150 = vld [vmem:[#allocation2 + $0x18] sm:$0xff]
    %v151 = vld [vmem:[#allocation2 + $0x20] sm:$0xff]
    %v152 = vld [vmem:[#allocation2 + $0x28] sm:$0xff]
    %v153 = vld [vmem:[#allocation2 + $0x30] sm:$0xff]
    %v154 = vld [vmem:[#allocation2 + $0x38] sm:$0xff]
    %v155 = vld [vmem:[#allocation2 + $0x40] sm:$0xff]
    %v156 = vld [vmem:[#allocation2 + $0x48] sm:$0xff]
    %v157 = vld [vmem:[#allocation2 + $0x50] sm:$0xff]
    %v158 = vld [vmem:[#allocation2 + $0x58] sm:$0xff]
    %v159 = vld [vmem:[#allocation2 + $0x60] sm:$0xff]
    %v160 = vld [vmem:[#allocation2 + $0x68] sm:$0xff]
    %v161 = vld [vmem:[#allocation2 + $0x70] sm:$0xff]
    %v162 = vld [vmem:[#allocation2 + $0x78] sm:$0xff]
    %v163 = vld [vmem:[#allocation2 + $0x80] sm:$0xff]
    %v164 = vld [vmem:[#allocation2 + $0x88] sm:$0xff]
    %v165 = vld [vmem:[#allocation2 + $0x90] sm:$0xff]
    %v166 = vld [vmem:[#allocation2 + $0x98] sm:$0xff]
    %v167 = vld [vmem:[#allocation2 + $0xa0] sm:$0xff]
    %v168 = vld [vmem:[#allocation2 + $0xa8] sm:$0xff]
    %v169 = vld [vmem:[#allocation2 + $0xb0] sm:$0xff]
    %v170 = vld [vmem:[#allocation2 + $0xb8] sm:$0xff]
    %v171 = vld [vmem:[#allocation2 + $0xc0] sm:$0xff]
    %v172 = vld [vmem:[#allocation2 + $0xc8] sm:$0xff]
    %v173 = vld [vmem:[#allocation2 + $0xd0] sm:$0xff]
    %v174 = vld [vmem:[#allocation2 + $0xd8] sm:$0xff]
    %v175 = vld [vmem:[#allocation2 + $0xe0] sm:$0xff]
    %v176 = vld [vmem:[#allocation2 + $0xe8] sm:$0xff]
    %v177 = vld [vmem:[#allocation2 + $0xf0] sm:$0xff]
    %v178 = vld [vmem:[#allocation2 + $0xf8] sm:$0xff]
    %v179 = vld [vmem:[#allocation5] sm:$0xff]
    %v180 = vld [vmem:[#allocation5 + $0x8] sm:$0xff]
    %v181 = vld [vmem:[#allocation5 + $0x10] sm:$0xff]
    %v182 = vld [vmem:[#allocation5 + $0x18] sm:$0xff]
    %v183 = vld [vmem:[#allocation5 + $0x20] sm:$0xff]
    %v184 = vld [vmem:[#allocation5 + $0x28] sm:$0xff]
    %v185 = vld [vmem:[#allocation5 + $0x30] sm:$0xff]
    %v186 = vld [vmem:[#allocation5 + $0x38] sm:$0xff]
    %v187 = vld [vmem:[#allocation5 + $0x40] sm:$0xff]
    %v188 = vld [vmem:[#allocation5 + $0x48] sm:$0xff]
    %v189 = vld [vmem:[#allocation5 + $0x50] sm:$0xff]
    %v190 = vld [vmem:[#allocation5 + $0x58] sm:$0xff]
    %v191 = vld [vmem:[#allocation5 + $0x60] sm:$0xff]
    %v192 = vld [vmem:[#allocation5 + $0x68] sm:$0xff]
    %v193 = vld [vmem:[#allocation5 + $0x70] sm:$0xff]
    %v194 = vld [vmem:[#allocation5 + $0x78] sm:$0xff]
    %v195 = vld [vmem:[#allocation5 + $0x80] sm:$0xff]
    %v196 = vld [vmem:[#allocation5 + $0x88] sm:$0xff]
    %v197 = vld [vmem:[#allocation5 + $0x90] sm:$0xff]
    %v198 = vld [vmem:[#allocation5 + $0x98] sm:$0xff]
    %v199 = vld [vmem:[#allocation5 + $0xa0] sm:$0xff]
    %v200 = vld [vmem:[#allocation5 + $0xa8] sm:$0xff]
    %v201 = vld [vmem:[#allocation5 + $0xb0] sm:$0xff]
    %v202 = vld [vmem:[#allocation5 + $0xb8] sm:$0xff]
    %v203 = vld [vmem:[#allocation5 + $0xc0] sm:$0xff]
    %v204 = vld [vmem:[#allocation5 + $0xc8] sm:$0xff]
    %v205 = vld [vmem:[#allocation5 + $0xd0] sm:$0xff]
    %v206 = vld [vmem:[#allocation5 + $0xd8] sm:$0xff]
    %v207 = vld [vmem:[#allocation5 + $0xe0] sm:$0xff]
    %v208 = vld [vmem:[#allocation5 + $0xe8] sm:$0xff]
    %v209 = vld [vmem:[#allocation5 + $0xf0] sm:$0xff]
    %v210 = vld [vmem:[#allocation5 + $0xf8] sm:$0xff]
    %v211 = vld [vmem:[#allocation5 + $0x100] sm:$0xff]
    %v212 = vld [vmem:[#allocation5 + $0x108] sm:$0xff]
    %v213 = vld [vmem:[#allocation5 + $0x110] sm:$0xff]
    %v214 = vld [vmem:[#allocation5 + $0x118] sm:$0xff]
    %v215 = vld [vmem:[#allocation5 + $0x120] sm:$0xff]
    %v216 = vld [vmem:[#allocation5 + $0x128] sm:$0xff]
    %v217 = vld [vmem:[#allocation5 + $0x130] sm:$0xff]
    %v218 = vld [vmem:[#allocation5 + $0x138] sm:$0xff]
    %v219 = vld [vmem:[#allocation5 + $0x140] sm:$0xff]
    %v220 = vld [vmem:[#allocation5 + $0x148] sm:$0xff]
    %v221 = vld [vmem:[#allocation5 + $0x150] sm:$0xff]
    %v222 = vld [vmem:[#allocation5 + $0x158] sm:$0xff]
    %v223 = vld [vmem:[#allocation5 + $0x160] sm:$0xff]
    %v224 = vld [vmem:[#allocation5 + $0x168] sm:$0xff]
    %v225 = vld [vmem:[#allocation5 + $0x170] sm:$0xff]
    %v226 = vld [vmem:[#allocation5 + $0x178] sm:$0xff]
    %v227 = vld [vmem:[#allocation5 + $0x180] sm:$0xff]
    %v228 = vld [vmem:[#allocation5 + $0x188] sm:$0xff]
    %v229 = vld [vmem:[#allocation5 + $0x190] sm:$0xff]
    %v230 = vld [vmem:[#allocation5 + $0x198] sm:$0xff]
    %v231 = vld [vmem:[#allocation5 + $0x1a0] sm:$0xff]
    %v232 = vld [vmem:[#allocation5 + $0x1a8] sm:$0xff]
    %v233 = vld [vmem:[#allocation5 + $0x1b0] sm:$0xff]
    %v234 = vld [vmem:[#allocation5 + $0x1b8] sm:$0xff]
    %v235 = vld [vmem:[#allocation5 + $0x1c0] sm:$0xff]
    %v236 = vld [vmem:[#allocation5 + $0x1c8] sm:$0xff]
    %v237 = vld [vmem:[#allocation5 + $0x1d0] sm:$0xff]
    %v238 = vld [vmem:[#allocation5 + $0x1d8] sm:$0xff]
    %v239 = vld [vmem:[#allocation5 + $0x1e0] sm:$0xff]
    %v240 = vld [vmem:[#allocation5 + $0x1e8] sm:$0xff]
    %v241 = vld [vmem:[#allocation5 + $0x1f0] sm:$0xff]
    %v242 = vld [vmem:[#allocation5 + $0x1f8] sm:$0xff]
    %v243 = vld [vmem:[#allocation7] sm:$0xf]
    %v245 = vlaneseq
    %v246 = vshrl.u32 %v245, 7
    %v247 = vsub.s32 0, %v246
    %v248 = vrot.slane %v243, %v247
    %v249 = vlaneseq
    %v250 = vshrl.u32 %v249, 7
    %v251 = vsub.s32 1, %v250
    %v252 = vrot.slane %v243, %v251
    %v253 = vlaneseq
    %v254 = vshrl.u32 %v253, 7
    %v255 = vsub.s32 2, %v254
    %v256 = vrot.slane %v243, %v255
    %v257 = vlaneseq
    %v258 = vshrl.u32 %v257, 7
    %v259 = vsub.s32 3, %v258
    %v260 = vrot.slane %v243, %v259
    %265 = vmatprep.subr.mxu0 %v180
    %266 = vmatpush1.msra.mxu0 %v179
    %267 = vmatprep.subr.mxu0 %v184
    %268 = vmatpush1.msra.mxu0 %v183
    %269 = vmatprep.subr.mxu0 %v188
    %270 = vmatpush1.msra.mxu0 %v187
    %271 = vmatprep.subr.mxu0 %v192
    %272 = vmatpush1.msra.mxu0 %v191
    %273 = vmatprep.subr.mxu0 %v196
    %274 = vmatpush1.msra.mxu0 %v195
    %275 = vmatprep.subr.mxu0 %v200
    %276 = vmatpush1.msra.mxu0 %v199
    %277 = vmatprep.subr.mxu0 %v204
    %278 = vmatpush1.msra.mxu0 %v203
    %279 = vmatprep.subr.mxu0 %v208
    %280 = vmatpush1.msra.mxu0 %v207
    %281 = vmatprep.subr.mxu0 %v212
    %282 = vmatpush1.msra.mxu0 %v211
    %283 = vmatprep.subr.mxu0 %v216
    %284 = vmatpush1.msra.mxu0 %v215
    %285 = vmatprep.subr.mxu0 %v220
    %286 = vmatpush1.msra.mxu0 %v219
    %287 = vmatprep.subr.mxu0 %v224
    %288 = vmatpush1.msra.mxu0 %v223
    %289 = vmatprep.subr.mxu0 %v228
    %290 = vmatpush1.msra.mxu0 %v227
    %291 = vmatprep.subr.mxu0 %v232
    %292 = vmatpush1.msra.mxu0 %v231
    %293 = vmatprep.subr.mxu0 %v236
    %294 = vmatpush1.msra.mxu0 %v235
    %295 = vmatprep.subr.mxu0 %v240
    %296 = vmatpush1.msra.mxu0 %v239
    %297 = vmatprep.subr.mxu0 0.0
    %298 = vmatpush1.msra.mxu0 0.0
    %299 = vmatprep.subr.mxu0 0.0
    %300 = vmatpush1.msra.mxu0 0.0
    %301 = vmatprep.subr.mxu0 0.0
    %302 = vmatpush1.msra.mxu0 0.0
    %303 = vmatprep.subr.mxu0 0.0
    %304 = vmatpush1.msra.mxu0 0.0
    %305 = vmatprep.subr.mxu0 0.0
    %306 = vmatpush1.msra.mxu0 0.0
    %307 = vmatprep.subr.mxu0 0.0
    %308 = vmatpush1.msra.mxu0 0.0
    %309 = vmatprep.subr.mxu0 0.0
    %310 = vmatpush1.msra.mxu0 0.0
    %311 = vmatprep.subr.mxu0 0.0
    %312 = vmatpush1.msra.mxu0 0.0
    %313 = vmatprep.subr.mxu0 0.0
    %314 = vmatpush1.msra.mxu0 0.0
    %315 = vmatprep.subr.mxu0 0.0
    %316 = vmatpush1.msra.mxu0 0.0
    %317 = vmatprep.subr.mxu0 0.0
    %318 = vmatpush1.msra.mxu0 0.0
    %319 = vmatprep.subr.mxu0 0.0
    %320 = vmatpush1.msra.mxu0 0.0
    %321 = vmatprep.subr.mxu0 0.0
    %322 = vmatpush1.msra.mxu0 0.0
    %323 = vmatprep.subr.mxu0 0.0
    %324 = vmatpush1.msra.mxu0 0.0
    %325 = vmatprep.subr.mxu0 0.0
    %326 = vmatpush1.msra.mxu0 0.0
    %327 = vmatprep.subr.mxu0 0.0
    %328 = vmatpush1.msra.mxu0 0.0
    %329 = vmatprep.mubr.f32.mxu0 0.0
    %330 = vmatmul.mubr.f32.gmra.mrb[0].mxu0 %v147
    %v331 = vpop.f32.mrb[0].mxu0
    %v332 = vadd.f32 %v248, %v331
    %v333 = vpop.f32.mrb[0].mxu0
    %v334 = vadd.f32 %v252, %v333
    %335 = vmatprep.mubr.f32.mxu0 0.0
    %336 = vmatmul.mubr.f32.gmra.mrb[0].mxu0 %v148
    %v337 = vpop.f32.mrb[0].mxu0
    %v338 = vadd.f32 %v248, %v337
    %v339 = vpop.f32.mrb[0].mxu0
    %v340 = vadd.f32 %v252, %v339
    %341 = vmatprep.mubr.f32.mxu0 0.0
    %342 = vmatmul.mubr.f32.gmra.mrb[0].mxu0 %v149
    %v343 = vpop.f32.mrb[0].mxu0
    %v344 = vadd.f32 %v248, %v343
    %v345 = vpop.f32.mrb[0].mxu0
    %v346 = vadd.f32 %v252, %v345
    %347 = vmatprep.mubr.f32.mxu0 0.0
    %348 = vmatmul.mubr.f32.gmra.mrb[0].mxu0 %v150
    %v349 = vpop.f32.mrb[0].mxu0
    %v350 = vadd.f32 %v248, %v349
    %v351 = vpop.f32.mrb[0].mxu0
    %v352 = vadd.f32 %v252, %v351
    %353 = vmatprep.mubr.f32.mxu0 0.0
    %354 = vmatmul.mubr.f32.gmra.mrb[0].mxu0 %v151
    %v355 = vpop.f32.mrb[0].mxu0
    %v356 = vadd.f32 %v248, %v355
    %v357 = vpop.f32.mrb[0].mxu0
    %v358 = vadd.f32 %v252, %v357
    %359 = vmatprep.mubr.f32.mxu0 0.0
    %360 = vmatmul.mubr.f32.gmra.mrb[0].mxu0 %v152
    %v361 = vpop.f32.mrb[0].mxu0
    %v362 = vadd.f32 %v248, %v361
    %v363 = vpop.f32.mrb[0].mxu0
    %v364 = vadd.f32 %v252, %v363
    %365 = vmatprep.mubr.f32.mxu0 0.0
    %366 = vmatmul.mubr.f32.gmra.mrb[0].mxu0 %v153
    %v367 = vpop.f32.mrb[0].mxu0
    %v368 = vadd.f32 %v248, %v367
    %v369 = vpop.f32.mrb[0].mxu0
    %v370 = vadd.f32 %v252, %v369
    %371 = vmatprep.mubr.f32.mxu0 0.0
    %372 = vmatmul.mubr.f32.gmra.mrb[0].mxu0 %v154
    %v373 = vpop.f32.mrb[0].mxu0
    %v374 = vadd.f32 %v248, %v373
    %v375 = vpop.f32.mrb[0].mxu0
    %v376 = vadd.f32 %v252, %v375
    %377 = vmatprep.mubr.f32.mxu0 0.0
    %378 = vmatmul.mubr.f32.gmra.mrb[0].mxu0 %v155
    %v379 = vpop.f32.mrb[0].mxu0
    %v380 = vadd.f32 %v248, %v379
    %v381 = vpop.f32.mrb[0].mxu0
    %v382 = vadd.f32 %v252, %v381
    %383 = vmatprep.mubr.f32.mxu0 0.0
    %384 = vmatmul.mubr.f32.gmra.mrb[0].mxu0 %v156
    %v385 = vpop.f32.mrb[0].mxu0
    %v386 = vadd.f32 %v248, %v385
    %v387 = vpop.f32.mrb[0].mxu0
    %v388 = vadd.f32 %v252, %v387
    %389 = vmatprep.mubr.f32.mxu0 0.0
    %390 = vmatmul.mubr.f32.gmra.mrb[0].mxu0 %v157
    %v391 = vpop.f32.mrb[0].mxu0
    %v392 = vadd.f32 %v248, %v391
    %v393 = vpop.f32.mrb[0].mxu0
    %v394 = vadd.f32 %v252, %v393
    %395 = vmatprep.mubr.f32.mxu0 0.0
    %396 = vmatmul.mubr.f32.gmra.mrb[0].mxu0 %v158
    %v397 = vpop.f32.mrb[0].mxu0
    %v398 = vadd.f32 %v248, %v397
    %v399 = vpop.f32.mrb[0].mxu0
    %v400 = vadd.f32 %v252, %v399
    %401 = vmatprep.mubr.f32.mxu0 0.0
    %402 = vmatmul.mubr.f32.gmra.mrb[0].mxu0 %v159
    %v403 = vpop.f32.mrb[0].mxu0
    %v404 = vadd.f32 %v248, %v403
    %v405 = vpop.f32.mrb[0].mxu0
    %v406 = vadd.f32 %v252, %v405
    %407 = vmatprep.mubr.f32.mxu0 0.0
    %408 = vmatmul.mubr.f32.gmra.mrb[0].mxu0 %v160
    %v409 = vpop.f32.mrb[0].mxu0
    %v410 = vadd.f32 %v248, %v409
    %v411 = vpop.f32.mrb[0].mxu0
    %v412 = vadd.f32 %v252, %v411
    %413 = vmatprep.mubr.f32.mxu0 0.0
    %414 = vmatmul.mubr.f32.gmra.mrb[0].mxu0 %v161
    %v415 = vpop.f32.mrb[0].mxu0
    %v416 = vadd.f32 %v248, %v415
    %v417 = vpop.f32.mrb[0].mxu0
    %v418 = vadd.f32 %v252, %v417
    %419 = vmatprep.mubr.f32.mxu0 0.0
    %420 = vmatmul.mubr.f32.gmra.mrb[0].mxu0 %v162
    %v421 = vpop.f32.mrb[0].mxu0
    %v422 = vadd.f32 %v248, %v421
    %v423 = vpop.f32.mrb[0].mxu0
    %v424 = vadd.f32 %v252, %v423
    %425 = vmatprep.mubr.f32.mxu0 0.0
    %426 = vmatmul.mubr.f32.gmra.mrb[0].mxu0 %v163
    %v427 = vpop.f32.mrb[0].mxu0
    %v428 = vadd.f32 %v248, %v427
    %v429 = vpop.f32.mrb[0].mxu0
    %v430 = vadd.f32 %v252, %v429
    %431 = vmatprep.mubr.f32.mxu0 0.0
    %432 = vmatmul.mubr.f32.gmra.mrb[0].mxu0 %v164
    %v433 = vpop.f32.mrb[0].mxu0
    %v434 = vadd.f32 %v248, %v433
    %v435 = vpop.f32.mrb[0].mxu0
    %v436 = vadd.f32 %v252, %v435
    %437 = vmatprep.mubr.f32.mxu0 0.0
    %438 = vmatmul.mubr.f32.gmra.mrb[0].mxu0 %v165
    %v439 = vpop.f32.mrb[0].mxu0
    %v440 = vadd.f32 %v248, %v439
    %v441 = vpop.f32.mrb[0].mxu0
    %v442 = vadd.f32 %v252, %v441
    %443 = vmatprep.mubr.f32.mxu0 0.0
    %444 = vmatmul.mubr.f32.gmra.mrb[0].mxu0 %v166
    %v445 = vpop.f32.mrb[0].mxu0
    %v446 = vadd.f32 %v248, %v445
    %v447 = vpop.f32.mrb[0].mxu0
    %v448 = vadd.f32 %v252, %v447
    %449 = vmatprep.mubr.f32.mxu0 0.0
    %450 = vmatmul.mubr.f32.gmra.mrb[0].mxu0 %v167
    %v451 = vpop.f32.mrb[0].mxu0
    %v452 = vadd.f32 %v248, %v451
    %v453 = vpop.f32.mrb[0].mxu0
    %v454 = vadd.f32 %v252, %v453
    %455 = vmatprep.mubr.f32.mxu0 0.0
    %456 = vmatmul.mubr.f32.gmra.mrb[0].mxu0 %v168
    %v457 = vpop.f32.mrb[0].mxu0
    %v458 = vadd.f32 %v248, %v457
    %v459 = vpop.f32.mrb[0].mxu0
    %v460 = vadd.f32 %v252, %v459
    %461 = vmatprep.mubr.f32.mxu0 0.0
    %462 = vmatmul.mubr.f32.gmra.mrb[0].mxu0 %v169
    %v463 = vpop.f32.mrb[0].mxu0
    %v464 = vadd.f32 %v248, %v463
    %v465 = vpop.f32.mrb[0].mxu0
    %v466 = vadd.f32 %v252, %v465
    %467 = vmatprep.mubr.f32.mxu0 0.0
    %468 = vmatmul.mubr.f32.gmra.mrb[0].mxu0 %v170
    %v469 = vpop.f32.mrb[0].mxu0
    %v470 = vadd.f32 %v248, %v469
    %v471 = vpop.f32.mrb[0].mxu0
    %v472 = vadd.f32 %v252, %v471
    %473 = vmatprep.mubr.f32.mxu0 0.0
    %474 = vmatmul.mubr.f32.gmra.mrb[0].mxu0 %v171
    %v475 = vpop.f32.mrb[0].mxu0
    %v476 = vadd.f32 %v248, %v475
    %v477 = vpop.f32.mrb[0].mxu0
    %v478 = vadd.f32 %v252, %v477
    %479 = vmatprep.mubr.f32.mxu0 0.0
    %480 = vmatmul.mubr.f32.gmra.mrb[0].mxu0 %v172
    %v481 = vpop.f32.mrb[0].mxu0
    %v482 = vadd.f32 %v248, %v481
    %v483 = vpop.f32.mrb[0].mxu0
    %v484 = vadd.f32 %v252, %v483
    %485 = vmatprep.mubr.f32.mxu0 0.0
    %486 = vmatmul.mubr.f32.gmra.mrb[0].mxu0 %v173
    %v487 = vpop.f32.mrb[0].mxu0
    %v488 = vadd.f32 %v248, %v487
    %v489 = vpop.f32.mrb[0].mxu0
    %v490 = vadd.f32 %v252, %v489
    %491 = vmatprep.mubr.f32.mxu0 0.0
    %492 = vmatmul.mubr.f32.gmra.mrb[0].mxu0 %v174
    %v493 = vpop.f32.mrb[0].mxu0
    %v494 = vadd.f32 %v248, %v493
    %v495 = vpop.f32.mrb[0].mxu0
    %v496 = vadd.f32 %v252, %v495
    %497 = vmatprep.mubr.f32.mxu0 0.0
    %498 = vmatmul.mubr.f32.gmra.mrb[0].mxu0 %v175
    %v499 = vpop.f32.mrb[0].mxu0
    %v500 = vadd.f32 %v248, %v499
    %v501 = vpop.f32.mrb[0].mxu0
    %v502 = vadd.f32 %v252, %v501
    %503 = vmatprep.mubr.f32.mxu0 0.0
    %504 = vmatmul.mubr.f32.gmra.mrb[0].mxu0 %v176
    %v505 = vpop.f32.mrb[0].mxu0
    %v506 = vadd.f32 %v248, %v505
    %v507 = vpop.f32.mrb[0].mxu0
    %v508 = vadd.f32 %v252, %v507
    %509 = vmatprep.mubr.f32.mxu0 0.0
    %510 = vmatmul.mubr.f32.gmra.mrb[0].mxu0 %v177
    %v511 = vpop.f32.mrb[0].mxu0
    %v512 = vadd.f32 %v248, %v511
    %v513 = vpop.f32.mrb[0].mxu0
    %v514 = vadd.f32 %v252, %v513
    %515 = vmatprep.mubr.f32.mxu0 0.0
    %516 = vmatmul.mubr.f32.gmra.mrb[0].mxu0 %v178
    %v517 = vpop.f32.mrb[0].mxu0
    %v518 = vadd.f32 %v248, %v517
    %v519 = vpop.f32.mrb[0].mxu0
    %v520 = vadd.f32 %v252, %v519
    %521 = vdwg.mxu0
    %522 = vmatprep.subr.mxu0 %v182
    %523 = vmatpush1.msra.mxu0 %v181
    %524 = vmatprep.subr.mxu0 %v186
    %525 = vmatpush1.msra.mxu0 %v185
    %526 = vmatprep.subr.mxu0 %v190
    %527 = vmatpush1.msra.mxu0 %v189
    %528 = vmatprep.subr.mxu0 %v194
    %529 = vmatpush1.msra.mxu0 %v193
    %530 = vmatprep.subr.mxu0 %v198
    %531 = vmatpush1.msra.mxu0 %v197
    %532 = vmatprep.subr.mxu0 %v202
    %533 = vmatpush1.msra.mxu0 %v201
    %534 = vmatprep.subr.mxu0 %v206
    %535 = vmatpush1.msra.mxu0 %v205
    %536 = vmatprep.subr.mxu0 %v210
    %537 = vmatpush1.msra.mxu0 %v209
    %538 = vmatprep.subr.mxu0 %v214
    %539 = vmatpush1.msra.mxu0 %v213
    %540 = vmatprep.subr.mxu0 %v218
    %541 = vmatpush1.msra.mxu0 %v217
    %542 = vmatprep.subr.mxu0 %v222
    %543 = vmatpush1.msra.mxu0 %v221
    %544 = vmatprep.subr.mxu0 %v226
    %545 = vmatpush1.msra.mxu0 %v225
    %546 = vmatprep.subr.mxu0 %v230
    %547 = vmatpush1.msra.mxu0 %v229
    %548 = vmatprep.subr.mxu0 %v234
    %549 = vmatpush1.msra.mxu0 %v233
    %550 = vmatprep.subr.mxu0 %v238
    %551 = vmatpush1.msra.mxu0 %v237
    %552 = vmatprep.subr.mxu0 %v242
    %553 = vmatpush1.msra.mxu0 %v241
    %554 = vmatprep.subr.mxu0 0.0
    %555 = vmatpush1.msra.mxu0 0.0
    %556 = vmatprep.subr.mxu0 0.0
    %557 = vmatpush1.msra.mxu0 0.0
    %558 = vmatprep.subr.mxu0 0.0
    %559 = vmatpush1.msra.mxu0 0.0
    %560 = vmatprep.subr.mxu0 0.0
    %561 = vmatpush1.msra.mxu0 0.0
    %562 = vmatprep.subr.mxu0 0.0
    %563 = vmatpush1.msra.mxu0 0.0
    %564 = vmatprep.subr.mxu0 0.0
    %565 = vmatpush1.msra.mxu0 0.0
    %566 = vmatprep.subr.mxu0 0.0
    %567 = vmatpush1.msra.mxu0 0.0
    %568 = vmatprep.subr.mxu0 0.0
    %569 = vmatpush1.msra.mxu0 0.0
    %570 = vmatprep.subr.mxu0 0.0
    %571 = vmatpush1.msra.mxu0 0.0
    %572 = vmatprep.subr.mxu0 0.0
    %573 = vmatpush1.msra.mxu0 0.0
    %574 = vmatprep.subr.mxu0 0.0
    %575 = vmatpush1.msra.mxu0 0.0
    %576 = vmatprep.subr.mxu0 0.0
    %577 = vmatpush1.msra.mxu0 0.0
    %578 = vmatprep.subr.mxu0 0.0
    %579 = vmatpush1.msra.mxu0 0.0
    %580 = vmatprep.subr.mxu0 0.0
    %581 = vmatpush1.msra.mxu0 0.0
    %582 = vmatprep.subr.mxu0 0.0
    %583 = vmatpush1.msra.mxu0 0.0
    %584 = vmatprep.subr.mxu0 0.0
    %585 = vmatpush1.msra.mxu0 0.0
    %586 = vmatprep.mubr.f32.mxu0 0.0
    %587 = vmatmul.mubr.f32.gmra.mrb[0].mxu0 %v147
    %v588 = vpop.f32.mrb[0].mxu0
    %v589 = vadd.f32 %v256, %v588
    %v590 = vpop.f32.mrb[0].mxu0
    %v591 = vadd.f32 %v260, %v590
    %592 = vmatprep.mubr.f32.mxu0 0.0
    %593 = vmatmul.mubr.f32.gmra.mrb[0].mxu0 %v148
    %v594 = vpop.f32.mrb[0].mxu0
    %v595 = vadd.f32 %v256, %v594
    %v596 = vpop.f32.mrb[0].mxu0
    %v597 = vadd.f32 %v260, %v596
    %598 = vmatprep.mubr.f32.mxu0 0.0
    %599 = vmatmul.mubr.f32.gmra.mrb[0].mxu0 %v149
    %v600 = vpop.f32.mrb[0].mxu0
    %v601 = vadd.f32 %v256, %v600
    %v602 = vpop.f32.mrb[0].mxu0
    %v603 = vadd.f32 %v260, %v602
    %604 = vmatprep.mubr.f32.mxu0 0.0
    %605 = vmatmul.mubr.f32.gmra.mrb[0].mxu0 %v150
    %v606 = vpop.f32.mrb[0].mxu0
    %v607 = vadd.f32 %v256, %v606
    %v608 = vpop.f32.mrb[0].mxu0
    %v609 = vadd.f32 %v260, %v608
    %610 = vmatprep.mubr.f32.mxu0 0.0
    %611 = vmatmul.mubr.f32.gmra.mrb[0].mxu0 %v151
    %v612 = vpop.f32.mrb[0].mxu0
    %v613 = vadd.f32 %v256, %v612
    %v614 = vpop.f32.mrb[0].mxu0
    %v615 = vadd.f32 %v260, %v614
    %616 = vmatprep.mubr.f32.mxu0 0.0
    %617 = vmatmul.mubr.f32.gmra.mrb[0].mxu0 %v152
    %v618 = vpop.f32.mrb[0].mxu0
    %v619 = vadd.f32 %v256, %v618
    %v620 = vpop.f32.mrb[0].mxu0
    %v621 = vadd.f32 %v260, %v620
    %622 = vmatprep.mubr.f32.mxu0 0.0
    %623 = vmatmul.mubr.f32.gmra.mrb[0].mxu0 %v153
    %v624 = vpop.f32.mrb[0].mxu0
    %v625 = vadd.f32 %v256, %v624
    %v626 = vpop.f32.mrb[0].mxu0
    %v627 = vadd.f32 %v260, %v626
    %628 = vmatprep.mubr.f32.mxu0 0.0
    %629 = vmatmul.mubr.f32.gmra.mrb[0].mxu0 %v154
    %v630 = vpop.f32.mrb[0].mxu0
    %v631 = vadd.f32 %v256, %v630
    %v632 = vpop.f32.mrb[0].mxu0
    %v633 = vadd.f32 %v260, %v632
    %634 = vmatprep.mubr.f32.mxu0 0.0
    %635 = vmatmul.mubr.f32.gmra.mrb[0].mxu0 %v155
    %v636 = vpop.f32.mrb[0].mxu0
    %v637 = vadd.f32 %v256, %v636
    %v638 = vpop.f32.mrb[0].mxu0
    %v639 = vadd.f32 %v260, %v638
    %640 = vmatprep.mubr.f32.mxu0 0.0
    %641 = vmatmul.mubr.f32.gmra.mrb[0].mxu0 %v156
    %v642 = vpop.f32.mrb[0].mxu0
    %v643 = vadd.f32 %v256, %v642
    %v644 = vpop.f32.mrb[0].mxu0
    %v645 = vadd.f32 %v260, %v644
    %646 = vmatprep.mubr.f32.mxu0 0.0
    %647 = vmatmul.mubr.f32.gmra.mrb[0].mxu0 %v157
    %v648 = vpop.f32.mrb[0].mxu0
    %v649 = vadd.f32 %v256, %v648
    %v650 = vpop.f32.mrb[0].mxu0
    %v651 = vadd.f32 %v260, %v650
    %652 = vmatprep.mubr.f32.mxu0 0.0
    %653 = vmatmul.mubr.f32.gmra.mrb[0].mxu0 %v158
    %v654 = vpop.f32.mrb[0].mxu0
    %v655 = vadd.f32 %v256, %v654
    %v656 = vpop.f32.mrb[0].mxu0
    %v657 = vadd.f32 %v260, %v656
    %658 = vmatprep.mubr.f32.mxu0 0.0
    %659 = vmatmul.mubr.f32.gmra.mrb[0].mxu0 %v159
    %v660 = vpop.f32.mrb[0].mxu0
    %v661 = vadd.f32 %v256, %v660
    %v662 = vpop.f32.mrb[0].mxu0
    %v663 = vadd.f32 %v260, %v662
    %664 = vmatprep.mubr.f32.mxu0 0.0
    %665 = vmatmul.mubr.f32.gmra.mrb[0].mxu0 %v160
    %v666 = vpop.f32.mrb[0].mxu0
    %v667 = vadd.f32 %v256, %v666
    %v668 = vpop.f32.mrb[0].mxu0
    %v669 = vadd.f32 %v260, %v668
    %670 = vmatprep.mubr.f32.mxu0 0.0
    %671 = vmatmul.mubr.f32.gmra.mrb[0].mxu0 %v161
    %v672 = vpop.f32.mrb[0].mxu0
    %v673 = vadd.f32 %v256, %v672
    %v674 = vpop.f32.mrb[0].mxu0
    %v675 = vadd.f32 %v260, %v674
    %676 = vmatprep.mubr.f32.mxu0 0.0
    %677 = vmatmul.mubr.f32.gmra.mrb[0].mxu0 %v162
    %v678 = vpop.f32.mrb[0].mxu0
    %v679 = vadd.f32 %v256, %v678
    %v680 = vpop.f32.mrb[0].mxu0
    %v681 = vadd.f32 %v260, %v680
    %682 = vmatprep.mubr.f32.mxu0 0.0
    %683 = vmatmul.mubr.f32.gmra.mrb[0].mxu0 %v163
    %v684 = vpop.f32.mrb[0].mxu0
    %v685 = vadd.f32 %v256, %v684
    %v686 = vpop.f32.mrb[0].mxu0
    %v687 = vadd.f32 %v260, %v686
    %688 = vmatprep.mubr.f32.mxu0 0.0
    %689 = vmatmul.mubr.f32.gmra.mrb[0].mxu0 %v164
    %v690 = vpop.f32.mrb[0].mxu0
    %v691 = vadd.f32 %v256, %v690
    %v692 = vpop.f32.mrb[0].mxu0
    %v693 = vadd.f32 %v260, %v692
    %694 = vmatprep.mubr.f32.mxu0 0.0
    %695 = vmatmul.mubr.f32.gmra.mrb[0].mxu0 %v165
    %v696 = vpop.f32.mrb[0].mxu0
    %v697 = vadd.f32 %v256, %v696
    %v698 = vpop.f32.mrb[0].mxu0
    %v699 = vadd.f32 %v260, %v698
    %700 = vmatprep.mubr.f32.mxu0 0.0
    %701 = vmatmul.mubr.f32.gmra.mrb[0].mxu0 %v166
    %v702 = vpop.f32.mrb[0].mxu0
    %v703 = vadd.f32 %v256, %v702
    %v704 = vpop.f32.mrb[0].mxu0
    %v705 = vadd.f32 %v260, %v704
    %706 = vmatprep.mubr.f32.mxu0 0.0
    %707 = vmatmul.mubr.f32.gmra.mrb[0].mxu0 %v167
    %v708 = vpop.f32.mrb[0].mxu0
    %v709 = vadd.f32 %v256, %v708
    %v710 = vpop.f32.mrb[0].mxu0
    %v711 = vadd.f32 %v260, %v710
    %712 = vmatprep.mubr.f32.mxu0 0.0
    %713 = vmatmul.mubr.f32.gmra.mrb[0].mxu0 %v168
    %v714 = vpop.f32.mrb[0].mxu0
    %v715 = vadd.f32 %v256, %v714
    %v716 = vpop.f32.mrb[0].mxu0
    %v717 = vadd.f32 %v260, %v716
    %718 = vmatprep.mubr.f32.mxu0 0.0
    %719 = vmatmul.mubr.f32.gmra.mrb[0].mxu0 %v169
    %v720 = vpop.f32.mrb[0].mxu0
    %v721 = vadd.f32 %v256, %v720
    %v722 = vpop.f32.mrb[0].mxu0
    %v723 = vadd.f32 %v260, %v722
    %724 = vmatprep.mubr.f32.mxu0 0.0
    %725 = vmatmul.mubr.f32.gmra.mrb[0].mxu0 %v170
    %v726 = vpop.f32.mrb[0].mxu0
    %v727 = vadd.f32 %v256, %v726
    %v728 = vpop.f32.mrb[0].mxu0
    %v729 = vadd.f32 %v260, %v728
    %730 = vmatprep.mubr.f32.mxu0 0.0
    %731 = vmatmul.mubr.f32.gmra.mrb[0].mxu0 %v171
    %v732 = vpop.f32.mrb[0].mxu0
    %v733 = vadd.f32 %v256, %v732
    %v734 = vpop.f32.mrb[0].mxu0
    %v735 = vadd.f32 %v260, %v734
    %736 = vmatprep.mubr.f32.mxu0 0.0
    %737 = vmatmul.mubr.f32.gmra.mrb[0].mxu0 %v172
    %v738 = vpop.f32.mrb[0].mxu0
    %v739 = vadd.f32 %v256, %v738
    %v740 = vpop.f32.mrb[0].mxu0
    %v741 = vadd.f32 %v260, %v740
    %742 = vmatprep.mubr.f32.mxu0 0.0
    %743 = vmatmul.mubr.f32.gmra.mrb[0].mxu0 %v173
    %v744 = vpop.f32.mrb[0].mxu0
    %v745 = vadd.f32 %v256, %v744
    %v746 = vpop.f32.mrb[0].mxu0
    %v747 = vadd.f32 %v260, %v746
    %748 = vmatprep.mubr.f32.mxu0 0.0
    %749 = vmatmul.mubr.f32.gmra.mrb[0].mxu0 %v174
    %v750 = vpop.f32.mrb[0].mxu0
    %v751 = vadd.f32 %v256, %v750
    %v752 = vpop.f32.mrb[0].mxu0
    %v753 = vadd.f32 %v260, %v752
    %754 = vmatprep.mubr.f32.mxu0 0.0
    %755 = vmatmul.mubr.f32.gmra.mrb[0].mxu0 %v175
    %v756 = vpop.f32.mrb[0].mxu0
    %v757 = vadd.f32 %v256, %v756
    %v758 = vpop.f32.mrb[0].mxu0
    %v759 = vadd.f32 %v260, %v758
    %760 = vmatprep.mubr.f32.mxu0 0.0
    %761 = vmatmul.mubr.f32.gmra.mrb[0].mxu0 %v176
    %v762 = vpop.f32.mrb[0].mxu0
    %v763 = vadd.f32 %v256, %v762
    %v764 = vpop.f32.mrb[0].mxu0
    %v765 = vadd.f32 %v260, %v764
    %766 = vmatprep.mubr.f32.mxu0 0.0
    %767 = vmatmul.mubr.f32.gmra.mrb[0].mxu0 %v177
    %v768 = vpop.f32.mrb[0].mxu0
    %v769 = vadd.f32 %v256, %v768
    %v770 = vpop.f32.mrb[0].mxu0
    %v771 = vadd.f32 %v260, %v770
    %772 = vmatprep.mubr.f32.mxu0 0.0
    %773 = vmatmul.mubr.f32.gmra.mrb[0].mxu0 %v178
    %v774 = vpop.f32.mrb[0].mxu0
    %v775 = vadd.f32 %v256, %v774
    %v776 = vpop.f32.mrb[0].mxu0
    %v777 = vadd.f32 %v260, %v776
    %778 = vdwg.mxu0
    %v779 = vmax.f32 %v332, 0.0
    %v780 = vmax.f32 %v334, 0.0
    %v781 = vmax.f32 %v589, 0.0
    %v782 = vmax.f32 %v591, 0.0
    %v783 = vmax.f32 %v338, 0.0
    %v784 = vmax.f32 %v340, 0.0
    %v785 = vmax.f32 %v595, 0.0
    %v786 = vmax.f32 %v597, 0.0
    %v787 = vmax.f32 %v344, 0.0
    %v788 = vmax.f32 %v346, 0.0
    %v789 = vmax.f32 %v601, 0.0
    %v790 = vmax.f32 %v603, 0.0
    %v791 = vmax.f32 %v350, 0.0
    %v792 = vmax.f32 %v352, 0.0
    %v793 = vmax.f32 %v607, 0.0
    %v794 = vmax.f32 %v609, 0.0
    %v795 = vmax.f32 %v356, 0.0
    %v796 = vmax.f32 %v358, 0.0
    %v797 = vmax.f32 %v613, 0.0
    %v798 = vmax.f32 %v615, 0.0
    %v799 = vmax.f32 %v362, 0.0
    %v800 = vmax.f32 %v364, 0.0
    %v801 = vmax.f32 %v619, 0.0
    %v802 = vmax.f32 %v621, 0.0
    %v803 = vmax.f32 %v368, 0.0
    %v804 = vmax.f32 %v370, 0.0
    %v805 = vmax.f32 %v625, 0.0
    %v806 = vmax.f32 %v627, 0.0
    %v807 = vmax.f32 %v374, 0.0
    %v808 = vmax.f32 %v376, 0.0
    %v809 = vmax.f32 %v631, 0.0
    %v810 = vmax.f32 %v633, 0.0
    %v811 = vmax.f32 %v380, 0.0
    %v812 = vmax.f32 %v382, 0.0
    %v813 = vmax.f32 %v637, 0.0
    %v814 = vmax.f32 %v639, 0.0
    %v815 = vmax.f32 %v386, 0.0
    %v816 = vmax.f32 %v388, 0.0
    %v817 = vmax.f32 %v643, 0.0
    %v818 = vmax.f32 %v645, 0.0
    %v819 = vmax.f32 %v392, 0.0
    %v820 = vmax.f32 %v394, 0.0
    %v821 = vmax.f32 %v649, 0.0
    %v822 = vmax.f32 %v651, 0.0
    %v823 = vmax.f32 %v398, 0.0
    %v824 = vmax.f32 %v400, 0.0
    %v825 = vmax.f32 %v655, 0.0
    %v826 = vmax.f32 %v657, 0.0
    %v827 = vmax.f32 %v404, 0.0
    %v828 = vmax.f32 %v406, 0.0
    %v829 = vmax.f32 %v661, 0.0
    %v830 = vmax.f32 %v663, 0.0
    %v831 = vmax.f32 %v410, 0.0
    %v832 = vmax.f32 %v412, 0.0
    %v833 = vmax.f32 %v667, 0.0
    %v834 = vmax.f32 %v669, 0.0
    %v835 = vmax.f32 %v416, 0.0
    %v836 = vmax.f32 %v418, 0.0
    %v837 = vmax.f32 %v673, 0.0
    %v838 = vmax.f32 %v675, 0.0
    %v839 = vmax.f32 %v422, 0.0
    %v840 = vmax.f32 %v424, 0.0
    %v841 = vmax.f32 %v679, 0.0
    %v842 = vmax.f32 %v681, 0.0
    %v843 = vmax.f32 %v428, 0.0
    %v844 = vmax.f32 %v430, 0.0
    %v845 = vmax.f32 %v685, 0.0
    %v846 = vmax.f32 %v687, 0.0
    %v847 = vmax.f32 %v434, 0.0
    %v848 = vmax.f32 %v436, 0.0
    %v849 = vmax.f32 %v691, 0.0
    %v850 = vmax.f32 %v693, 0.0
    %v851 = vmax.f32 %v440, 0.0
    %v852 = vmax.f32 %v442, 0.0
    %v853 = vmax.f32 %v697, 0.0
    %v854 = vmax.f32 %v699, 0.0
    %v855 = vmax.f32 %v446, 0.0
    %v856 = vmax.f32 %v448, 0.0
    %v857 = vmax.f32 %v703, 0.0
    %v858 = vmax.f32 %v705, 0.0
    %v859 = vmax.f32 %v452, 0.0
    %v860 = vmax.f32 %v454, 0.0
    %v861 = vmax.f32 %v709, 0.0
    %v862 = vmax.f32 %v711, 0.0
    %v863 = vmax.f32 %v458, 0.0
    %v864 = vmax.f32 %v460, 0.0
    %v865 = vmax.f32 %v715, 0.0
    %v866 = vmax.f32 %v717, 0.0
    %v867 = vmax.f32 %v464, 0.0
    %v868 = vmax.f32 %v466, 0.0
    %v869 = vmax.f32 %v721, 0.0
    %v870 = vmax.f32 %v723, 0.0
    %v871 = vmax.f32 %v470, 0.0
    %v872 = vmax.f32 %v472, 0.0
    %v873 = vmax.f32 %v727, 0.0
    %v874 = vmax.f32 %v729, 0.0
    %v875 = vmax.f32 %v476, 0.0
    %v876 = vmax.f32 %v478, 0.0
    %v877 = vmax.f32 %v733, 0.0
    %v878 = vmax.f32 %v735, 0.0
    %v879 = vmax.f32 %v482, 0.0
    %v880 = vmax.f32 %v484, 0.0
    %v881 = vmax.f32 %v739, 0.0
    %v882 = vmax.f32 %v741, 0.0
    %v883 = vmax.f32 %v488, 0.0
    %v884 = vmax.f32 %v490, 0.0
    %v885 = vmax.f32 %v745, 0.0
    %v886 = vmax.f32 %v747, 0.0
    %v887 = vmax.f32 %v494, 0.0
    %v888 = vmax.f32 %v496, 0.0
    %v889 = vmax.f32 %v751, 0.0
    %v890 = vmax.f32 %v753, 0.0
    %v891 = vmax.f32 %v500, 0.0
    %v892 = vmax.f32 %v502, 0.0
    %v893 = vmax.f32 %v757, 0.0
    %v894 = vmax.f32 %v759, 0.0
    %v895 = vmax.f32 %v506, 0.0
    %v896 = vmax.f32 %v508, 0.0
    %v897 = vmax.f32 %v763, 0.0
    %v898 = vmax.f32 %v765, 0.0
    %v899 = vmax.f32 %v512, 0.0
    %v900 = vmax.f32 %v514, 0.0
    %v901 = vmax.f32 %v769, 0.0
    %v902 = vmax.f32 %v771, 0.0
    %v903 = vmax.f32 %v518, 0.0
    %v904 = vmax.f32 %v520, 0.0
    %v905 = vmax.f32 %v775, 0.0
    %v906 = vmax.f32 %v777, 0.0
    %v907 = vld [vmem:[#allocation8] sm:$0xff]
    %v908 = vld [vmem:[#allocation8 + $0x8] sm:$0xff]
    %v909 = vld [vmem:[#allocation8 + $0x10] sm:$0xff]
    %v910 = vld [vmem:[#allocation8 + $0x18] sm:$0xff]
    %v911 = vld [vmem:[#allocation8 + $0x20] sm:$0xff]
    %v912 = vld [vmem:[#allocation8 + $0x28] sm:$0xff]
    %v913 = vld [vmem:[#allocation8 + $0x30] sm:$0xff]
    %v914 = vld [vmem:[#allocation8 + $0x38] sm:$0xff]
    %v915 = vld [vmem:[#allocation8 + $0x40] sm:$0xff]
    %v916 = vld [vmem:[#allocation8 + $0x48] sm:$0xff]
    %v917 = vld [vmem:[#allocation8 + $0x50] sm:$0xff]
    %v918 = vld [vmem:[#allocation8 + $0x58] sm:$0xff]
    %v919 = vld [vmem:[#allocation8 + $0x60] sm:$0xff]
    %v920 = vld [vmem:[#allocation8 + $0x68] sm:$0xff]
    %v921 = vld [vmem:[#allocation8 + $0x70] sm:$0xff]
    %v922 = vld [vmem:[#allocation8 + $0x78] sm:$0xff]
    %v923 = vld [vmem:[#allocation8 + $0x80] sm:$0xff]
    %v924 = vld [vmem:[#allocation8 + $0x88] sm:$0xff]
    %v925 = vld [vmem:[#allocation8 + $0x90] sm:$0xff]
    %v926 = vld [vmem:[#allocation8 + $0x98] sm:$0xff]
    %v927 = vld [vmem:[#allocation8 + $0xa0] sm:$0xff]
    %v928 = vld [vmem:[#allocation8 + $0xa8] sm:$0xff]
    %v929 = vld [vmem:[#allocation8 + $0xb0] sm:$0xff]
    %v930 = vld [vmem:[#allocation8 + $0xb8] sm:$0xff]
    %v931 = vld [vmem:[#allocation8 + $0xc0] sm:$0xff]
    %v932 = vld [vmem:[#allocation8 + $0xc8] sm:$0xff]
    %v933 = vld [vmem:[#allocation8 + $0xd0] sm:$0xff]
    %v934 = vld [vmem:[#allocation8 + $0xd8] sm:$0xff]
    %v935 = vld [vmem:[#allocation8 + $0xe0] sm:$0xff]
    %v936 = vld [vmem:[#allocation8 + $0xe8] sm:$0xff]
    %v937 = vld [vmem:[#allocation8 + $0xf0] sm:$0xff]
    %v938 = vld [vmem:[#allocation8 + $0xf8] sm:$0xff]
    %v939 = vld [vmem:[#allocation8 + $0x100] sm:$0xff]
    %v940 = vld [vmem:[#allocation8 + $0x108] sm:$0xff]
    %v941 = vld [vmem:[#allocation8 + $0x110] sm:$0xff]
    %v942 = vld [vmem:[#allocation8 + $0x118] sm:$0xff]
    %v943 = vld [vmem:[#allocation8 + $0x120] sm:$0xff]
    %v944 = vld [vmem:[#allocation8 + $0x128] sm:$0xff]
    %v945 = vld [vmem:[#allocation8 + $0x130] sm:$0xff]
    %v946 = vld [vmem:[#allocation8 + $0x138] sm:$0xff]
    %v947 = vld [vmem:[#allocation8 + $0x140] sm:$0xff]
    %v948 = vld [vmem:[#allocation8 + $0x148] sm:$0xff]
    %v949 = vld [vmem:[#allocation8 + $0x150] sm:$0xff]
    %v950 = vld [vmem:[#allocation8 + $0x158] sm:$0xff]
    %v951 = vld [vmem:[#allocation8 + $0x160] sm:$0xff]
    %v952 = vld [vmem:[#allocation8 + $0x168] sm:$0xff]
    %v953 = vld [vmem:[#allocation8 + $0x170] sm:$0xff]
    %v954 = vld [vmem:[#allocation8 + $0x178] sm:$0xff]
    %v955 = vld [vmem:[#allocation8 + $0x180] sm:$0xff]
    %v956 = vld [vmem:[#allocation8 + $0x188] sm:$0xff]
    %v957 = vld [vmem:[#allocation8 + $0x190] sm:$0xff]
    %v958 = vld [vmem:[#allocation8 + $0x198] sm:$0xff]
    %v959 = vld [vmem:[#allocation8 + $0x1a0] sm:$0xff]
    %v960 = vld [vmem:[#allocation8 + $0x1a8] sm:$0xff]
    %v961 = vld [vmem:[#allocation8 + $0x1b0] sm:$0xff]
    %v962 = vld [vmem:[#allocation8 + $0x1b8] sm:$0xff]
    %v963 = vld [vmem:[#allocation8 + $0x1c0] sm:$0xff]
    %v964 = vld [vmem:[#allocation8 + $0x1c8] sm:$0xff]
    %v965 = vld [vmem:[#allocation8 + $0x1d0] sm:$0xff]
    %v966 = vld [vmem:[#allocation8 + $0x1d8] sm:$0xff]
    %v967 = vld [vmem:[#allocation8 + $0x1e0] sm:$0xff]
    %v968 = vld [vmem:[#allocation8 + $0x1e8] sm:$0xff]
    %v969 = vld [vmem:[#allocation8 + $0x1f0] sm:$0xff]
    %v970 = vld [vmem:[#allocation8 + $0x1f8] sm:$0xff]
    %v971 = vld [vmem:[#allocation8 + $0x200] sm:$0xff]
    %v972 = vld [vmem:[#allocation8 + $0x208] sm:$0xff]
    %v973 = vld [vmem:[#allocation8 + $0x210] sm:$0xff]
    %v974 = vld [vmem:[#allocation8 + $0x218] sm:$0xff]
    %v975 = vld [vmem:[#allocation8 + $0x220] sm:$0xff]
    %v976 = vld [vmem:[#allocation8 + $0x228] sm:$0xff]
    %v977 = vld [vmem:[#allocation8 + $0x230] sm:$0xff]
    %v978 = vld [vmem:[#allocation8 + $0x238] sm:$0xff]
    %v979 = vld [vmem:[#allocation8 + $0x240] sm:$0xff]
    %v980 = vld [vmem:[#allocation8 + $0x248] sm:$0xff]
    %v981 = vld [vmem:[#allocation8 + $0x250] sm:$0xff]
    %v982 = vld [vmem:[#allocation8 + $0x258] sm:$0xff]
    %v983 = vld [vmem:[#allocation8 + $0x260] sm:$0xff]
    %v984 = vld [vmem:[#allocation8 + $0x268] sm:$0xff]
    %v985 = vld [vmem:[#allocation8 + $0x270] sm:$0xff]
    %v986 = vld [vmem:[#allocation8 + $0x278] sm:$0xff]
    %v987 = vld [vmem:[#allocation8 + $0x280] sm:$0xff]
    %v988 = vld [vmem:[#allocation8 + $0x288] sm:$0xff]
    %v989 = vld [vmem:[#allocation8 + $0x290] sm:$0xff]
    %v990 = vld [vmem:[#allocation8 + $0x298] sm:$0xff]
    %v991 = vld [vmem:[#allocation8 + $0x2a0] sm:$0xff]
    %v992 = vld [vmem:[#allocation8 + $0x2a8] sm:$0xff]
    %v993 = vld [vmem:[#allocation8 + $0x2b0] sm:$0xff]
    %v994 = vld [vmem:[#allocation8 + $0x2b8] sm:$0xff]
    %v995 = vld [vmem:[#allocation8 + $0x2c0] sm:$0xff]
    %v996 = vld [vmem:[#allocation8 + $0x2c8] sm:$0xff]
    %v997 = vld [vmem:[#allocation8 + $0x2d0] sm:$0xff]
    %v998 = vld [vmem:[#allocation8 + $0x2d8] sm:$0xff]
    %v999 = vld [vmem:[#allocation8 + $0x2e0] sm:$0xff]
    %v1000 = vld [vmem:[#allocation8 + $0x2e8] sm:$0xff]
    %v1001 = vld [vmem:[#allocation8 + $0x2f0] sm:$0xff]
    %v1002 = vld [vmem:[#allocation8 + $0x2f8] sm:$0xff]
    %v1003 = vld [vmem:[#allocation8 + $0x300] sm:$0xff]
    %v1004 = vld [vmem:[#allocation8 + $0x308] sm:$0xff]
    %v1005 = vld [vmem:[#allocation8 + $0x310] sm:$0xff]
    %v1006 = vld [vmem:[#allocation8 + $0x318] sm:$0xff]
    %v1007 = vld [vmem:[#allocation8 + $0x320] sm:$0xff]
    %v1008 = vld [vmem:[#allocation8 + $0x328] sm:$0xff]
    %v1009 = vld [vmem:[#allocation8 + $0x330] sm:$0xff]
    %v1010 = vld [vmem:[#allocation8 + $0x338] sm:$0xff]
    %v1011 = vld [vmem:[#allocation8 + $0x340] sm:$0xff]
    %v1012 = vld [vmem:[#allocation8 + $0x348] sm:$0xff]
    %v1013 = vld [vmem:[#allocation8 + $0x350] sm:$0xff]
    %v1014 = vld [vmem:[#allocation8 + $0x358] sm:$0xff]
    %v1015 = vld [vmem:[#allocation8 + $0x360] sm:$0xff]
    %v1016 = vld [vmem:[#allocation8 + $0x368] sm:$0xff]
    %v1017 = vld [vmem:[#allocation8 + $0x370] sm:$0xff]
    %v1018 = vld [vmem:[#allocation8 + $0x378] sm:$0xff]
    %v1019 = vld [vmem:[#allocation8 + $0x380] sm:$0xff]
    %v1020 = vld [vmem:[#allocation8 + $0x388] sm:$0xff]
    %v1021 = vld [vmem:[#allocation8 + $0x390] sm:$0xff]
    %v1022 = vld [vmem:[#allocation8 + $0x398] sm:$0xff]
    %v1023 = vld [vmem:[#allocation8 + $0x3a0] sm:$0xff]
    %v1024 = vld [vmem:[#allocation8 + $0x3a8] sm:$0xff]
    %v1025 = vld [vmem:[#allocation8 + $0x3b0] sm:$0xff]
    %v1026 = vld [vmem:[#allocation8 + $0x3b8] sm:$0xff]
    %v1027 = vld [vmem:[#allocation8 + $0x3c0] sm:$0xff]
    %v1028 = vld [vmem:[#allocation8 + $0x3c8] sm:$0xff]
    %v1029 = vld [vmem:[#allocation8 + $0x3d0] sm:$0xff]
    %v1030 = vld [vmem:[#allocation8 + $0x3d8] sm:$0xff]
    %v1031 = vld [vmem:[#allocation8 + $0x3e0] sm:$0xff]
    %v1032 = vld [vmem:[#allocation8 + $0x3e8] sm:$0xff]
    %v1033 = vld [vmem:[#allocation8 + $0x3f0] sm:$0xff]
    %v1034 = vld [vmem:[#allocation8 + $0x3f8] sm:$0xff]
    %v1035 = vld [vmem:[#allocation8 + $0x400] sm:$0xff]
    %v1036 = vld [vmem:[#allocation8 + $0x408] sm:$0xff]
    %v1037 = vld [vmem:[#allocation8 + $0x410] sm:$0xff]
    %v1038 = vld [vmem:[#allocation8 + $0x418] sm:$0xff]
    %v1039 = vld [vmem:[#allocation8 + $0x420] sm:$0xff]
    %v1040 = vld [vmem:[#allocation8 + $0x428] sm:$0xff]
    %v1041 = vld [vmem:[#allocation8 + $0x430] sm:$0xff]
    %v1042 = vld [vmem:[#allocation8 + $0x438] sm:$0xff]
    %v1043 = vld [vmem:[#allocation8 + $0x440] sm:$0xff]
    %v1044 = vld [vmem:[#allocation8 + $0x448] sm:$0xff]
    %v1045 = vld [vmem:[#allocation8 + $0x450] sm:$0xff]
    %v1046 = vld [vmem:[#allocation8 + $0x458] sm:$0xff]
    %v1047 = vld [vmem:[#allocation8 + $0x460] sm:$0xff]
    %v1048 = vld [vmem:[#allocation8 + $0x468] sm:$0xff]
    %v1049 = vld [vmem:[#allocation8 + $0x470] sm:$0xff]
    %v1050 = vld [vmem:[#allocation8 + $0x478] sm:$0xff]
    %v1051 = vld [vmem:[#allocation8 + $0x480] sm:$0xff]
    %v1052 = vld [vmem:[#allocation8 + $0x488] sm:$0xff]
    %v1053 = vld [vmem:[#allocation8 + $0x490] sm:$0xff]
    %v1054 = vld [vmem:[#allocation8 + $0x498] sm:$0xff]
    %v1055 = vld [vmem:[#allocation8 + $0x4a0] sm:$0xff]
    %v1056 = vld [vmem:[#allocation8 + $0x4a8] sm:$0xff]
    %v1057 = vld [vmem:[#allocation8 + $0x4b0] sm:$0xff]
    %v1058 = vld [vmem:[#allocation8 + $0x4b8] sm:$0xff]
    %v1059 = vld [vmem:[#allocation8 + $0x4c0] sm:$0xff]
    %v1060 = vld [vmem:[#allocation8 + $0x4c8] sm:$0xff]
    %v1061 = vld [vmem:[#allocation8 + $0x4d0] sm:$0xff]
    %v1062 = vld [vmem:[#allocation8 + $0x4d8] sm:$0xff]
    %v1063 = vld [vmem:[#allocation8 + $0x4e0] sm:$0xff]
    %v1064 = vld [vmem:[#allocation8 + $0x4e8] sm:$0xff]
    %v1065 = vld [vmem:[#allocation8 + $0x4f0] sm:$0xff]
    %v1066 = vld [vmem:[#allocation8 + $0x4f8] sm:$0xff]
    %v1067 = vld [vmem:[#allocation8 + $0x500] sm:$0xff]
    %v1068 = vld [vmem:[#allocation8 + $0x508] sm:$0xff]
    %v1069 = vld [vmem:[#allocation8 + $0x510] sm:$0xff]
    %v1070 = vld [vmem:[#allocation8 + $0x518] sm:$0xff]
    %v1071 = vld [vmem:[#allocation8 + $0x520] sm:$0xff]
    %v1072 = vld [vmem:[#allocation8 + $0x528] sm:$0xff]
    %v1073 = vld [vmem:[#allocation8 + $0x530] sm:$0xff]
    %v1074 = vld [vmem:[#allocation8 + $0x538] sm:$0xff]
    %v1075 = vld [vmem:[#allocation8 + $0x540] sm:$0xff]
    %v1076 = vld [vmem:[#allocation8 + $0x548] sm:$0xff]
    %v1077 = vld [vmem:[#allocation8 + $0x550] sm:$0xff]
    %v1078 = vld [vmem:[#allocation8 + $0x558] sm:$0xff]
    %v1079 = vld [vmem:[#allocation8 + $0x560] sm:$0xff]
    %v1080 = vld [vmem:[#allocation8 + $0x568] sm:$0xff]
    %v1081 = vld [vmem:[#allocation8 + $0x570] sm:$0xff]
    %v1082 = vld [vmem:[#allocation8 + $0x578] sm:$0xff]
    %v1083 = vld [vmem:[#allocation8 + $0x580] sm:$0xff]
    %v1084 = vld [vmem:[#allocation8 + $0x588] sm:$0xff]
    %v1085 = vld [vmem:[#allocation8 + $0x590] sm:$0xff]
    %v1086 = vld [vmem:[#allocation8 + $0x598] sm:$0xff]
    %v1087 = vld [vmem:[#allocation8 + $0x5a0] sm:$0xff]
    %v1088 = vld [vmem:[#allocation8 + $0x5a8] sm:$0xff]
    %v1089 = vld [vmem:[#allocation8 + $0x5b0] sm:$0xff]
    %v1090 = vld [vmem:[#allocation8 + $0x5b8] sm:$0xff]
    %v1091 = vld [vmem:[#allocation8 + $0x5c0] sm:$0xff]
    %v1092 = vld [vmem:[#allocation8 + $0x5c8] sm:$0xff]
    %v1093 = vld [vmem:[#allocation8 + $0x5d0] sm:$0xff]
    %v1094 = vld [vmem:[#allocation8 + $0x5d8] sm:$0xff]
    %v1095 = vld [vmem:[#allocation8 + $0x5e0] sm:$0xff]
    %v1096 = vld [vmem:[#allocation8 + $0x5e8] sm:$0xff]
    %v1097 = vld [vmem:[#allocation8 + $0x5f0] sm:$0xff]
    %v1098 = vld [vmem:[#allocation8 + $0x5f8] sm:$0xff]
    %v1099 = vld [vmem:[#allocation8 + $0x600] sm:$0xff]
    %v1100 = vld [vmem:[#allocation8 + $0x608] sm:$0xff]
    %v1101 = vld [vmem:[#allocation8 + $0x610] sm:$0xff]
    %v1102 = vld [vmem:[#allocation8 + $0x618] sm:$0xff]
    %v1103 = vld [vmem:[#allocation8 + $0x620] sm:$0xff]
    %v1104 = vld [vmem:[#allocation8 + $0x628] sm:$0xff]
    %v1105 = vld [vmem:[#allocation8 + $0x630] sm:$0xff]
    %v1106 = vld [vmem:[#allocation8 + $0x638] sm:$0xff]
    %v1107 = vld [vmem:[#allocation8 + $0x640] sm:$0xff]
    %v1108 = vld [vmem:[#allocation8 + $0x648] sm:$0xff]
    %v1109 = vld [vmem:[#allocation8 + $0x650] sm:$0xff]
    %v1110 = vld [vmem:[#allocation8 + $0x658] sm:$0xff]
    %v1111 = vld [vmem:[#allocation8 + $0x660] sm:$0xff]
    %v1112 = vld [vmem:[#allocation8 + $0x668] sm:$0xff]
    %v1113 = vld [vmem:[#allocation8 + $0x670] sm:$0xff]
    %v1114 = vld [vmem:[#allocation8 + $0x678] sm:$0xff]
    %v1115 = vld [vmem:[#allocation8 + $0x680] sm:$0xff]
    %v1116 = vld [vmem:[#allocation8 + $0x688] sm:$0xff]
    %v1117 = vld [vmem:[#allocation8 + $0x690] sm:$0xff]
    %v1118 = vld [vmem:[#allocation8 + $0x698] sm:$0xff]
    %v1119 = vld [vmem:[#allocation8 + $0x6a0] sm:$0xff]
    %v1120 = vld [vmem:[#allocation8 + $0x6a8] sm:$0xff]
    %v1121 = vld [vmem:[#allocation8 + $0x6b0] sm:$0xff]
    %v1122 = vld [vmem:[#allocation8 + $0x6b8] sm:$0xff]
    %v1123 = vld [vmem:[#allocation8 + $0x6c0] sm:$0xff]
    %v1124 = vld [vmem:[#allocation8 + $0x6c8] sm:$0xff]
    %v1125 = vld [vmem:[#allocation8 + $0x6d0] sm:$0xff]
    %v1126 = vld [vmem:[#allocation8 + $0x6d8] sm:$0xff]
    %v1127 = vld [vmem:[#allocation8 + $0x6e0] sm:$0xff]
    %v1128 = vld [vmem:[#allocation8 + $0x6e8] sm:$0xff]
    %v1129 = vld [vmem:[#allocation8 + $0x6f0] sm:$0xff]
    %v1130 = vld [vmem:[#allocation8 + $0x6f8] sm:$0xff]
    %v1131 = vld [vmem:[#allocation8 + $0x700] sm:$0xff]
    %v1132 = vld [vmem:[#allocation8 + $0x708] sm:$0xff]
    %v1133 = vld [vmem:[#allocation8 + $0x710] sm:$0xff]
    %v1134 = vld [vmem:[#allocation8 + $0x718] sm:$0xff]
    %v1135 = vld [vmem:[#allocation8 + $0x720] sm:$0xff]
    %v1136 = vld [vmem:[#allocation8 + $0x728] sm:$0xff]
    %v1137 = vld [vmem:[#allocation8 + $0x730] sm:$0xff]
    %v1138 = vld [vmem:[#allocation8 + $0x738] sm:$0xff]
    %v1139 = vld [vmem:[#allocation8 + $0x740] sm:$0xff]
    %v1140 = vld [vmem:[#allocation8 + $0x748] sm:$0xff]
    %v1141 = vld [vmem:[#allocation8 + $0x750] sm:$0xff]
    %v1142 = vld [vmem:[#allocation8 + $0x758] sm:$0xff]
    %v1143 = vld [vmem:[#allocation8 + $0x760] sm:$0xff]
    %v1144 = vld [vmem:[#allocation8 + $0x768] sm:$0xff]
    %v1145 = vld [vmem:[#allocation8 + $0x770] sm:$0xff]
    %v1146 = vld [vmem:[#allocation8 + $0x778] sm:$0xff]
    %v1147 = vld [vmem:[#allocation8 + $0x780] sm:$0xff]
    %v1148 = vld [vmem:[#allocation8 + $0x788] sm:$0xff]
    %v1149 = vld [vmem:[#allocation8 + $0x790] sm:$0xff]
    %v1150 = vld [vmem:[#allocation8 + $0x798] sm:$0xff]
    %v1151 = vld [vmem:[#allocation8 + $0x7a0] sm:$0xff]
    %v1152 = vld [vmem:[#allocation8 + $0x7a8] sm:$0xff]
    %v1153 = vld [vmem:[#allocation8 + $0x7b0] sm:$0xff]
    %v1154 = vld [vmem:[#allocation8 + $0x7b8] sm:$0xff]
    %v1155 = vld [vmem:[#allocation8 + $0x7c0] sm:$0xff]
    %v1156 = vld [vmem:[#allocation8 + $0x7c8] sm:$0xff]
    %v1157 = vld [vmem:[#allocation8 + $0x7d0] sm:$0xff]
    %v1158 = vld [vmem:[#allocation8 + $0x7d8] sm:$0xff]
    %v1159 = vld [vmem:[#allocation8 + $0x7e0] sm:$0xff]
    %v1160 = vld [vmem:[#allocation8 + $0x7e8] sm:$0xff]
    %v1161 = vld [vmem:[#allocation8 + $0x7f0] sm:$0xff]
    %v1162 = vld [vmem:[#allocation8 + $0x7f8] sm:$0xff]
    %v1163 = vld [vmem:[#allocation10] sm:$0xf]
    %v1165 = vlaneseq
    %v1166 = vshrl.u32 %v1165, 7
    %v1167 = vsub.s32 0, %v1166
    %v1168 = vrot.slane %v1163, %v1167
    %v1169 = vlaneseq
    %v1170 = vshrl.u32 %v1169, 7
    %v1171 = vsub.s32 1, %v1170
    %v1172 = vrot.slane %v1163, %v1171
    %v1173 = vlaneseq
    %v1174 = vshrl.u32 %v1173, 7
    %v1175 = vsub.s32 2, %v1174
    %v1176 = vrot.slane %v1163, %v1175
    %v1177 = vlaneseq
    %v1178 = vshrl.u32 %v1177, 7
    %v1179 = vsub.s32 3, %v1178
    %v1180 = vrot.slane %v1163, %v1179
    %1185 = vmatprep.subr.mxu0 %v908
    %1186 = vmatpush1.msra.mxu0 %v907
    %1187 = vmatprep.subr.mxu0 %v912
    %1188 = vmatpush1.msra.mxu0 %v911
    %1189 = vmatprep.subr.mxu0 %v916
    %1190 = vmatpush1.msra.mxu0 %v915
    %1191 = vmatprep.subr.mxu0 %v920
    %1192 = vmatpush1.msra.mxu0 %v919
    %1193 = vmatprep.subr.mxu0 %v924
    %1194 = vmatpush1.msra.mxu0 %v923
    %1195 = vmatprep.subr.mxu0 %v928
    %1196 = vmatpush1.msra.mxu0 %v927
    %1197 = vmatprep.subr.mxu0 %v932
    %1198 = vmatpush1.msra.mxu0 %v931
    %1199 = vmatprep.subr.mxu0 %v936
    %1200 = vmatpush1.msra.mxu0 %v935
    %1201 = vmatprep.subr.mxu0 %v940
    %1202 = vmatpush1.msra.mxu0 %v939
    %1203 = vmatprep.subr.mxu0 %v944
    %1204 = vmatpush1.msra.mxu0 %v943
    %1205 = vmatprep.subr.mxu0 %v948
    %1206 = vmatpush1.msra.mxu0 %v947
    %1207 = vmatprep.subr.mxu0 %v952
    %1208 = vmatpush1.msra.mxu0 %v951
    %1209 = vmatprep.subr.mxu0 %v956
    %1210 = vmatpush1.msra.mxu0 %v955
    %1211 = vmatprep.subr.mxu0 %v960
    %1212 = vmatpush1.msra.mxu0 %v959
    %1213 = vmatprep.subr.mxu0 %v964
    %1214 = vmatpush1.msra.mxu0 %v963
    %1215 = vmatprep.subr.mxu0 %v968
    %1216 = vmatpush1.msra.mxu0 %v967
    %1217 = vmatprep.subr.mxu0 %v972
    %1218 = vmatpush1.msra.mxu0 %v971
    %1219 = vmatprep.subr.mxu0 %v976
    %1220 = vmatpush1.msra.mxu0 %v975
    %1221 = vmatprep.subr.mxu0 %v980
    %1222 = vmatpush1.msra.mxu0 %v979
    %1223 = vmatprep.subr.mxu0 %v984
    %1224 = vmatpush1.msra.mxu0 %v983
    %1225 = vmatprep.subr.mxu0 %v988
    %1226 = vmatpush1.msra.mxu0 %v987
    %1227 = vmatprep.subr.mxu0 %v992
    %1228 = vmatpush1.msra.mxu0 %v991
    %1229 = vmatprep.subr.mxu0 %v996
    %1230 = vmatpush1.msra.mxu0 %v995
    %1231 = vmatprep.subr.mxu0 %v1000
    %1232 = vmatpush1.msra.mxu0 %v999
    %1233 = vmatprep.subr.mxu0 %v1004
    %1234 = vmatpush1.msra.mxu0 %v1003
    %1235 = vmatprep.subr.mxu0 %v1008
    %1236 = vmatpush1.msra.mxu0 %v1007
    %1237 = vmatprep.subr.mxu0 %v1012
    %1238 = vmatpush1.msra.mxu0 %v1011
    %1239 = vmatprep.subr.mxu0 %v1016
    %1240 = vmatpush1.msra.mxu0 %v1015
    %1241 = vmatprep.subr.mxu0 %v1020
    %1242 = vmatpush1.msra.mxu0 %v1019
    %1243 = vmatprep.subr.mxu0 %v1024
    %1244 = vmatpush1.msra.mxu0 %v1023
    %1245 = vmatprep.subr.mxu0 %v1028
    %1246 = vmatpush1.msra.mxu0 %v1027
    %1247 = vmatprep.subr.mxu0 %v1032
    %1248 = vmatpush1.msra.mxu0 %v1031
    %1249 = vmatprep.mubr.f32.mxu0 %v780
    %1250 = vmatmul.mubr.f32.gmra.mrb[0].mxu0 %v779
    %v1251 = vpop.f32.mrb[0].mxu0
    %v1252 = vadd.f32 %v1168, %v1251
    %v1253 = vpop.f32.mrb[0].mxu0
    %v1254 = vadd.f32 %v1172, %v1253
    %1255 = vmatprep.mubr.f32.mxu0 %v784
    %1256 = vmatmul.mubr.f32.gmra.mrb[0].mxu0 %v783
    %v1257 = vpop.f32.mrb[0].mxu0
    %v1258 = vadd.f32 %v1168, %v1257
    %v1259 = vpop.f32.mrb[0].mxu0
    %v1260 = vadd.f32 %v1172, %v1259
    %1261 = vmatprep.mubr.f32.mxu0 %v788
    %1262 = vmatmul.mubr.f32.gmra.mrb[0].mxu0 %v787
    %v1263 = vpop.f32.mrb[0].mxu0
    %v1264 = vadd.f32 %v1168, %v1263
    %v1265 = vpop.f32.mrb[0].mxu0
    %v1266 = vadd.f32 %v1172, %v1265
    %1267 = vmatprep.mubr.f32.mxu0 %v792
    %1268 = vmatmul.mubr.f32.gmra.mrb[0].mxu0 %v791
    %v1269 = vpop.f32.mrb[0].mxu0
    %v1270 = vadd.f32 %v1168, %v1269
    %v1271 = vpop.f32.mrb[0].mxu0
    %v1272 = vadd.f32 %v1172, %v1271
    %1273 = vmatprep.mubr.f32.mxu0 %v796
    %1274 = vmatmul.mubr.f32.gmra.mrb[0].mxu0 %v795
    %v1275 = vpop.f32.mrb[0].mxu0
    %v1276 = vadd.f32 %v1168, %v1275
    %v1277 = vpop.f32.mrb[0].mxu0
    %v1278 = vadd.f32 %v1172, %v1277
    %1279 = vmatprep.mubr.f32.mxu0 %v800
    %1280 = vmatmul.mubr.f32.gmra.mrb[0].mxu0 %v799
    %v1281 = vpop.f32.mrb[0].mxu0
    %v1282 = vadd.f32 %v1168, %v1281
    %v1283 = vpop.f32.mrb[0].mxu0
    %v1284 = vadd.f32 %v1172, %v1283
    %1285 = vmatprep.mubr.f32.mxu0 %v804
    %1286 = vmatmul.mubr.f32.gmra.mrb[0].mxu0 %v803
    %v1287 = vpop.f32.mrb[0].mxu0
    %v1288 = vadd.f32 %v1168, %v1287
    %v1289 = vpop.f32.mrb[0].mxu0
    %v1290 = vadd.f32 %v1172, %v1289
    %1291 = vmatprep.mubr.f32.mxu0 %v808
    %1292 = vmatmul.mubr.f32.gmra.mrb[0].mxu0 %v807
    %v1293 = vpop.f32.mrb[0].mxu0
    %v1294 = vadd.f32 %v1168, %v1293
    %v1295 = vpop.f32.mrb[0].mxu0
    %v1296 = vadd.f32 %v1172, %v1295
    %1297 = vmatprep.mubr.f32.mxu0 %v812
    %1298 = vmatmul.mubr.f32.gmra.mrb[0].mxu0 %v811
    %v1299 = vpop.f32.mrb[0].mxu0
    %v1300 = vadd.f32 %v1168, %v1299
    %v1301 = vpop.f32.mrb[0].mxu0
    %v1302 = vadd.f32 %v1172, %v1301
    %1303 = vmatprep.mubr.f32.mxu0 %v816
    %1304 = vmatmul.mubr.f32.gmra.mrb[0].mxu0 %v815
    %v1305 = vpop.f32.mrb[0].mxu0
    %v1306 = vadd.f32 %v1168, %v1305
    %v1307 = vpop.f32.mrb[0].mxu0
    %v1308 = vadd.f32 %v1172, %v1307
    %1309 = vmatprep.mubr.f32.mxu0 %v820
    %1310 = vmatmul.mubr.f32.gmra.mrb[0].mxu0 %v819
    %v1311 = vpop.f32.mrb[0].mxu0
    %v1312 = vadd.f32 %v1168, %v1311
    %v1313 = vpop.f32.mrb[0].mxu0
    %v1314 = vadd.f32 %v1172, %v1313
    %1315 = vmatprep.mubr.f32.mxu0 %v824
    %1316 = vmatmul.mubr.f32.gmra.mrb[0].mxu0 %v823
    %v1317 = vpop.f32.mrb[0].mxu0
    %v1318 = vadd.f32 %v1168, %v1317
    %v1319 = vpop.f32.mrb[0].mxu0
    %v1320 = vadd.f32 %v1172, %v1319
    %1321 = vmatprep.mubr.f32.mxu0 %v828
    %1322 = vmatmul.mubr.f32.gmra.mrb[0].mxu0 %v827
    %v1323 = vpop.f32.mrb[0].mxu0
    %v1324 = vadd.f32 %v1168, %v1323
    %v1325 = vpop.f32.mrb[0].mxu0
    %v1326 = vadd.f32 %v1172, %v1325
    %1327 = vmatprep.mubr.f32.mxu0 %v832
    %1328 = vmatmul.mubr.f32.gmra.mrb[0].mxu0 %v831
    %v1329 = vpop.f32.mrb[0].mxu0
    %v1330 = vadd.f32 %v1168, %v1329
    %v1331 = vpop.f32.mrb[0].mxu0
    %v1332 = vadd.f32 %v1172, %v1331
    %1333 = vmatprep.mubr.f32.mxu0 %v836
    %1334 = vmatmul.mubr.f32.gmra.mrb[0].mxu0 %v835
    %v1335 = vpop.f32.mrb[0].mxu0
    %v1336 = vadd.f32 %v1168, %v1335
    %v1337 = vpop.f32.mrb[0].mxu0
    %v1338 = vadd.f32 %v1172, %v1337
    %1339 = vmatprep.mubr.f32.mxu0 %v840
    %1340 = vmatmul.mubr.f32.gmra.mrb[0].mxu0 %v839
    %v1341 = vpop.f32.mrb[0].mxu0
    %v1342 = vadd.f32 %v1168, %v1341
    %v1343 = vpop.f32.mrb[0].mxu0
    %v1344 = vadd.f32 %v1172, %v1343
    %1345 = vmatprep.mubr.f32.mxu0 %v844
    %1346 = vmatmul.mubr.f32.gmra.mrb[0].mxu0 %v843
    %v1347 = vpop.f32.mrb[0].mxu0
    %v1348 = vadd.f32 %v1168, %v1347
    %v1349 = vpop.f32.mrb[0].mxu0
    %v1350 = vadd.f32 %v1172, %v1349
    %1351 = vmatprep.mubr.f32.mxu0 %v848
    %1352 = vmatmul.mubr.f32.gmra.mrb[0].mxu0 %v847
    %v1353 = vpop.f32.mrb[0].mxu0
    %v1354 = vadd.f32 %v1168, %v1353
    %v1355 = vpop.f32.mrb[0].mxu0
    %v1356 = vadd.f32 %v1172, %v1355
    %1357 = vmatprep.mubr.f32.mxu0 %v852
    %1358 = vmatmul.mubr.f32.gmra.mrb[0].mxu0 %v851
    %v1359 = vpop.f32.mrb[0].mxu0
    %v1360 = vadd.f32 %v1168, %v1359
    %v1361 = vpop.f32.mrb[0].mxu0
    %v1362 = vadd.f32 %v1172, %v1361
    %1363 = vmatprep.mubr.f32.mxu0 %v856
    %1364 = vmatmul.mubr.f32.gmra.mrb[0].mxu0 %v855
    %v1365 = vpop.f32.mrb[0].mxu0
    %v1366 = vadd.f32 %v1168, %v1365
    %v1367 = vpop.f32.mrb[0].mxu0
    %v1368 = vadd.f32 %v1172, %v1367
    %1369 = vmatprep.mubr.f32.mxu0 %v860
    %1370 = vmatmul.mubr.f32.gmra.mrb[0].mxu0 %v859
    %v1371 = vpop.f32.mrb[0].mxu0
    %v1372 = vadd.f32 %v1168, %v1371
    %v1373 = vpop.f32.mrb[0].mxu0
    %v1374 = vadd.f32 %v1172, %v1373
    %1375 = vmatprep.mubr.f32.mxu0 %v864
    %1376 = vmatmul.mubr.f32.gmra.mrb[0].mxu0 %v863
    %v1377 = vpop.f32.mrb[0].mxu0
    %v1378 = vadd.f32 %v1168, %v1377
    %v1379 = vpop.f32.mrb[0].mxu0
    %v1380 = vadd.f32 %v1172, %v1379
    %1381 = vmatprep.mubr.f32.mxu0 %v868
    %1382 = vmatmul.mubr.f32.gmra.mrb[0].mxu0 %v867
    %v1383 = vpop.f32.mrb[0].mxu0
    %v1384 = vadd.f32 %v1168, %v1383
    %v1385 = vpop.f32.mrb[0].mxu0
    %v1386 = vadd.f32 %v1172, %v1385
    %1387 = vmatprep.mubr.f32.mxu0 %v872
    %1388 = vmatmul.mubr.f32.gmra.mrb[0].mxu0 %v871
    %v1389 = vpop.f32.mrb[0].mxu0
    %v1390 = vadd.f32 %v1168, %v1389
    %v1391 = vpop.f32.mrb[0].mxu0
    %v1392 = vadd.f32 %v1172, %v1391
    %1393 = vmatprep.mubr.f32.mxu0 %v876
    %1394 = vmatmul.mubr.f32.gmra.mrb[0].mxu0 %v875
    %v1395 = vpop.f32.mrb[0].mxu0
    %v1396 = vadd.f32 %v1168, %v1395
    %v1397 = vpop.f32.mrb[0].mxu0
    %v1398 = vadd.f32 %v1172, %v1397
    %1399 = vmatprep.mubr.f32.mxu0 %v880
    %1400 = vmatmul.mubr.f32.gmra.mrb[0].mxu0 %v879
    %v1401 = vpop.f32.mrb[0].mxu0
    %v1402 = vadd.f32 %v1168, %v1401
    %v1403 = vpop.f32.mrb[0].mxu0
    %v1404 = vadd.f32 %v1172, %v1403
    %1405 = vmatprep.mubr.f32.mxu0 %v884
    %1406 = vmatmul.mubr.f32.gmra.mrb[0].mxu0 %v883
    %v1407 = vpop.f32.mrb[0].mxu0
    %v1408 = vadd.f32 %v1168, %v1407
    %v1409 = vpop.f32.mrb[0].mxu0
    %v1410 = vadd.f32 %v1172, %v1409
    %1411 = vmatprep.mubr.f32.mxu0 %v888
    %1412 = vmatmul.mubr.f32.gmra.mrb[0].mxu0 %v887
    %v1413 = vpop.f32.mrb[0].mxu0
    %v1414 = vadd.f32 %v1168, %v1413
    %v1415 = vpop.f32.mrb[0].mxu0
    %v1416 = vadd.f32 %v1172, %v1415
    %1417 = vmatprep.mubr.f32.mxu0 %v892
    %1418 = vmatmul.mubr.f32.gmra.mrb[0].mxu0 %v891
    %v1419 = vpop.f32.mrb[0].mxu0
    %v1420 = vadd.f32 %v1168, %v1419
    %v1421 = vpop.f32.mrb[0].mxu0
    %v1422 = vadd.f32 %v1172, %v1421
    %1423 = vmatprep.mubr.f32.mxu0 %v896
    %1424 = vmatmul.mubr.f32.gmra.mrb[0].mxu0 %v895
    %v1425 = vpop.f32.mrb[0].mxu0
    %v1426 = vadd.f32 %v1168, %v1425
    %v1427 = vpop.f32.mrb[0].mxu0
    %v1428 = vadd.f32 %v1172, %v1427
    %1429 = vmatprep.mubr.f32.mxu0 %v900
    %1430 = vmatmul.mubr.f32.gmra.mrb[0].mxu0 %v899
    %v1431 = vpop.f32.mrb[0].mxu0
    %v1432 = vadd.f32 %v1168, %v1431
    %v1433 = vpop.f32.mrb[0].mxu0
    %v1434 = vadd.f32 %v1172, %v1433
    %1435 = vmatprep.mubr.f32.mxu0 %v904
    %1436 = vmatmul.mubr.f32.gmra.mrb[0].mxu0 %v903
    %v1437 = vpop.f32.mrb[0].mxu0
    %v1438 = vadd.f32 %v1168, %v1437
    %v1439 = vpop.f32.mrb[0].mxu0
    %v1440 = vadd.f32 %v1172, %v1439
    %1441 = vdwg.mxu0
    %1442 = vmatprep.subr.mxu0 %v1036
    %1443 = vmatpush1.msra.mxu0 %v1035
    %1444 = vmatprep.subr.mxu0 %v1040
    %1445 = vmatpush1.msra.mxu0 %v1039
    %1446 = vmatprep.subr.mxu0 %v1044
    %1447 = vmatpush1.msra.mxu0 %v1043
    %1448 = vmatprep.subr.mxu0 %v1048
    %1449 = vmatpush1.msra.mxu0 %v1047
    %1450 = vmatprep.subr.mxu0 %v1052
    %1451 = vmatpush1.msra.mxu0 %v1051
    %1452 = vmatprep.subr.mxu0 %v1056
    %1453 = vmatpush1.msra.mxu0 %v1055
    %1454 = vmatprep.subr.mxu0 %v1060
    %1455 = vmatpush1.msra.mxu0 %v1059
    %1456 = vmatprep.subr.mxu0 %v1064
    %1457 = vmatpush1.msra.mxu0 %v1063
    %1458 = vmatprep.subr.mxu0 %v1068
    %1459 = vmatpush1.msra.mxu0 %v1067
    %1460 = vmatprep.subr.mxu0 %v1072
    %1461 = vmatpush1.msra.mxu0 %v1071
    %1462 = vmatprep.subr.mxu0 %v1076
    %1463 = vmatpush1.msra.mxu0 %v1075
    %1464 = vmatprep.subr.mxu0 %v1080
    %1465 = vmatpush1.msra.mxu0 %v1079
    %1466 = vmatprep.subr.mxu0 %v1084
    %1467 = vmatpush1.msra.mxu0 %v1083
    %1468 = vmatprep.subr.mxu0 %v1088
    %1469 = vmatpush1.msra.mxu0 %v1087
    %1470 = vmatprep.subr.mxu0 %v1092
    %1471 = vmatpush1.msra.mxu0 %v1091
    %1472 = vmatprep.subr.mxu0 %v1096
    %1473 = vmatpush1.msra.mxu0 %v1095
    %1474 = vmatprep.subr.mxu0 %v1100
    %1475 = vmatpush1.msra.mxu0 %v1099
    %1476 = vmatprep.subr.mxu0 %v1104
    %1477 = vmatpush1.msra.mxu0 %v1103
    %1478 = vmatprep.subr.mxu0 %v1108
    %1479 = vmatpush1.msra.mxu0 %v1107
    %1480 = vmatprep.subr.mxu0 %v1112
    %1481 = vmatpush1.msra.mxu0 %v1111
    %1482 = vmatprep.subr.mxu0 %v1116
    %1483 = vmatpush1.msra.mxu0 %v1115
    %1484 = vmatprep.subr.mxu0 %v1120
    %1485 = vmatpush1.msra.mxu0 %v1119
    %1486 = vmatprep.subr.mxu0 %v1124
    %1487 = vmatpush1.msra.mxu0 %v1123
    %1488 = vmatprep.subr.mxu0 %v1128
    %1489 = vmatpush1.msra.mxu0 %v1127
    %1490 = vmatprep.subr.mxu0 %v1132
    %1491 = vmatpush1.msra.mxu0 %v1131
    %1492 = vmatprep.subr.mxu0 %v1136
    %1493 = vmatpush1.msra.mxu0 %v1135
    %1494 = vmatprep.subr.mxu0 %v1140
    %1495 = vmatpush1.msra.mxu0 %v1139
    %1496 = vmatprep.subr.mxu0 %v1144
    %1497 = vmatpush1.msra.mxu0 %v1143
    %1498 = vmatprep.subr.mxu0 %v1148
    %1499 = vmatpush1.msra.mxu0 %v1147
    %1500 = vmatprep.subr.mxu0 %v1152
    %1501 = vmatpush1.msra.mxu0 %v1151
    %1502 = vmatprep.subr.mxu0 %v1156
    %1503 = vmatpush1.msra.mxu0 %v1155
    %1504 = vmatprep.subr.mxu0 %v1160
    %1505 = vmatpush1.msra.mxu0 %v1159
    %1506 = vmatprep.mubr.f32.mxu0 %v782
    %1507 = vmatmul.mubr.f32.gmra.mrb[0].mxu0 %v781
    %v1508 = vpop.f32.mrb[0].mxu0
    %v1509 = vadd.f32 %v1252, %v1508
    %v1510 = vpop.f32.mrb[0].mxu0
    %v1511 = vadd.f32 %v1254, %v1510
    %1512 = vmatprep.mubr.f32.mxu0 %v786
    %1513 = vmatmul.mubr.f32.gmra.mrb[0].mxu0 %v785
    %v1514 = vpop.f32.mrb[0].mxu0
    %v1515 = vadd.f32 %v1258, %v1514
    %v1516 = vpop.f32.mrb[0].mxu0
    %v1517 = vadd.f32 %v1260, %v1516
    %1518 = vmatprep.mubr.f32.mxu0 %v790
    %1519 = vmatmul.mubr.f32.gmra.mrb[0].mxu0 %v789
    %v1520 = vpop.f32.mrb[0].mxu0
    %v1521 = vadd.f32 %v1264, %v1520
    %v1522 = vpop.f32.mrb[0].mxu0
    %v1523 = vadd.f32 %v1266, %v1522
    %1524 = vmatprep.mubr.f32.mxu0 %v794
    %1525 = vmatmul.mubr.f32.gmra.mrb[0].mxu0 %v793
    %v1526 = vpop.f32.mrb[0].mxu0
    %v1527 = vadd.f32 %v1270, %v1526
    %v1528 = vpop.f32.mrb[0].mxu0
    %v1529 = vadd.f32 %v1272, %v1528
    %1530 = vmatprep.mubr.f32.mxu0 %v798
    %1531 = vmatmul.mubr.f32.gmra.mrb[0].mxu0 %v797
    %v1532 = vpop.f32.mrb[0].mxu0
    %v1533 = vadd.f32 %v1276, %v1532
    %v1534 = vpop.f32.mrb[0].mxu0
    %v1535 = vadd.f32 %v1278, %v1534
    %1536 = vmatprep.mubr.f32.mxu0 %v802
    %1537 = vmatmul.mubr.f32.gmra.mrb[0].mxu0 %v801
    %v1538 = vpop.f32.mrb[0].mxu0
    %v1539 = vadd.f32 %v1282, %v1538
    %v1540 = vpop.f32.mrb[0].mxu0
    %v1541 = vadd.f32 %v1284, %v1540
    %1542 = vmatprep.mubr.f32.mxu0 %v806
    %1543 = vmatmul.mubr.f32.gmra.mrb[0].mxu0 %v805
    %v1544 = vpop.f32.mrb[0].mxu0
    %v1545 = vadd.f32 %v1288, %v1544
    %v1546 = vpop.f32.mrb[0].mxu0
    %v1547 = vadd.f32 %v1290, %v1546
    %1548 = vmatprep.mubr.f32.mxu0 %v810
    %1549 = vmatmul.mubr.f32.gmra.mrb[0].mxu0 %v809
    %v1550 = vpop.f32.mrb[0].mxu0
    %v1551 = vadd.f32 %v1294, %v1550
    %v1552 = vpop.f32.mrb[0].mxu0
    %v1553 = vadd.f32 %v1296, %v1552
    %1554 = vmatprep.mubr.f32.mxu0 %v814
    %1555 = vmatmul.mubr.f32.gmra.mrb[0].mxu0 %v813
    %v1556 = vpop.f32.mrb[0].mxu0
    %v1557 = vadd.f32 %v1300, %v1556
    %v1558 = vpop.f32.mrb[0].mxu0
    %v1559 = vadd.f32 %v1302, %v1558
    %1560 = vmatprep.mubr.f32.mxu0 %v818
    %1561 = vmatmul.mubr.f32.gmra.mrb[0].mxu0 %v817
    %v1562 = vpop.f32.mrb[0].mxu0
    %v1563 = vadd.f32 %v1306, %v1562
    %v1564 = vpop.f32.mrb[0].mxu0
    %v1565 = vadd.f32 %v1308, %v1564
    %1566 = vmatprep.mubr.f32.mxu0 %v822
    %1567 = vmatmul.mubr.f32.gmra.mrb[0].mxu0 %v821
    %v1568 = vpop.f32.mrb[0].mxu0
    %v1569 = vadd.f32 %v1312, %v1568
    %v1570 = vpop.f32.mrb[0].mxu0
    %v1571 = vadd.f32 %v1314, %v1570
    %1572 = vmatprep.mubr.f32.mxu0 %v826
    %1573 = vmatmul.mubr.f32.gmra.mrb[0].mxu0 %v825
    %v1574 = vpop.f32.mrb[0].mxu0
    %v1575 = vadd.f32 %v1318, %v1574
    %v1576 = vpop.f32.mrb[0].mxu0
    %v1577 = vadd.f32 %v1320, %v1576
    %1578 = vmatprep.mubr.f32.mxu0 %v830
    %1579 = vmatmul.mubr.f32.gmra.mrb[0].mxu0 %v829
    %v1580 = vpop.f32.mrb[0].mxu0
    %v1581 = vadd.f32 %v1324, %v1580
    %v1582 = vpop.f32.mrb[0].mxu0
    %v1583 = vadd.f32 %v1326, %v1582
    %1584 = vmatprep.mubr.f32.mxu0 %v834
    %1585 = vmatmul.mubr.f32.gmra.mrb[0].mxu0 %v833
    %v1586 = vpop.f32.mrb[0].mxu0
    %v1587 = vadd.f32 %v1330, %v1586
    %v1588 = vpop.f32.mrb[0].mxu0
    %v1589 = vadd.f32 %v1332, %v1588
    %1590 = vmatprep.mubr.f32.mxu0 %v838
    %1591 = vmatmul.mubr.f32.gmra.mrb[0].mxu0 %v837
    %v1592 = vpop.f32.mrb[0].mxu0
    %v1593 = vadd.f32 %v1336, %v1592
    %v1594 = vpop.f32.mrb[0].mxu0
    %v1595 = vadd.f32 %v1338, %v1594
    %1596 = vmatprep.mubr.f32.mxu0 %v842
    %1597 = vmatmul.mubr.f32.gmra.mrb[0].mxu0 %v841
    %v1598 = vpop.f32.mrb[0].mxu0
    %v1599 = vadd.f32 %v1342, %v1598
    %v1600 = vpop.f32.mrb[0].mxu0
    %v1601 = vadd.f32 %v1344, %v1600
    %1602 = vmatprep.mubr.f32.mxu0 %v846
    %1603 = vmatmul.mubr.f32.gmra.mrb[0].mxu0 %v845
    %v1604 = vpop.f32.mrb[0].mxu0
    %v1605 = vadd.f32 %v1348, %v1604
    %v1606 = vpop.f32.mrb[0].mxu0
    %v1607 = vadd.f32 %v1350, %v1606
    %1608 = vmatprep.mubr.f32.mxu0 %v850
    %1609 = vmatmul.mubr.f32.gmra.mrb[0].mxu0 %v849
    %v1610 = vpop.f32.mrb[0].mxu0
    %v1611 = vadd.f32 %v1354, %v1610
    %v1612 = vpop.f32.mrb[0].mxu0
    %v1613 = vadd.f32 %v1356, %v1612
    %1614 = vmatprep.mubr.f32.mxu0 %v854
    %1615 = vmatmul.mubr.f32.gmra.mrb[0].mxu0 %v853
    %v1616 = vpop.f32.mrb[0].mxu0
    %v1617 = vadd.f32 %v1360, %v1616
    %v1618 = vpop.f32.mrb[0].mxu0
    %v1619 = vadd.f32 %v1362, %v1618
    %1620 = vmatprep.mubr.f32.mxu0 %v858
    %1621 = vmatmul.mubr.f32.gmra.mrb[0].mxu0 %v857
    %v1622 = vpop.f32.mrb[0].mxu0
    %v1623 = vadd.f32 %v1366, %v1622
    %v1624 = vpop.f32.mrb[0].mxu0
    %v1625 = vadd.f32 %v1368, %v1624
    %1626 = vmatprep.mubr.f32.mxu0 %v862
    %1627 = vmatmul.mubr.f32.gmra.mrb[0].mxu0 %v861
    %v1628 = vpop.f32.mrb[0].mxu0
    %v1629 = vadd.f32 %v1372, %v1628
    %v1630 = vpop.f32.mrb[0].mxu0
    %v1631 = vadd.f32 %v1374, %v1630
    %1632 = vmatprep.mubr.f32.mxu0 %v866
    %1633 = vmatmul.mubr.f32.gmra.mrb[0].mxu0 %v865
    %v1634 = vpop.f32.mrb[0].mxu0
    %v1635 = vadd.f32 %v1378, %v1634
    %v1636 = vpop.f32.mrb[0].mxu0
    %v1637 = vadd.f32 %v1380, %v1636
    %1638 = vmatprep.mubr.f32.mxu0 %v870
    %1639 = vmatmul.mubr.f32.gmra.mrb[0].mxu0 %v869
    %v1640 = vpop.f32.mrb[0].mxu0
    %v1641 = vadd.f32 %v1384, %v1640
    %v1642 = vpop.f32.mrb[0].mxu0
    %v1643 = vadd.f32 %v1386, %v1642
    %1644 = vmatprep.mubr.f32.mxu0 %v874
    %1645 = vmatmul.mubr.f32.gmra.mrb[0].mxu0 %v873
    %v1646 = vpop.f32.mrb[0].mxu0
    %v1647 = vadd.f32 %v1390, %v1646
    %v1648 = vpop.f32.mrb[0].mxu0
    %v1649 = vadd.f32 %v1392, %v1648
    %1650 = vmatprep.mubr.f32.mxu0 %v878
    %1651 = vmatmul.mubr.f32.gmra.mrb[0].mxu0 %v877
    %v1652 = vpop.f32.mrb[0].mxu0
    %v1653 = vadd.f32 %v1396, %v1652
    %v1654 = vpop.f32.mrb[0].mxu0
    %v1655 = vadd.f32 %v1398, %v1654
    %1656 = vmatprep.mubr.f32.mxu0 %v882
    %1657 = vmatmul.mubr.f32.gmra.mrb[0].mxu0 %v881
    %v1658 = vpop.f32.mrb[0].mxu0
    %v1659 = vadd.f32 %v1402, %v1658
    %v1660 = vpop.f32.mrb[0].mxu0
    %v1661 = vadd.f32 %v1404, %v1660
    %1662 = vmatprep.mubr.f32.mxu0 %v886
    %1663 = vmatmul.mubr.f32.gmra.mrb[0].mxu0 %v885
    %v1664 = vpop.f32.mrb[0].mxu0
    %v1665 = vadd.f32 %v1408, %v1664
    %v1666 = vpop.f32.mrb[0].mxu0
    %v1667 = vadd.f32 %v1410, %v1666
    %1668 = vmatprep.mubr.f32.mxu0 %v890
    %1669 = vmatmul.mubr.f32.gmra.mrb[0].mxu0 %v889
    %v1670 = vpop.f32.mrb[0].mxu0
    %v1671 = vadd.f32 %v1414, %v1670
    %v1672 = vpop.f32.mrb[0].mxu0
    %v1673 = vadd.f32 %v1416, %v1672
    %1674 = vmatprep.mubr.f32.mxu0 %v894
    %1675 = vmatmul.mubr.f32.gmra.mrb[0].mxu0 %v893
    %v1676 = vpop.f32.mrb[0].mxu0
    %v1677 = vadd.f32 %v1420, %v1676
    %v1678 = vpop.f32.mrb[0].mxu0
    %v1679 = vadd.f32 %v1422, %v1678
    %1680 = vmatprep.mubr.f32.mxu0 %v898
    %1681 = vmatmul.mubr.f32.gmra.mrb[0].mxu0 %v897
    %v1682 = vpop.f32.mrb[0].mxu0
    %v1683 = vadd.f32 %v1426, %v1682
    %v1684 = vpop.f32.mrb[0].mxu0
    %v1685 = vadd.f32 %v1428, %v1684
    %1686 = vmatprep.mubr.f32.mxu0 %v902
    %1687 = vmatmul.mubr.f32.gmra.mrb[0].mxu0 %v901
    %v1688 = vpop.f32.mrb[0].mxu0
    %v1689 = vadd.f32 %v1432, %v1688
    %v1690 = vpop.f32.mrb[0].mxu0
    %v1691 = vadd.f32 %v1434, %v1690
    %1692 = vmatprep.mubr.f32.mxu0 %v906
    %1693 = vmatmul.mubr.f32.gmra.mrb[0].mxu0 %v905
    %v1694 = vpop.f32.mrb[0].mxu0
    %v1695 = vadd.f32 %v1438, %v1694
    %v1696 = vpop.f32.mrb[0].mxu0
    %v1697 = vadd.f32 %v1440, %v1696
    %1698 = vdwg.mxu0
    %1699 = vmatprep.subr.mxu0 %v910
    %1700 = vmatpush1.msra.mxu0 %v909
    %1701 = vmatprep.subr.mxu0 %v914
    %1702 = vmatpush1.msra.mxu0 %v913
    %1703 = vmatprep.subr.mxu0 %v918
    %1704 = vmatpush1.msra.mxu0 %v917
    %1705 = vmatprep.subr.mxu0 %v922
    %1706 = vmatpush1.msra.mxu0 %v921
    %1707 = vmatprep.subr.mxu0 %v926
    %1708 = vmatpush1.msra.mxu0 %v925
    %1709 = vmatprep.subr.mxu0 %v930
    %1710 = vmatpush1.msra.mxu0 %v929
    %1711 = vmatprep.subr.mxu0 %v934
    %1712 = vmatpush1.msra.mxu0 %v933
    %1713 = vmatprep.subr.mxu0 %v938
    %1714 = vmatpush1.msra.mxu0 %v937
    %1715 = vmatprep.subr.mxu0 %v942
    %1716 = vmatpush1.msra.mxu0 %v941
    %1717 = vmatprep.subr.mxu0 %v946
    %1718 = vmatpush1.msra.mxu0 %v945
    %1719 = vmatprep.subr.mxu0 %v950
    %1720 = vmatpush1.msra.mxu0 %v949
    %1721 = vmatprep.subr.mxu0 %v954
    %1722 = vmatpush1.msra.mxu0 %v953
    %1723 = vmatprep.subr.mxu0 %v958
    %1724 = vmatpush1.msra.mxu0 %v957
    %1725 = vmatprep.subr.mxu0 %v962
    %1726 = vmatpush1.msra.mxu0 %v961
    %1727 = vmatprep.subr.mxu0 %v966
    %1728 = vmatpush1.msra.mxu0 %v965
    %1729 = vmatprep.subr.mxu0 %v970
    %1730 = vmatpush1.msra.mxu0 %v969
    %1731 = vmatprep.subr.mxu0 %v974
    %1732 = vmatpush1.msra.mxu0 %v973
    %1733 = vmatprep.subr.mxu0 %v978
    %1734 = vmatpush1.msra.mxu0 %v977
    %1735 = vmatprep.subr.mxu0 %v982
    %1736 = vmatpush1.msra.mxu0 %v981
    %1737 = vmatprep.subr.mxu0 %v986
    %1738 = vmatpush1.msra.mxu0 %v985
    %1739 = vmatprep.subr.mxu0 %v990
    %1740 = vmatpush1.msra.mxu0 %v989
    %1741 = vmatprep.subr.mxu0 %v994
    %1742 = vmatpush1.msra.mxu0 %v993
    %1743 = vmatprep.subr.mxu0 %v998
    %1744 = vmatpush1.msra.mxu0 %v997
    %1745 = vmatprep.subr.mxu0 %v1002
    %1746 = vmatpush1.msra.mxu0 %v1001
    %1747 = vmatprep.subr.mxu0 %v1006
    %1748 = vmatpush1.msra.mxu0 %v1005
    %1749 = vmatprep.subr.mxu0 %v1010
    %1750 = vmatpush1.msra.mxu0 %v1009
    %1751 = vmatprep.subr.mxu0 %v1014
    %1752 = vmatpush1.msra.mxu0 %v1013
    %1753 = vmatprep.subr.mxu0 %v1018
    %1754 = vmatpush1.msra.mxu0 %v1017
    %1755 = vmatprep.subr.mxu0 %v1022
    %1756 = vmatpush1.msra.mxu0 %v1021
    %1757 = vmatprep.subr.mxu0 %v1026
    %1758 = vmatpush1.msra.mxu0 %v1025
    %1759 = vmatprep.subr.mxu0 %v1030
    %1760 = vmatpush1.msra.mxu0 %v1029
    %1761 = vmatprep.subr.mxu0 %v1034
    %1762 = vmatpush1.msra.mxu0 %v1033
    %1763 = vmatprep.mubr.f32.mxu0 %v780
    %1764 = vmatmul.mubr.f32.gmra.mrb[0].mxu0 %v779
    %v1765 = vpop.f32.mrb[0].mxu0
    %v1766 = vadd.f32 %v1176, %v1765
    %v1767 = vpop.f32.mrb[0].mxu0
    %v1768 = vadd.f32 %v1180, %v1767
    %1769 = vmatprep.mubr.f32.mxu0 %v784
    %1770 = vmatmul.mubr.f32.gmra.mrb[0].mxu0 %v783
    %v1771 = vpop.f32.mrb[0].mxu0
    %v1772 = vadd.f32 %v1176, %v1771
    %v1773 = vpop.f32.mrb[0].mxu0
    %v1774 = vadd.f32 %v1180, %v1773
    %1775 = vmatprep.mubr.f32.mxu0 %v788
    %1776 = vmatmul.mubr.f32.gmra.mrb[0].mxu0 %v787
    %v1777 = vpop.f32.mrb[0].mxu0
    %v1778 = vadd.f32 %v1176, %v1777
    %v1779 = vpop.f32.mrb[0].mxu0
    %v1780 = vadd.f32 %v1180, %v1779
    %1781 = vmatprep.mubr.f32.mxu0 %v792
    %1782 = vmatmul.mubr.f32.gmra.mrb[0].mxu0 %v791
    %v1783 = vpop.f32.mrb[0].mxu0
    %v1784 = vadd.f32 %v1176, %v1783
    %v1785 = vpop.f32.mrb[0].mxu0
    %v1786 = vadd.f32 %v1180, %v1785
    %1787 = vmatprep.mubr.f32.mxu0 %v796
    %1788 = vmatmul.mubr.f32.gmra.mrb[0].mxu0 %v795
    %v1789 = vpop.f32.mrb[0].mxu0
    %v1790 = vadd.f32 %v1176, %v1789
    %v1791 = vpop.f32.mrb[0].mxu0
    %v1792 = vadd.f32 %v1180, %v1791
    %1793 = vmatprep.mubr.f32.mxu0 %v800
    %1794 = vmatmul.mubr.f32.gmra.mrb[0].mxu0 %v799
    %v1795 = vpop.f32.mrb[0].mxu0
    %v1796 = vadd.f32 %v1176, %v1795
    %v1797 = vpop.f32.mrb[0].mxu0
    %v1798 = vadd.f32 %v1180, %v1797
    %1799 = vmatprep.mubr.f32.mxu0 %v804
    %1800 = vmatmul.mubr.f32.gmra.mrb[0].mxu0 %v803
    %v1801 = vpop.f32.mrb[0].mxu0
    %v1802 = vadd.f32 %v1176, %v1801
    %v1803 = vpop.f32.mrb[0].mxu0
    %v1804 = vadd.f32 %v1180, %v1803
    %1805 = vmatprep.mubr.f32.mxu0 %v808
    %1806 = vmatmul.mubr.f32.gmra.mrb[0].mxu0 %v807
    %v1807 = vpop.f32.mrb[0].mxu0
    %v1808 = vadd.f32 %v1176, %v1807
    %v1809 = vpop.f32.mrb[0].mxu0
    %v1810 = vadd.f32 %v1180, %v1809
    %1811 = vmatprep.mubr.f32.mxu0 %v812
    %1812 = vmatmul.mubr.f32.gmra.mrb[0].mxu0 %v811
    %v1813 = vpop.f32.mrb[0].mxu0
    %v1814 = vadd.f32 %v1176, %v1813
    %v1815 = vpop.f32.mrb[0].mxu0
    %v1816 = vadd.f32 %v1180, %v1815
    %1817 = vmatprep.mubr.f32.mxu0 %v816
    %1818 = vmatmul.mubr.f32.gmra.mrb[0].mxu0 %v815
    %v1819 = vpop.f32.mrb[0].mxu0
    %v1820 = vadd.f32 %v1176, %v1819
    %v1821 = vpop.f32.mrb[0].mxu0
    %v1822 = vadd.f32 %v1180, %v1821
    %1823 = vmatprep.mubr.f32.mxu0 %v820
    %1824 = vmatmul.mubr.f32.gmra.mrb[0].mxu0 %v819
    %v1825 = vpop.f32.mrb[0].mxu0
    %v1826 = vadd.f32 %v1176, %v1825
    %v1827 = vpop.f32.mrb[0].mxu0
    %v1828 = vadd.f32 %v1180, %v1827
    %1829 = vmatprep.mubr.f32.mxu0 %v824
    %1830 = vmatmul.mubr.f32.gmra.mrb[0].mxu0 %v823
    %v1831 = vpop.f32.mrb[0].mxu0
    %v1832 = vadd.f32 %v1176, %v1831
    %v1833 = vpop.f32.mrb[0].mxu0
    %v1834 = vadd.f32 %v1180, %v1833
    %1835 = vmatprep.mubr.f32.mxu0 %v828
    %1836 = vmatmul.mubr.f32.gmra.mrb[0].mxu0 %v827
    %v1837 = vpop.f32.mrb[0].mxu0
    %v1838 = vadd.f32 %v1176, %v1837
    %v1839 = vpop.f32.mrb[0].mxu0
    %v1840 = vadd.f32 %v1180, %v1839
    %1841 = vmatprep.mubr.f32.mxu0 %v832
    %1842 = vmatmul.mubr.f32.gmra.mrb[0].mxu0 %v831
    %v1843 = vpop.f32.mrb[0].mxu0
    %v1844 = vadd.f32 %v1176, %v1843
    %v1845 = vpop.f32.mrb[0].mxu0
    %v1846 = vadd.f32 %v1180, %v1845
    %1847 = vmatprep.mubr.f32.mxu0 %v836
    %1848 = vmatmul.mubr.f32.gmra.mrb[0].mxu0 %v835
    %v1849 = vpop.f32.mrb[0].mxu0
    %v1850 = vadd.f32 %v1176, %v1849
    %v1851 = vpop.f32.mrb[0].mxu0
    %v1852 = vadd.f32 %v1180, %v1851
    %1853 = vmatprep.mubr.f32.mxu0 %v840
    %1854 = vmatmul.mubr.f32.gmra.mrb[0].mxu0 %v839
    %v1855 = vpop.f32.mrb[0].mxu0
    %v1856 = vadd.f32 %v1176, %v1855
    %v1857 = vpop.f32.mrb[0].mxu0
    %v1858 = vadd.f32 %v1180, %v1857
    %1859 = vmatprep.mubr.f32.mxu0 %v844
    %1860 = vmatmul.mubr.f32.gmra.mrb[0].mxu0 %v843
    %v1861 = vpop.f32.mrb[0].mxu0
    %v1862 = vadd.f32 %v1176, %v1861
    %v1863 = vpop.f32.mrb[0].mxu0
    %v1864 = vadd.f32 %v1180, %v1863
    %1865 = vmatprep.mubr.f32.mxu0 %v848
    %1866 = vmatmul.mubr.f32.gmra.mrb[0].mxu0 %v847
    %v1867 = vpop.f32.mrb[0].mxu0
    %v1868 = vadd.f32 %v1176, %v1867
    %v1869 = vpop.f32.mrb[0].mxu0
    %v1870 = vadd.f32 %v1180, %v1869
    %1871 = vmatprep.mubr.f32.mxu0 %v852
    %1872 = vmatmul.mubr.f32.gmra.mrb[0].mxu0 %v851
    %v1873 = vpop.f32.mrb[0].mxu0
    %v1874 = vadd.f32 %v1176, %v1873
    %v1875 = vpop.f32.mrb[0].mxu0
    %v1876 = vadd.f32 %v1180, %v1875
    %1877 = vmatprep.mubr.f32.mxu0 %v856
    %1878 = vmatmul.mubr.f32.gmra.mrb[0].mxu0 %v855
    %v1879 = vpop.f32.mrb[0].mxu0
    %v1880 = vadd.f32 %v1176, %v1879
    %v1881 = vpop.f32.mrb[0].mxu0
    %v1882 = vadd.f32 %v1180, %v1881
    %1883 = vmatprep.mubr.f32.mxu0 %v860
    %1884 = vmatmul.mubr.f32.gmra.mrb[0].mxu0 %v859
    %v1885 = vpop.f32.mrb[0].mxu0
    %v1886 = vadd.f32 %v1176, %v1885
    %v1887 = vpop.f32.mrb[0].mxu0
    %v1888 = vadd.f32 %v1180, %v1887
    %1889 = vmatprep.mubr.f32.mxu0 %v864
    %1890 = vmatmul.mubr.f32.gmra.mrb[0].mxu0 %v863
    %v1891 = vpop.f32.mrb[0].mxu0
    %v1892 = vadd.f32 %v1176, %v1891
    %v1893 = vpop.f32.mrb[0].mxu0
    %v1894 = vadd.f32 %v1180, %v1893
    %1895 = vmatprep.mubr.f32.mxu0 %v868
    %1896 = vmatmul.mubr.f32.gmra.mrb[0].mxu0 %v867
    %v1897 = vpop.f32.mrb[0].mxu0
    %v1898 = vadd.f32 %v1176, %v1897
    %v1899 = vpop.f32.mrb[0].mxu0
    %v1900 = vadd.f32 %v1180, %v1899
    %1901 = vmatprep.mubr.f32.mxu0 %v872
    %1902 = vmatmul.mubr.f32.gmra.mrb[0].mxu0 %v871
    %v1903 = vpop.f32.mrb[0].mxu0
    %v1904 = vadd.f32 %v1176, %v1903
    %v1905 = vpop.f32.mrb[0].mxu0
    %v1906 = vadd.f32 %v1180, %v1905
    %1907 = vmatprep.mubr.f32.mxu0 %v876
    %1908 = vmatmul.mubr.f32.gmra.mrb[0].mxu0 %v875
    %v1909 = vpop.f32.mrb[0].mxu0
    %v1910 = vadd.f32 %v1176, %v1909
    %v1911 = vpop.f32.mrb[0].mxu0
    %v1912 = vadd.f32 %v1180, %v1911
    %1913 = vmatprep.mubr.f32.mxu0 %v880
    %1914 = vmatmul.mubr.f32.gmra.mrb[0].mxu0 %v879
    %v1915 = vpop.f32.mrb[0].mxu0
    %v1916 = vadd.f32 %v1176, %v1915
    %v1917 = vpop.f32.mrb[0].mxu0
    %v1918 = vadd.f32 %v1180, %v1917
    %1919 = vmatprep.mubr.f32.mxu0 %v884
    %1920 = vmatmul.mubr.f32.gmra.mrb[0].mxu0 %v883
    %v1921 = vpop.f32.mrb[0].mxu0
    %v1922 = vadd.f32 %v1176, %v1921
    %v1923 = vpop.f32.mrb[0].mxu0
    %v1924 = vadd.f32 %v1180, %v1923
    %1925 = vmatprep.mubr.f32.mxu0 %v888
    %1926 = vmatmul.mubr.f32.gmra.mrb[0].mxu0 %v887
    %v1927 = vpop.f32.mrb[0].mxu0
    %v1928 = vadd.f32 %v1176, %v1927
    %v1929 = vpop.f32.mrb[0].mxu0
    %v1930 = vadd.f32 %v1180, %v1929
    %1931 = vmatprep.mubr.f32.mxu0 %v892
    %1932 = vmatmul.mubr.f32.gmra.mrb[0].mxu0 %v891
    %v1933 = vpop.f32.mrb[0].mxu0
    %v1934 = vadd.f32 %v1176, %v1933
    %v1935 = vpop.f32.mrb[0].mxu0
    %v1936 = vadd.f32 %v1180, %v1935
    %1937 = vmatprep.mubr.f32.mxu0 %v896
    %1938 = vmatmul.mubr.f32.gmra.mrb[0].mxu0 %v895
    %v1939 = vpop.f32.mrb[0].mxu0
    %v1940 = vadd.f32 %v1176, %v1939
    %v1941 = vpop.f32.mrb[0].mxu0
    %v1942 = vadd.f32 %v1180, %v1941
    %1943 = vmatprep.mubr.f32.mxu0 %v900
    %1944 = vmatmul.mubr.f32.gmra.mrb[0].mxu0 %v899
    %v1945 = vpop.f32.mrb[0].mxu0
    %v1946 = vadd.f32 %v1176, %v1945
    %v1947 = vpop.f32.mrb[0].mxu0
    %v1948 = vadd.f32 %v1180, %v1947
    %1949 = vmatprep.mubr.f32.mxu0 %v904
    %1950 = vmatmul.mubr.f32.gmra.mrb[0].mxu0 %v903
    %v1951 = vpop.f32.mrb[0].mxu0
    %v1952 = vadd.f32 %v1176, %v1951
    %v1953 = vpop.f32.mrb[0].mxu0
    %v1954 = vadd.f32 %v1180, %v1953
    %1955 = vdwg.mxu0
    %1956 = vmatprep.subr.mxu0 %v1038
    %1957 = vmatpush1.msra.mxu0 %v1037
    %1958 = vmatprep.subr.mxu0 %v1042
    %1959 = vmatpush1.msra.mxu0 %v1041
    %1960 = vmatprep.subr.mxu0 %v1046
    %1961 = vmatpush1.msra.mxu0 %v1045
    %1962 = vmatprep.subr.mxu0 %v1050
    %1963 = vmatpush1.msra.mxu0 %v1049
    %1964 = vmatprep.subr.mxu0 %v1054
    %1965 = vmatpush1.msra.mxu0 %v1053
    %1966 = vmatprep.subr.mxu0 %v1058
    %1967 = vmatpush1.msra.mxu0 %v1057
    %1968 = vmatprep.subr.mxu0 %v1062
    %1969 = vmatpush1.msra.mxu0 %v1061
    %1970 = vmatprep.subr.mxu0 %v1066
    %1971 = vmatpush1.msra.mxu0 %v1065
    %1972 = vmatprep.subr.mxu0 %v1070
    %1973 = vmatpush1.msra.mxu0 %v1069
    %1974 = vmatprep.subr.mxu0 %v1074
    %1975 = vmatpush1.msra.mxu0 %v1073
    %1976 = vmatprep.subr.mxu0 %v1078
    %1977 = vmatpush1.msra.mxu0 %v1077
    %1978 = vmatprep.subr.mxu0 %v1082
    %1979 = vmatpush1.msra.mxu0 %v1081
    %1980 = vmatprep.subr.mxu0 %v1086
    %1981 = vmatpush1.msra.mxu0 %v1085
    %1982 = vmatprep.subr.mxu0 %v1090
    %1983 = vmatpush1.msra.mxu0 %v1089
    %1984 = vmatprep.subr.mxu0 %v1094
    %1985 = vmatpush1.msra.mxu0 %v1093
    %1986 = vmatprep.subr.mxu0 %v1098
    %1987 = vmatpush1.msra.mxu0 %v1097
    %1988 = vmatprep.subr.mxu0 %v1102
    %1989 = vmatpush1.msra.mxu0 %v1101
    %1990 = vmatprep.subr.mxu0 %v1106
    %1991 = vmatpush1.msra.mxu0 %v1105
    %1992 = vmatprep.subr.mxu0 %v1110
    %1993 = vmatpush1.msra.mxu0 %v1109
    %1994 = vmatprep.subr.mxu0 %v1114
    %1995 = vmatpush1.msra.mxu0 %v1113
    %1996 = vmatprep.subr.mxu0 %v1118
    %1997 = vmatpush1.msra.mxu0 %v1117
    %1998 = vmatprep.subr.mxu0 %v1122
    %1999 = vmatpush1.msra.mxu0 %v1121
    %2000 = vmatprep.subr.mxu0 %v1126
    %2001 = vmatpush1.msra.mxu0 %v1125
    %2002 = vmatprep.subr.mxu0 %v1130
    %2003 = vmatpush1.msra.mxu0 %v1129
    %2004 = vmatprep.subr.mxu0 %v1134
    %2005 = vmatpush1.msra.mxu0 %v1133
    %2006 = vmatprep.subr.mxu0 %v1138
    %2007 = vmatpush1.msra.mxu0 %v1137
    %2008 = vmatprep.subr.mxu0 %v1142
    %2009 = vmatpush1.msra.mxu0 %v1141
    %2010 = vmatprep.subr.mxu0 %v1146
    %2011 = vmatpush1.msra.mxu0 %v1145
    %2012 = vmatprep.subr.mxu0 %v1150
    %2013 = vmatpush1.msra.mxu0 %v1149
    %2014 = vmatprep.subr.mxu0 %v1154
    %2015 = vmatpush1.msra.mxu0 %v1153
    %2016 = vmatprep.subr.mxu0 %v1158
    %2017 = vmatpush1.msra.mxu0 %v1157
    %2018 = vmatprep.subr.mxu0 %v1162
    %2019 = vmatpush1.msra.mxu0 %v1161
    %2020 = vmatprep.mubr.f32.mxu0 %v782
    %2021 = vmatmul.mubr.f32.gmra.mrb[0].mxu0 %v781
    %v2022 = vpop.f32.mrb[0].mxu0
    %v2023 = vadd.f32 %v1766, %v2022
    %v2024 = vpop.f32.mrb[0].mxu0
    %v2025 = vadd.f32 %v1768, %v2024
    %2026 = vmatprep.mubr.f32.mxu0 %v786
    %2027 = vmatmul.mubr.f32.gmra.mrb[0].mxu0 %v785
    %v2028 = vpop.f32.mrb[0].mxu0
    %v2029 = vadd.f32 %v1772, %v2028
    %v2030 = vpop.f32.mrb[0].mxu0
    %v2031 = vadd.f32 %v1774, %v2030
    %2032 = vmatprep.mubr.f32.mxu0 %v790
    %2033 = vmatmul.mubr.f32.gmra.mrb[0].mxu0 %v789
    %v2034 = vpop.f32.mrb[0].mxu0
    %v2035 = vadd.f32 %v1778, %v2034
    %v2036 = vpop.f32.mrb[0].mxu0
    %v2037 = vadd.f32 %v1780, %v2036
    %2038 = vmatprep.mubr.f32.mxu0 %v794
    %2039 = vmatmul.mubr.f32.gmra.mrb[0].mxu0 %v793
    %v2040 = vpop.f32.mrb[0].mxu0
    %v2041 = vadd.f32 %v1784, %v2040
    %v2042 = vpop.f32.mrb[0].mxu0
    %v2043 = vadd.f32 %v1786, %v2042
    %2044 = vmatprep.mubr.f32.mxu0 %v798
    %2045 = vmatmul.mubr.f32.gmra.mrb[0].mxu0 %v797
    %v2046 = vpop.f32.mrb[0].mxu0
    %v2047 = vadd.f32 %v1790, %v2046
    %v2048 = vpop.f32.mrb[0].mxu0
    %v2049 = vadd.f32 %v1792, %v2048
    %2050 = vmatprep.mubr.f32.mxu0 %v802
    %2051 = vmatmul.mubr.f32.gmra.mrb[0].mxu0 %v801
    %v2052 = vpop.f32.mrb[0].mxu0
    %v2053 = vadd.f32 %v1796, %v2052
    %v2054 = vpop.f32.mrb[0].mxu0
    %v2055 = vadd.f32 %v1798, %v2054
    %2056 = vmatprep.mubr.f32.mxu0 %v806
    %2057 = vmatmul.mubr.f32.gmra.mrb[0].mxu0 %v805
    %v2058 = vpop.f32.mrb[0].mxu0
    %v2059 = vadd.f32 %v1802, %v2058
    %v2060 = vpop.f32.mrb[0].mxu0
    %v2061 = vadd.f32 %v1804, %v2060
    %2062 = vmatprep.mubr.f32.mxu0 %v810
    %2063 = vmatmul.mubr.f32.gmra.mrb[0].mxu0 %v809
    %v2064 = vpop.f32.mrb[0].mxu0
    %v2065 = vadd.f32 %v1808, %v2064
    %v2066 = vpop.f32.mrb[0].mxu0
    %v2067 = vadd.f32 %v1810, %v2066
    %2068 = vmatprep.mubr.f32.mxu0 %v814
    %2069 = vmatmul.mubr.f32.gmra.mrb[0].mxu0 %v813
    %v2070 = vpop.f32.mrb[0].mxu0
    %v2071 = vadd.f32 %v1814, %v2070
    %v2072 = vpop.f32.mrb[0].mxu0
    %v2073 = vadd.f32 %v1816, %v2072
    %2074 = vmatprep.mubr.f32.mxu0 %v818
    %2075 = vmatmul.mubr.f32.gmra.mrb[0].mxu0 %v817
    %v2076 = vpop.f32.mrb[0].mxu0
    %v2077 = vadd.f32 %v1820, %v2076
    %v2078 = vpop.f32.mrb[0].mxu0
    %v2079 = vadd.f32 %v1822, %v2078
    %2080 = vmatprep.mubr.f32.mxu0 %v822
    %2081 = vmatmul.mubr.f32.gmra.mrb[0].mxu0 %v821
    %v2082 = vpop.f32.mrb[0].mxu0
    %v2083 = vadd.f32 %v1826, %v2082
    %v2084 = vpop.f32.mrb[0].mxu0
    %v2085 = vadd.f32 %v1828, %v2084
    %2086 = vmatprep.mubr.f32.mxu0 %v826
    %2087 = vmatmul.mubr.f32.gmra.mrb[0].mxu0 %v825
    %v2088 = vpop.f32.mrb[0].mxu0
    %v2089 = vadd.f32 %v1832, %v2088
    %v2090 = vpop.f32.mrb[0].mxu0
    %v2091 = vadd.f32 %v1834, %v2090
    %2092 = vmatprep.mubr.f32.mxu0 %v830
    %2093 = vmatmul.mubr.f32.gmra.mrb[0].mxu0 %v829
    %v2094 = vpop.f32.mrb[0].mxu0
    %v2095 = vadd.f32 %v1838, %v2094
    %v2096 = vpop.f32.mrb[0].mxu0
    %v2097 = vadd.f32 %v1840, %v2096
    %2098 = vmatprep.mubr.f32.mxu0 %v834
    %2099 = vmatmul.mubr.f32.gmra.mrb[0].mxu0 %v833
    %v2100 = vpop.f32.mrb[0].mxu0
    %v2101 = vadd.f32 %v1844, %v2100
    %v2102 = vpop.f32.mrb[0].mxu0
    %v2103 = vadd.f32 %v1846, %v2102
    %2104 = vmatprep.mubr.f32.mxu0 %v838
    %2105 = vmatmul.mubr.f32.gmra.mrb[0].mxu0 %v837
    %v2106 = vpop.f32.mrb[0].mxu0
    %v2107 = vadd.f32 %v1850, %v2106
    %v2108 = vpop.f32.mrb[0].mxu0
    %v2109 = vadd.f32 %v1852, %v2108
    %2110 = vmatprep.mubr.f32.mxu0 %v842
    %2111 = vmatmul.mubr.f32.gmra.mrb[0].mxu0 %v841
    %v2112 = vpop.f32.mrb[0].mxu0
    %v2113 = vadd.f32 %v1856, %v2112
    %v2114 = vpop.f32.mrb[0].mxu0
    %v2115 = vadd.f32 %v1858, %v2114
    %2116 = vmatprep.mubr.f32.mxu0 %v846
    %2117 = vmatmul.mubr.f32.gmra.mrb[0].mxu0 %v845
    %v2118 = vpop.f32.mrb[0].mxu0
    %v2119 = vadd.f32 %v1862, %v2118
    %v2120 = vpop.f32.mrb[0].mxu0
    %v2121 = vadd.f32 %v1864, %v2120
    %2122 = vmatprep.mubr.f32.mxu0 %v850
    %2123 = vmatmul.mubr.f32.gmra.mrb[0].mxu0 %v849
    %v2124 = vpop.f32.mrb[0].mxu0
    %v2125 = vadd.f32 %v1868, %v2124
    %v2126 = vpop.f32.mrb[0].mxu0
    %v2127 = vadd.f32 %v1870, %v2126
    %2128 = vmatprep.mubr.f32.mxu0 %v854
    %2129 = vmatmul.mubr.f32.gmra.mrb[0].mxu0 %v853
    %v2130 = vpop.f32.mrb[0].mxu0
    %v2131 = vadd.f32 %v1874, %v2130
    %v2132 = vpop.f32.mrb[0].mxu0
    %v2133 = vadd.f32 %v1876, %v2132
    %2134 = vmatprep.mubr.f32.mxu0 %v858
    %2135 = vmatmul.mubr.f32.gmra.mrb[0].mxu0 %v857
    %v2136 = vpop.f32.mrb[0].mxu0
    %v2137 = vadd.f32 %v1880, %v2136
    %v2138 = vpop.f32.mrb[0].mxu0
    %v2139 = vadd.f32 %v1882, %v2138
    %2140 = vmatprep.mubr.f32.mxu0 %v862
    %2141 = vmatmul.mubr.f32.gmra.mrb[0].mxu0 %v861
    %v2142 = vpop.f32.mrb[0].mxu0
    %v2143 = vadd.f32 %v1886, %v2142
    %v2144 = vpop.f32.mrb[0].mxu0
    %v2145 = vadd.f32 %v1888, %v2144
    %2146 = vmatprep.mubr.f32.mxu0 %v866
    %2147 = vmatmul.mubr.f32.gmra.mrb[0].mxu0 %v865
    %v2148 = vpop.f32.mrb[0].mxu0
    %v2149 = vadd.f32 %v1892, %v2148
    %v2150 = vpop.f32.mrb[0].mxu0
    %v2151 = vadd.f32 %v1894, %v2150
    %2152 = vmatprep.mubr.f32.mxu0 %v870
    %2153 = vmatmul.mubr.f32.gmra.mrb[0].mxu0 %v869
    %v2154 = vpop.f32.mrb[0].mxu0
    %v2155 = vadd.f32 %v1898, %v2154
    %v2156 = vpop.f32.mrb[0].mxu0
    %v2157 = vadd.f32 %v1900, %v2156
    %2158 = vmatprep.mubr.f32.mxu0 %v874
    %2159 = vmatmul.mubr.f32.gmra.mrb[0].mxu0 %v873
    %v2160 = vpop.f32.mrb[0].mxu0
    %v2161 = vadd.f32 %v1904, %v2160
    %v2162 = vpop.f32.mrb[0].mxu0
    %v2163 = vadd.f32 %v1906, %v2162
    %2164 = vmatprep.mubr.f32.mxu0 %v878
    %2165 = vmatmul.mubr.f32.gmra.mrb[0].mxu0 %v877
    %v2166 = vpop.f32.mrb[0].mxu0
    %v2167 = vadd.f32 %v1910, %v2166
    %v2168 = vpop.f32.mrb[0].mxu0
    %v2169 = vadd.f32 %v1912, %v2168
    %2170 = vmatprep.mubr.f32.mxu0 %v882
    %2171 = vmatmul.mubr.f32.gmra.mrb[0].mxu0 %v881
    %v2172 = vpop.f32.mrb[0].mxu0
    %v2173 = vadd.f32 %v1916, %v2172
    %v2174 = vpop.f32.mrb[0].mxu0
    %v2175 = vadd.f32 %v1918, %v2174
    %2176 = vmatprep.mubr.f32.mxu0 %v886
    %2177 = vmatmul.mubr.f32.gmra.mrb[0].mxu0 %v885
    %v2178 = vpop.f32.mrb[0].mxu0
    %v2179 = vadd.f32 %v1922, %v2178
    %v2180 = vpop.f32.mrb[0].mxu0
    %v2181 = vadd.f32 %v1924, %v2180
    %2182 = vmatprep.mubr.f32.mxu0 %v890
    %2183 = vmatmul.mubr.f32.gmra.mrb[0].mxu0 %v889
    %v2184 = vpop.f32.mrb[0].mxu0
    %v2185 = vadd.f32 %v1928, %v2184
    %v2186 = vpop.f32.mrb[0].mxu0
    %v2187 = vadd.f32 %v1930, %v2186
    %2188 = vmatprep.mubr.f32.mxu0 %v894
    %2189 = vmatmul.mubr.f32.gmra.mrb[0].mxu0 %v893
    %v2190 = vpop.f32.mrb[0].mxu0
    %v2191 = vadd.f32 %v1934, %v2190
    %v2192 = vpop.f32.mrb[0].mxu0
    %v2193 = vadd.f32 %v1936, %v2192
    %2194 = vmatprep.mubr.f32.mxu0 %v898
    %2195 = vmatmul.mubr.f32.gmra.mrb[0].mxu0 %v897
    %v2196 = vpop.f32.mrb[0].mxu0
    %v2197 = vadd.f32 %v1940, %v2196
    %v2198 = vpop.f32.mrb[0].mxu0
    %v2199 = vadd.f32 %v1942, %v2198
    %2200 = vmatprep.mubr.f32.mxu0 %v902
    %2201 = vmatmul.mubr.f32.gmra.mrb[0].mxu0 %v901
    %v2202 = vpop.f32.mrb[0].mxu0
    %v2203 = vadd.f32 %v1946, %v2202
    %v2204 = vpop.f32.mrb[0].mxu0
    %v2205 = vadd.f32 %v1948, %v2204
    %2206 = vmatprep.mubr.f32.mxu0 %v906
    %2207 = vmatmul.mubr.f32.gmra.mrb[0].mxu0 %v905
    %v2208 = vpop.f32.mrb[0].mxu0
    %v2209 = vadd.f32 %v1952, %v2208
    %v2210 = vpop.f32.mrb[0].mxu0
    %v2211 = vadd.f32 %v1954, %v2210
    %2212 = vdwg.mxu0
    %v2213 = vmax.f32 %v1509, 0.0
    %v2214 = vmax.f32 %v1511, 0.0
    %v2215 = vmax.f32 %v2023, 0.0
    %v2216 = vmax.f32 %v2025, 0.0
    %v2217 = vmax.f32 %v1515, 0.0
    %v2218 = vmax.f32 %v1517, 0.0
    %v2219 = vmax.f32 %v2029, 0.0
    %v2220 = vmax.f32 %v2031, 0.0
    %v2221 = vmax.f32 %v1521, 0.0
    %v2222 = vmax.f32 %v1523, 0.0
    %v2223 = vmax.f32 %v2035, 0.0
    %v2224 = vmax.f32 %v2037, 0.0
    %v2225 = vmax.f32 %v1527, 0.0
    %v2226 = vmax.f32 %v1529, 0.0
    %v2227 = vmax.f32 %v2041, 0.0
    %v2228 = vmax.f32 %v2043, 0.0
    %v2229 = vmax.f32 %v1533, 0.0
    %v2230 = vmax.f32 %v1535, 0.0
    %v2231 = vmax.f32 %v2047, 0.0
    %v2232 = vmax.f32 %v2049, 0.0
    %v2233 = vmax.f32 %v1539, 0.0
    %v2234 = vmax.f32 %v1541, 0.0
    %v2235 = vmax.f32 %v2053, 0.0
    %v2236 = vmax.f32 %v2055, 0.0
    %v2237 = vmax.f32 %v1545, 0.0
    %v2238 = vmax.f32 %v1547, 0.0
    %v2239 = vmax.f32 %v2059, 0.0
    %v2240 = vmax.f32 %v2061, 0.0
    %v2241 = vmax.f32 %v1551, 0.0
    %v2242 = vmax.f32 %v1553, 0.0
    %v2243 = vmax.f32 %v2065, 0.0
    %v2244 = vmax.f32 %v2067, 0.0
    %v2245 = vmax.f32 %v1557, 0.0
    %v2246 = vmax.f32 %v1559, 0.0
    %v2247 = vmax.f32 %v2071, 0.0
    %v2248 = vmax.f32 %v2073, 0.0
    %v2249 = vmax.f32 %v1563, 0.0
    %v2250 = vmax.f32 %v1565, 0.0
    %v2251 = vmax.f32 %v2077, 0.0
    %v2252 = vmax.f32 %v2079, 0.0
    %v2253 = vmax.f32 %v1569, 0.0
    %v2254 = vmax.f32 %v1571, 0.0
    %v2255 = vmax.f32 %v2083, 0.0
    %v2256 = vmax.f32 %v2085, 0.0
    %v2257 = vmax.f32 %v1575, 0.0
    %v2258 = vmax.f32 %v1577, 0.0
    %v2259 = vmax.f32 %v2089, 0.0
    %v2260 = vmax.f32 %v2091, 0.0
    %v2261 = vmax.f32 %v1581, 0.0
    %v2262 = vmax.f32 %v1583, 0.0
    %v2263 = vmax.f32 %v2095, 0.0
    %v2264 = vmax.f32 %v2097, 0.0
    %v2265 = vmax.f32 %v1587, 0.0
    %v2266 = vmax.f32 %v1589, 0.0
    %v2267 = vmax.f32 %v2101, 0.0
    %v2268 = vmax.f32 %v2103, 0.0
    %v2269 = vmax.f32 %v1593, 0.0
    %v2270 = vmax.f32 %v1595, 0.0
    %v2271 = vmax.f32 %v2107, 0.0
    %v2272 = vmax.f32 %v2109, 0.0
    %v2273 = vmax.f32 %v1599, 0.0
    %v2274 = vmax.f32 %v1601, 0.0
    %v2275 = vmax.f32 %v2113, 0.0
    %v2276 = vmax.f32 %v2115, 0.0
    %v2277 = vmax.f32 %v1605, 0.0
    %v2278 = vmax.f32 %v1607, 0.0
    %v2279 = vmax.f32 %v2119, 0.0
    %v2280 = vmax.f32 %v2121, 0.0
    %v2281 = vmax.f32 %v1611, 0.0
    %v2282 = vmax.f32 %v1613, 0.0
    %v2283 = vmax.f32 %v2125, 0.0
    %v2284 = vmax.f32 %v2127, 0.0
    %v2285 = vmax.f32 %v1617, 0.0
    %v2286 = vmax.f32 %v1619, 0.0
    %v2287 = vmax.f32 %v2131, 0.0
    %v2288 = vmax.f32 %v2133, 0.0
    %v2289 = vmax.f32 %v1623, 0.0
    %v2290 = vmax.f32 %v1625, 0.0
    %v2291 = vmax.f32 %v2137, 0.0
    %v2292 = vmax.f32 %v2139, 0.0
    %v2293 = vmax.f32 %v1629, 0.0
    %v2294 = vmax.f32 %v1631, 0.0
    %v2295 = vmax.f32 %v2143, 0.0
    %v2296 = vmax.f32 %v2145, 0.0
    %v2297 = vmax.f32 %v1635, 0.0
    %v2298 = vmax.f32 %v1637, 0.0
    %v2299 = vmax.f32 %v2149, 0.0
    %v2300 = vmax.f32 %v2151, 0.0
    %v2301 = vmax.f32 %v1641, 0.0
    %v2302 = vmax.f32 %v1643, 0.0
    %v2303 = vmax.f32 %v2155, 0.0
    %v2304 = vmax.f32 %v2157, 0.0
    %v2305 = vmax.f32 %v1647, 0.0
    %v2306 = vmax.f32 %v1649, 0.0
    %v2307 = vmax.f32 %v2161, 0.0
    %v2308 = vmax.f32 %v2163, 0.0
    %v2309 = vmax.f32 %v1653, 0.0
    %v2310 = vmax.f32 %v1655, 0.0
    %v2311 = vmax.f32 %v2167, 0.0
    %v2312 = vmax.f32 %v2169, 0.0
    %v2313 = vmax.f32 %v1659, 0.0
    %v2314 = vmax.f32 %v1661, 0.0
    %v2315 = vmax.f32 %v2173, 0.0
    %v2316 = vmax.f32 %v2175, 0.0
    %v2317 = vmax.f32 %v1665, 0.0
    %v2318 = vmax.f32 %v1667, 0.0
    %v2319 = vmax.f32 %v2179, 0.0
    %v2320 = vmax.f32 %v2181, 0.0
    %v2321 = vmax.f32 %v1671, 0.0
    %v2322 = vmax.f32 %v1673, 0.0
    %v2323 = vmax.f32 %v2185, 0.0
    %v2324 = vmax.f32 %v2187, 0.0
    %v2325 = vmax.f32 %v1677, 0.0
    %v2326 = vmax.f32 %v1679, 0.0
    %v2327 = vmax.f32 %v2191, 0.0
    %v2328 = vmax.f32 %v2193, 0.0
    %v2329 = vmax.f32 %v1683, 0.0
    %v2330 = vmax.f32 %v1685, 0.0
    %v2331 = vmax.f32 %v2197, 0.0
    %v2332 = vmax.f32 %v2199, 0.0
    %v2333 = vmax.f32 %v1689, 0.0
    %v2334 = vmax.f32 %v1691, 0.0
    %v2335 = vmax.f32 %v2203, 0.0
    %v2336 = vmax.f32 %v2205, 0.0
    %v2337 = vmax.f32 %v1695, 0.0
    %v2338 = vmax.f32 %v1697, 0.0
    %v2339 = vmax.f32 %v2209, 0.0
    %v2340 = vmax.f32 %v2211, 0.0
    %v2341 = vld [vmem:[#allocation11] sm:$0xff]
    %v2342 = vld [vmem:[#allocation11 + $0x8] sm:$0xff]
    %v2343 = vld [vmem:[#allocation11 + $0x10] sm:$0xff]
    %v2344 = vld [vmem:[#allocation11 + $0x18] sm:$0xff]
    %v2345 = vld [vmem:[#allocation11 + $0x20] sm:$0xff]
    %v2346 = vld [vmem:[#allocation11 + $0x28] sm:$0xff]
    %v2347 = vld [vmem:[#allocation11 + $0x30] sm:$0xff]
    %v2348 = vld [vmem:[#allocation11 + $0x38] sm:$0xff]
    %v2349 = vld [vmem:[#allocation11 + $0x40] sm:$0xff]
    %v2350 = vld [vmem:[#allocation11 + $0x48] sm:$0xff]
    %v2351 = vld [vmem:[#allocation11 + $0x50] sm:$0xff]
    %v2352 = vld [vmem:[#allocation11 + $0x58] sm:$0xff]
    %v2353 = vld [vmem:[#allocation11 + $0x60] sm:$0xff]
    %v2354 = vld [vmem:[#allocation11 + $0x68] sm:$0xff]
    %v2355 = vld [vmem:[#allocation11 + $0x70] sm:$0xff]
    %v2356 = vld [vmem:[#allocation11 + $0x78] sm:$0xff]
    %v2357 = vld [vmem:[#allocation11 + $0x80] sm:$0xff]
    %v2358 = vld [vmem:[#allocation11 + $0x88] sm:$0xff]
    %v2359 = vld [vmem:[#allocation11 + $0x90] sm:$0xff]
    %v2360 = vld [vmem:[#allocation11 + $0x98] sm:$0xff]
    %v2361 = vld [vmem:[#allocation11 + $0xa0] sm:$0xff]
    %v2362 = vld [vmem:[#allocation11 + $0xa8] sm:$0xff]
    %v2363 = vld [vmem:[#allocation11 + $0xb0] sm:$0xff]
    %v2364 = vld [vmem:[#allocation11 + $0xb8] sm:$0xff]
    %v2365 = vld [vmem:[#allocation11 + $0xc0] sm:$0xff]
    %v2366 = vld [vmem:[#allocation11 + $0xc8] sm:$0xff]
    %v2367 = vld [vmem:[#allocation11 + $0xd0] sm:$0xff]
    %v2368 = vld [vmem:[#allocation11 + $0xd8] sm:$0xff]
    %v2369 = vld [vmem:[#allocation11 + $0xe0] sm:$0xff]
    %v2370 = vld [vmem:[#allocation11 + $0xe8] sm:$0xff]
    %v2371 = vld [vmem:[#allocation11 + $0xf0] sm:$0xff]
    %v2372 = vld [vmem:[#allocation11 + $0xf8] sm:$0xff]
    %v2373 = vld [vmem:[#allocation11 + $0x100] sm:$0xff]
    %v2374 = vld [vmem:[#allocation11 + $0x108] sm:$0xff]
    %v2375 = vld [vmem:[#allocation11 + $0x110] sm:$0xff]
    %v2376 = vld [vmem:[#allocation11 + $0x118] sm:$0xff]
    %v2377 = vld [vmem:[#allocation11 + $0x120] sm:$0xff]
    %v2378 = vld [vmem:[#allocation11 + $0x128] sm:$0xff]
    %v2379 = vld [vmem:[#allocation11 + $0x130] sm:$0xff]
    %v2380 = vld [vmem:[#allocation11 + $0x138] sm:$0xff]
    %v2381 = vld [vmem:[#allocation11 + $0x140] sm:$0xff]
    %v2382 = vld [vmem:[#allocation11 + $0x148] sm:$0xff]
    %v2383 = vld [vmem:[#allocation11 + $0x150] sm:$0xff]
    %v2384 = vld [vmem:[#allocation11 + $0x158] sm:$0xff]
    %v2385 = vld [vmem:[#allocation11 + $0x160] sm:$0xff]
    %v2386 = vld [vmem:[#allocation11 + $0x168] sm:$0xff]
    %v2387 = vld [vmem:[#allocation11 + $0x170] sm:$0xff]
    %v2388 = vld [vmem:[#allocation11 + $0x178] sm:$0xff]
    %v2389 = vld [vmem:[#allocation11 + $0x180] sm:$0xff]
    %v2390 = vld [vmem:[#allocation11 + $0x188] sm:$0xff]
    %v2391 = vld [vmem:[#allocation11 + $0x190] sm:$0xff]
    %v2392 = vld [vmem:[#allocation11 + $0x198] sm:$0xff]
    %v2393 = vld [vmem:[#allocation11 + $0x1a0] sm:$0xff]
    %v2394 = vld [vmem:[#allocation11 + $0x1a8] sm:$0xff]
    %v2395 = vld [vmem:[#allocation11 + $0x1b0] sm:$0xff]
    %v2396 = vld [vmem:[#allocation11 + $0x1b8] sm:$0xff]
    %v2397 = vld [vmem:[#allocation11 + $0x1c0] sm:$0xff]
    %v2398 = vld [vmem:[#allocation11 + $0x1c8] sm:$0xff]
    %v2399 = vld [vmem:[#allocation11 + $0x1d0] sm:$0xff]
    %v2400 = vld [vmem:[#allocation11 + $0x1d8] sm:$0xff]
    %v2401 = vld [vmem:[#allocation11 + $0x1e0] sm:$0xff]
    %v2402 = vld [vmem:[#allocation11 + $0x1e8] sm:$0xff]
    %v2403 = vld [vmem:[#allocation11 + $0x1f0] sm:$0xff]
    %v2404 = vld [vmem:[#allocation11 + $0x1f8] sm:$0xff]
    %v2405 = vld [vmem:[#allocation11 + $0x200] sm:$0xff]
    %v2406 = vld [vmem:[#allocation11 + $0x208] sm:$0xff]
    %v2407 = vld [vmem:[#allocation11 + $0x210] sm:$0xff]
    %v2408 = vld [vmem:[#allocation11 + $0x218] sm:$0xff]
    %v2409 = vld [vmem:[#allocation11 + $0x220] sm:$0xff]
    %v2410 = vld [vmem:[#allocation11 + $0x228] sm:$0xff]
    %v2411 = vld [vmem:[#allocation11 + $0x230] sm:$0xff]
    %v2412 = vld [vmem:[#allocation11 + $0x238] sm:$0xff]
    %v2413 = vld [vmem:[#allocation11 + $0x240] sm:$0xff]
    %v2414 = vld [vmem:[#allocation11 + $0x248] sm:$0xff]
    %v2415 = vld [vmem:[#allocation11 + $0x250] sm:$0xff]
    %v2416 = vld [vmem:[#allocation11 + $0x258] sm:$0xff]
    %v2417 = vld [vmem:[#allocation11 + $0x260] sm:$0xff]
    %v2418 = vld [vmem:[#allocation11 + $0x268] sm:$0xff]
    %v2419 = vld [vmem:[#allocation11 + $0x270] sm:$0xff]
    %v2420 = vld [vmem:[#allocation11 + $0x278] sm:$0xff]
    %v2421 = vld [vmem:[#allocation11 + $0x280] sm:$0xff]
    %v2422 = vld [vmem:[#allocation11 + $0x288] sm:$0xff]
    %v2423 = vld [vmem:[#allocation11 + $0x290] sm:$0xff]
    %v2424 = vld [vmem:[#allocation11 + $0x298] sm:$0xff]
    %v2425 = vld [vmem:[#allocation11 + $0x2a0] sm:$0xff]
    %v2426 = vld [vmem:[#allocation11 + $0x2a8] sm:$0xff]
    %v2427 = vld [vmem:[#allocation11 + $0x2b0] sm:$0xff]
    %v2428 = vld [vmem:[#allocation11 + $0x2b8] sm:$0xff]
    %v2429 = vld [vmem:[#allocation11 + $0x2c0] sm:$0xff]
    %v2430 = vld [vmem:[#allocation11 + $0x2c8] sm:$0xff]
    %v2431 = vld [vmem:[#allocation11 + $0x2d0] sm:$0xff]
    %v2432 = vld [vmem:[#allocation11 + $0x2d8] sm:$0xff]
    %v2433 = vld [vmem:[#allocation11 + $0x2e0] sm:$0xff]
    %v2434 = vld [vmem:[#allocation11 + $0x2e8] sm:$0xff]
    %v2435 = vld [vmem:[#allocation11 + $0x2f0] sm:$0xff]
    %v2436 = vld [vmem:[#allocation11 + $0x2f8] sm:$0xff]
    %v2437 = vld [vmem:[#allocation11 + $0x300] sm:$0xff]
    %v2438 = vld [vmem:[#allocation11 + $0x308] sm:$0xff]
    %v2439 = vld [vmem:[#allocation11 + $0x310] sm:$0xff]
    %v2440 = vld [vmem:[#allocation11 + $0x318] sm:$0xff]
    %v2441 = vld [vmem:[#allocation11 + $0x320] sm:$0xff]
    %v2442 = vld [vmem:[#allocation11 + $0x328] sm:$0xff]
    %v2443 = vld [vmem:[#allocation11 + $0x330] sm:$0xff]
    %v2444 = vld [vmem:[#allocation11 + $0x338] sm:$0xff]
    %v2445 = vld [vmem:[#allocation11 + $0x340] sm:$0xff]
    %v2446 = vld [vmem:[#allocation11 + $0x348] sm:$0xff]
    %v2447 = vld [vmem:[#allocation11 + $0x350] sm:$0xff]
    %v2448 = vld [vmem:[#allocation11 + $0x358] sm:$0xff]
    %v2449 = vld [vmem:[#allocation11 + $0x360] sm:$0xff]
    %v2450 = vld [vmem:[#allocation11 + $0x368] sm:$0xff]
    %v2451 = vld [vmem:[#allocation11 + $0x370] sm:$0xff]
    %v2452 = vld [vmem:[#allocation11 + $0x378] sm:$0xff]
    %v2453 = vld [vmem:[#allocation11 + $0x380] sm:$0xff]
    %v2454 = vld [vmem:[#allocation11 + $0x388] sm:$0xff]
    %v2455 = vld [vmem:[#allocation11 + $0x390] sm:$0xff]
    %v2456 = vld [vmem:[#allocation11 + $0x398] sm:$0xff]
    %v2457 = vld [vmem:[#allocation11 + $0x3a0] sm:$0xff]
    %v2458 = vld [vmem:[#allocation11 + $0x3a8] sm:$0xff]
    %v2459 = vld [vmem:[#allocation11 + $0x3b0] sm:$0xff]
    %v2460 = vld [vmem:[#allocation11 + $0x3b8] sm:$0xff]
    %v2461 = vld [vmem:[#allocation11 + $0x3c0] sm:$0xff]
    %v2462 = vld [vmem:[#allocation11 + $0x3c8] sm:$0xff]
    %v2463 = vld [vmem:[#allocation11 + $0x3d0] sm:$0xff]
    %v2464 = vld [vmem:[#allocation11 + $0x3d8] sm:$0xff]
    %v2465 = vld [vmem:[#allocation11 + $0x3e0] sm:$0xff]
    %v2466 = vld [vmem:[#allocation11 + $0x3e8] sm:$0xff]
    %v2467 = vld [vmem:[#allocation11 + $0x3f0] sm:$0xff]
    %v2468 = vld [vmem:[#allocation11 + $0x3f8] sm:$0xff]
    %v2469 = vld [vmem:[#allocation11 + $0x400] sm:$0xff]
    %v2470 = vld [vmem:[#allocation11 + $0x408] sm:$0xff]
    %v2471 = vld [vmem:[#allocation11 + $0x410] sm:$0xff]
    %v2472 = vld [vmem:[#allocation11 + $0x418] sm:$0xff]
    %v2473 = vld [vmem:[#allocation11 + $0x420] sm:$0xff]
    %v2474 = vld [vmem:[#allocation11 + $0x428] sm:$0xff]
    %v2475 = vld [vmem:[#allocation11 + $0x430] sm:$0xff]
    %v2476 = vld [vmem:[#allocation11 + $0x438] sm:$0xff]
    %v2477 = vld [vmem:[#allocation11 + $0x440] sm:$0xff]
    %v2478 = vld [vmem:[#allocation11 + $0x448] sm:$0xff]
    %v2479 = vld [vmem:[#allocation11 + $0x450] sm:$0xff]
    %v2480 = vld [vmem:[#allocation11 + $0x458] sm:$0xff]
    %v2481 = vld [vmem:[#allocation11 + $0x460] sm:$0xff]
    %v2482 = vld [vmem:[#allocation11 + $0x468] sm:$0xff]
    %v2483 = vld [vmem:[#allocation11 + $0x470] sm:$0xff]
    %v2484 = vld [vmem:[#allocation11 + $0x478] sm:$0xff]
    %v2485 = vld [vmem:[#allocation11 + $0x480] sm:$0xff]
    %v2486 = vld [vmem:[#allocation11 + $0x488] sm:$0xff]
    %v2487 = vld [vmem:[#allocation11 + $0x490] sm:$0xff]
    %v2488 = vld [vmem:[#allocation11 + $0x498] sm:$0xff]
    %v2489 = vld [vmem:[#allocation11 + $0x4a0] sm:$0xff]
    %v2490 = vld [vmem:[#allocation11 + $0x4a8] sm:$0xff]
    %v2491 = vld [vmem:[#allocation11 + $0x4b0] sm:$0xff]
    %v2492 = vld [vmem:[#allocation11 + $0x4b8] sm:$0xff]
    %v2493 = vld [vmem:[#allocation11 + $0x4c0] sm:$0xff]
    %v2494 = vld [vmem:[#allocation11 + $0x4c8] sm:$0xff]
    %v2495 = vld [vmem:[#allocation11 + $0x4d0] sm:$0xff]
    %v2496 = vld [vmem:[#allocation11 + $0x4d8] sm:$0xff]
    %v2497 = vld [vmem:[#allocation11 + $0x4e0] sm:$0xff]
    %v2498 = vld [vmem:[#allocation11 + $0x4e8] sm:$0xff]
    %v2499 = vld [vmem:[#allocation11 + $0x4f0] sm:$0xff]
    %v2500 = vld [vmem:[#allocation11 + $0x4f8] sm:$0xff]
    %v2501 = vld [vmem:[#allocation11 + $0x500] sm:$0xff]
    %v2502 = vld [vmem:[#allocation11 + $0x508] sm:$0xff]
    %v2503 = vld [vmem:[#allocation11 + $0x510] sm:$0xff]
    %v2504 = vld [vmem:[#allocation11 + $0x518] sm:$0xff]
    %v2505 = vld [vmem:[#allocation11 + $0x520] sm:$0xff]
    %v2506 = vld [vmem:[#allocation11 + $0x528] sm:$0xff]
    %v2507 = vld [vmem:[#allocation11 + $0x530] sm:$0xff]
    %v2508 = vld [vmem:[#allocation11 + $0x538] sm:$0xff]
    %v2509 = vld [vmem:[#allocation11 + $0x540] sm:$0xff]
    %v2510 = vld [vmem:[#allocation11 + $0x548] sm:$0xff]
    %v2511 = vld [vmem:[#allocation11 + $0x550] sm:$0xff]
    %v2512 = vld [vmem:[#allocation11 + $0x558] sm:$0xff]
    %v2513 = vld [vmem:[#allocation11 + $0x560] sm:$0xff]
    %v2514 = vld [vmem:[#allocation11 + $0x568] sm:$0xff]
    %v2515 = vld [vmem:[#allocation11 + $0x570] sm:$0xff]
    %v2516 = vld [vmem:[#allocation11 + $0x578] sm:$0xff]
    %v2517 = vld [vmem:[#allocation11 + $0x580] sm:$0xff]
    %v2518 = vld [vmem:[#allocation11 + $0x588] sm:$0xff]
    %v2519 = vld [vmem:[#allocation11 + $0x590] sm:$0xff]
    %v2520 = vld [vmem:[#allocation11 + $0x598] sm:$0xff]
    %v2521 = vld [vmem:[#allocation11 + $0x5a0] sm:$0xff]
    %v2522 = vld [vmem:[#allocation11 + $0x5a8] sm:$0xff]
    %v2523 = vld [vmem:[#allocation11 + $0x5b0] sm:$0xff]
    %v2524 = vld [vmem:[#allocation11 + $0x5b8] sm:$0xff]
    %v2525 = vld [vmem:[#allocation11 + $0x5c0] sm:$0xff]
    %v2526 = vld [vmem:[#allocation11 + $0x5c8] sm:$0xff]
    %v2527 = vld [vmem:[#allocation11 + $0x5d0] sm:$0xff]
    %v2528 = vld [vmem:[#allocation11 + $0x5d8] sm:$0xff]
    %v2529 = vld [vmem:[#allocation11 + $0x5e0] sm:$0xff]
    %v2530 = vld [vmem:[#allocation11 + $0x5e8] sm:$0xff]
    %v2531 = vld [vmem:[#allocation11 + $0x5f0] sm:$0xff]
    %v2532 = vld [vmem:[#allocation11 + $0x5f8] sm:$0xff]
    %v2533 = vld [vmem:[#allocation11 + $0x600] sm:$0xff]
    %v2534 = vld [vmem:[#allocation11 + $0x608] sm:$0xff]
    %v2535 = vld [vmem:[#allocation11 + $0x610] sm:$0xff]
    %v2536 = vld [vmem:[#allocation11 + $0x618] sm:$0xff]
    %v2537 = vld [vmem:[#allocation11 + $0x620] sm:$0xff]
    %v2538 = vld [vmem:[#allocation11 + $0x628] sm:$0xff]
    %v2539 = vld [vmem:[#allocation11 + $0x630] sm:$0xff]
    %v2540 = vld [vmem:[#allocation11 + $0x638] sm:$0xff]
    %v2541 = vld [vmem:[#allocation11 + $0x640] sm:$0xff]
    %v2542 = vld [vmem:[#allocation11 + $0x648] sm:$0xff]
    %v2543 = vld [vmem:[#allocation11 + $0x650] sm:$0xff]
    %v2544 = vld [vmem:[#allocation11 + $0x658] sm:$0xff]
    %v2545 = vld [vmem:[#allocation11 + $0x660] sm:$0xff]
    %v2546 = vld [vmem:[#allocation11 + $0x668] sm:$0xff]
    %v2547 = vld [vmem:[#allocation11 + $0x670] sm:$0xff]
    %v2548 = vld [vmem:[#allocation11 + $0x678] sm:$0xff]
    %v2549 = vld [vmem:[#allocation11 + $0x680] sm:$0xff]
    %v2550 = vld [vmem:[#allocation11 + $0x688] sm:$0xff]
    %v2551 = vld [vmem:[#allocation11 + $0x690] sm:$0xff]
    %v2552 = vld [vmem:[#allocation11 + $0x698] sm:$0xff]
    %v2553 = vld [vmem:[#allocation11 + $0x6a0] sm:$0xff]
    %v2554 = vld [vmem:[#allocation11 + $0x6a8] sm:$0xff]
    %v2555 = vld [vmem:[#allocation11 + $0x6b0] sm:$0xff]
    %v2556 = vld [vmem:[#allocation11 + $0x6b8] sm:$0xff]
    %v2557 = vld [vmem:[#allocation11 + $0x6c0] sm:$0xff]
    %v2558 = vld [vmem:[#allocation11 + $0x6c8] sm:$0xff]
    %v2559 = vld [vmem:[#allocation11 + $0x6d0] sm:$0xff]
    %v2560 = vld [vmem:[#allocation11 + $0x6d8] sm:$0xff]
    %v2561 = vld [vmem:[#allocation11 + $0x6e0] sm:$0xff]
    %v2562 = vld [vmem:[#allocation11 + $0x6e8] sm:$0xff]
    %v2563 = vld [vmem:[#allocation11 + $0x6f0] sm:$0xff]
    %v2564 = vld [vmem:[#allocation11 + $0x6f8] sm:$0xff]
    %v2565 = vld [vmem:[#allocation11 + $0x700] sm:$0xff]
    %v2566 = vld [vmem:[#allocation11 + $0x708] sm:$0xff]
    %v2567 = vld [vmem:[#allocation11 + $0x710] sm:$0xff]
    %v2568 = vld [vmem:[#allocation11 + $0x718] sm:$0xff]
    %v2569 = vld [vmem:[#allocation11 + $0x720] sm:$0xff]
    %v2570 = vld [vmem:[#allocation11 + $0x728] sm:$0xff]
    %v2571 = vld [vmem:[#allocation11 + $0x730] sm:$0xff]
    %v2572 = vld [vmem:[#allocation11 + $0x738] sm:$0xff]
    %v2573 = vld [vmem:[#allocation11 + $0x740] sm:$0xff]
    %v2574 = vld [vmem:[#allocation11 + $0x748] sm:$0xff]
    %v2575 = vld [vmem:[#allocation11 + $0x750] sm:$0xff]
    %v2576 = vld [vmem:[#allocation11 + $0x758] sm:$0xff]
    %v2577 = vld [vmem:[#allocation11 + $0x760] sm:$0xff]
    %v2578 = vld [vmem:[#allocation11 + $0x768] sm:$0xff]
    %v2579 = vld [vmem:[#allocation11 + $0x770] sm:$0xff]
    %v2580 = vld [vmem:[#allocation11 + $0x778] sm:$0xff]
    %v2581 = vld [vmem:[#allocation11 + $0x780] sm:$0xff]
    %v2582 = vld [vmem:[#allocation11 + $0x788] sm:$0xff]
    %v2583 = vld [vmem:[#allocation11 + $0x790] sm:$0xff]
    %v2584 = vld [vmem:[#allocation11 + $0x798] sm:$0xff]
    %v2585 = vld [vmem:[#allocation11 + $0x7a0] sm:$0xff]
    %v2586 = vld [vmem:[#allocation11 + $0x7a8] sm:$0xff]
    %v2587 = vld [vmem:[#allocation11 + $0x7b0] sm:$0xff]
    %v2588 = vld [vmem:[#allocation11 + $0x7b8] sm:$0xff]
    %v2589 = vld [vmem:[#allocation11 + $0x7c0] sm:$0xff]
    %v2590 = vld [vmem:[#allocation11 + $0x7c8] sm:$0xff]
    %v2591 = vld [vmem:[#allocation11 + $0x7d0] sm:$0xff]
    %v2592 = vld [vmem:[#allocation11 + $0x7d8] sm:$0xff]
    %v2593 = vld [vmem:[#allocation11 + $0x7e0] sm:$0xff]
    %v2594 = vld [vmem:[#allocation11 + $0x7e8] sm:$0xff]
    %v2595 = vld [vmem:[#allocation11 + $0x7f0] sm:$0xff]
    %v2596 = vld [vmem:[#allocation11 + $0x7f8] sm:$0xff]
    %v2597 = vld [vmem:[#allocation13] sm:$0xf]
    %v2599 = vlaneseq
    %v2600 = vshrl.u32 %v2599, 7
    %v2601 = vsub.s32 0, %v2600
    %v2602 = vrot.slane %v2597, %v2601
    %v2603 = vlaneseq
    %v2604 = vshrl.u32 %v2603, 7
    %v2605 = vsub.s32 1, %v2604
    %v2606 = vrot.slane %v2597, %v2605
    %v2607 = vlaneseq
    %v2608 = vshrl.u32 %v2607, 7
    %v2609 = vsub.s32 2, %v2608
    %v2610 = vrot.slane %v2597, %v2609
    %v2611 = vlaneseq
    %v2612 = vshrl.u32 %v2611, 7
    %v2613 = vsub.s32 3, %v2612
    %v2614 = vrot.slane %v2597, %v2613
    %2619 = vmatprep.subr.mxu0 %v2342
    %2620 = vmatpush1.msra.mxu0 %v2341
    %2621 = vmatprep.subr.mxu0 %v2346
    %2622 = vmatpush1.msra.mxu0 %v2345
    %2623 = vmatprep.subr.mxu0 %v2350
    %2624 = vmatpush1.msra.mxu0 %v2349
    %2625 = vmatprep.subr.mxu0 %v2354
    %2626 = vmatpush1.msra.mxu0 %v2353
    %2627 = vmatprep.subr.mxu0 %v2358
    %2628 = vmatpush1.msra.mxu0 %v2357
    %2629 = vmatprep.subr.mxu0 %v2362
    %2630 = vmatpush1.msra.mxu0 %v2361
    %2631 = vmatprep.subr.mxu0 %v2366
    %2632 = vmatpush1.msra.mxu0 %v2365
    %2633 = vmatprep.subr.mxu0 %v2370
    %2634 = vmatpush1.msra.mxu0 %v2369
    %2635 = vmatprep.subr.mxu0 %v2374
    %2636 = vmatpush1.msra.mxu0 %v2373
    %2637 = vmatprep.subr.mxu0 %v2378
    %2638 = vmatpush1.msra.mxu0 %v2377
    %2639 = vmatprep.subr.mxu0 %v2382
    %2640 = vmatpush1.msra.mxu0 %v2381
    %2641 = vmatprep.subr.mxu0 %v2386
    %2642 = vmatpush1.msra.mxu0 %v2385
    %2643 = vmatprep.subr.mxu0 %v2390
    %2644 = vmatpush1.msra.mxu0 %v2389
    %2645 = vmatprep.subr.mxu0 %v2394
    %2646 = vmatpush1.msra.mxu0 %v2393
    %2647 = vmatprep.subr.mxu0 %v2398
    %2648 = vmatpush1.msra.mxu0 %v2397
    %2649 = vmatprep.subr.mxu0 %v2402
    %2650 = vmatpush1.msra.mxu0 %v2401
    %2651 = vmatprep.subr.mxu0 %v2406
    %2652 = vmatpush1.msra.mxu0 %v2405
    %2653 = vmatprep.subr.mxu0 %v2410
    %2654 = vmatpush1.msra.mxu0 %v2409
    %2655 = vmatprep.subr.mxu0 %v2414
    %2656 = vmatpush1.msra.mxu0 %v2413
    %2657 = vmatprep.subr.mxu0 %v2418
    %2658 = vmatpush1.msra.mxu0 %v2417
    %2659 = vmatprep.subr.mxu0 %v2422
    %2660 = vmatpush1.msra.mxu0 %v2421
    %2661 = vmatprep.subr.mxu0 %v2426
    %2662 = vmatpush1.msra.mxu0 %v2425
    %2663 = vmatprep.subr.mxu0 %v2430
    %2664 = vmatpush1.msra.mxu0 %v2429
    %2665 = vmatprep.subr.mxu0 %v2434
    %2666 = vmatpush1.msra.mxu0 %v2433
    %2667 = vmatprep.subr.mxu0 %v2438
    %2668 = vmatpush1.msra.mxu0 %v2437
    %2669 = vmatprep.subr.mxu0 %v2442
    %2670 = vmatpush1.msra.mxu0 %v2441
    %2671 = vmatprep.subr.mxu0 %v2446
    %2672 = vmatpush1.msra.mxu0 %v2445
    %2673 = vmatprep.subr.mxu0 %v2450
    %2674 = vmatpush1.msra.mxu0 %v2449
    %2675 = vmatprep.subr.mxu0 %v2454
    %2676 = vmatpush1.msra.mxu0 %v2453
    %2677 = vmatprep.subr.mxu0 %v2458
    %2678 = vmatpush1.msra.mxu0 %v2457
    %2679 = vmatprep.subr.mxu0 %v2462
    %2680 = vmatpush1.msra.mxu0 %v2461
    %2681 = vmatprep.subr.mxu0 %v2466
    %2682 = vmatpush1.msra.mxu0 %v2465
    %2683 = vmatprep.mubr.f32.mxu0 %v2214
    %2684 = vmatmul.mubr.f32.gmra.mrb[0].mxu0 %v2213
    %v2685 = vpop.f32.mrb[0].mxu0
    %v2686 = vadd.f32 %v2602, %v2685
    %v2687 = vpop.f32.mrb[0].mxu0
    %v2688 = vadd.f32 %v2606, %v2687
    %2689 = vmatprep.mubr.f32.mxu0 %v2218
    %2690 = vmatmul.mubr.f32.gmra.mrb[0].mxu0 %v2217
    %v2691 = vpop.f32.mrb[0].mxu0
    %v2692 = vadd.f32 %v2602, %v2691
    %v2693 = vpop.f32.mrb[0].mxu0
    %v2694 = vadd.f32 %v2606, %v2693
    %2695 = vmatprep.mubr.f32.mxu0 %v2222
    %2696 = vmatmul.mubr.f32.gmra.mrb[0].mxu0 %v2221
    %v2697 = vpop.f32.mrb[0].mxu0
    %v2698 = vadd.f32 %v2602, %v2697
    %v2699 = vpop.f32.mrb[0].mxu0
    %v2700 = vadd.f32 %v2606, %v2699
    %2701 = vmatprep.mubr.f32.mxu0 %v2226
    %2702 = vmatmul.mubr.f32.gmra.mrb[0].mxu0 %v2225
    %v2703 = vpop.f32.mrb[0].mxu0
    %v2704 = vadd.f32 %v2602, %v2703
    %v2705 = vpop.f32.mrb[0].mxu0
    %v2706 = vadd.f32 %v2606, %v2705
    %2707 = vmatprep.mubr.f32.mxu0 %v2230
    %2708 = vmatmul.mubr.f32.gmra.mrb[0].mxu0 %v2229
    %v2709 = vpop.f32.mrb[0].mxu0
    %v2710 = vadd.f32 %v2602, %v2709
    %v2711 = vpop.f32.mrb[0].mxu0
    %v2712 = vadd.f32 %v2606, %v2711
    %2713 = vmatprep.mubr.f32.mxu0 %v2234
    %2714 = vmatmul.mubr.f32.gmra.mrb[0].mxu0 %v2233
    %v2715 = vpop.f32.mrb[0].mxu0
    %v2716 = vadd.f32 %v2602, %v2715
    %v2717 = vpop.f32.mrb[0].mxu0
    %v2718 = vadd.f32 %v2606, %v2717
    %2719 = vmatprep.mubr.f32.mxu0 %v2238
    %2720 = vmatmul.mubr.f32.gmra.mrb[0].mxu0 %v2237
    %v2721 = vpop.f32.mrb[0].mxu0
    %v2722 = vadd.f32 %v2602, %v2721
    %v2723 = vpop.f32.mrb[0].mxu0
    %v2724 = vadd.f32 %v2606, %v2723
    %2725 = vmatprep.mubr.f32.mxu0 %v2242
    %2726 = vmatmul.mubr.f32.gmra.mrb[0].mxu0 %v2241
    %v2727 = vpop.f32.mrb[0].mxu0
    %v2728 = vadd.f32 %v2602, %v2727
    %v2729 = vpop.f32.mrb[0].mxu0
    %v2730 = vadd.f32 %v2606, %v2729
    %2731 = vmatprep.mubr.f32.mxu0 %v2246
    %2732 = vmatmul.mubr.f32.gmra.mrb[0].mxu0 %v2245
    %v2733 = vpop.f32.mrb[0].mxu0
    %v2734 = vadd.f32 %v2602, %v2733
    %v2735 = vpop.f32.mrb[0].mxu0
    %v2736 = vadd.f32 %v2606, %v2735
    %2737 = vmatprep.mubr.f32.mxu0 %v2250
    %2738 = vmatmul.mubr.f32.gmra.mrb[0].mxu0 %v2249
    %v2739 = vpop.f32.mrb[0].mxu0
    %v2740 = vadd.f32 %v2602, %v2739
    %v2741 = vpop.f32.mrb[0].mxu0
    %v2742 = vadd.f32 %v2606, %v2741
    %2743 = vmatprep.mubr.f32.mxu0 %v2254
    %2744 = vmatmul.mubr.f32.gmra.mrb[0].mxu0 %v2253
    %v2745 = vpop.f32.mrb[0].mxu0
    %v2746 = vadd.f32 %v2602, %v2745
    %v2747 = vpop.f32.mrb[0].mxu0
    %v2748 = vadd.f32 %v2606, %v2747
    %2749 = vmatprep.mubr.f32.mxu0 %v2258
    %2750 = vmatmul.mubr.f32.gmra.mrb[0].mxu0 %v2257
    %v2751 = vpop.f32.mrb[0].mxu0
    %v2752 = vadd.f32 %v2602, %v2751
    %v2753 = vpop.f32.mrb[0].mxu0
    %v2754 = vadd.f32 %v2606, %v2753
    %2755 = vmatprep.mubr.f32.mxu0 %v2262
    %2756 = vmatmul.mubr.f32.gmra.mrb[0].mxu0 %v2261
    %v2757 = vpop.f32.mrb[0].mxu0
    %v2758 = vadd.f32 %v2602, %v2757
    %v2759 = vpop.f32.mrb[0].mxu0
    %v2760 = vadd.f32 %v2606, %v2759
    %2761 = vmatprep.mubr.f32.mxu0 %v2266
    %2762 = vmatmul.mubr.f32.gmra.mrb[0].mxu0 %v2265
    %v2763 = vpop.f32.mrb[0].mxu0
    %v2764 = vadd.f32 %v2602, %v2763
    %v2765 = vpop.f32.mrb[0].mxu0
    %v2766 = vadd.f32 %v2606, %v2765
    %2767 = vmatprep.mubr.f32.mxu0 %v2270
    %2768 = vmatmul.mubr.f32.gmra.mrb[0].mxu0 %v2269
    %v2769 = vpop.f32.mrb[0].mxu0
    %v2770 = vadd.f32 %v2602, %v2769
    %v2771 = vpop.f32.mrb[0].mxu0
    %v2772 = vadd.f32 %v2606, %v2771
    %2773 = vmatprep.mubr.f32.mxu0 %v2274
    %2774 = vmatmul.mubr.f32.gmra.mrb[0].mxu0 %v2273
    %v2775 = vpop.f32.mrb[0].mxu0
    %v2776 = vadd.f32 %v2602, %v2775
    %v2777 = vpop.f32.mrb[0].mxu0
    %v2778 = vadd.f32 %v2606, %v2777
    %2779 = vmatprep.mubr.f32.mxu0 %v2278
    %2780 = vmatmul.mubr.f32.gmra.mrb[0].mxu0 %v2277
    %v2781 = vpop.f32.mrb[0].mxu0
    %v2782 = vadd.f32 %v2602, %v2781
    %v2783 = vpop.f32.mrb[0].mxu0
    %v2784 = vadd.f32 %v2606, %v2783
    %2785 = vmatprep.mubr.f32.mxu0 %v2282
    %2786 = vmatmul.mubr.f32.gmra.mrb[0].mxu0 %v2281
    %v2787 = vpop.f32.mrb[0].mxu0
    %v2788 = vadd.f32 %v2602, %v2787
    %v2789 = vpop.f32.mrb[0].mxu0
    %v2790 = vadd.f32 %v2606, %v2789
    %2791 = vmatprep.mubr.f32.mxu0 %v2286
    %2792 = vmatmul.mubr.f32.gmra.mrb[0].mxu0 %v2285
    %v2793 = vpop.f32.mrb[0].mxu0
    %v2794 = vadd.f32 %v2602, %v2793
    %v2795 = vpop.f32.mrb[0].mxu0
    %v2796 = vadd.f32 %v2606, %v2795
    %2797 = vmatprep.mubr.f32.mxu0 %v2290
    %2798 = vmatmul.mubr.f32.gmra.mrb[0].mxu0 %v2289
    %v2799 = vpop.f32.mrb[0].mxu0
    %v2800 = vadd.f32 %v2602, %v2799
    %v2801 = vpop.f32.mrb[0].mxu0
    %v2802 = vadd.f32 %v2606, %v2801
    %2803 = vmatprep.mubr.f32.mxu0 %v2294
    %2804 = vmatmul.mubr.f32.gmra.mrb[0].mxu0 %v2293
    %v2805 = vpop.f32.mrb[0].mxu0
    %v2806 = vadd.f32 %v2602, %v2805
    %v2807 = vpop.f32.mrb[0].mxu0
    %v2808 = vadd.f32 %v2606, %v2807
    %2809 = vmatprep.mubr.f32.mxu0 %v2298
    %2810 = vmatmul.mubr.f32.gmra.mrb[0].mxu0 %v2297
    %v2811 = vpop.f32.mrb[0].mxu0
    %v2812 = vadd.f32 %v2602, %v2811
    %v2813 = vpop.f32.mrb[0].mxu0
    %v2814 = vadd.f32 %v2606, %v2813
    %2815 = vmatprep.mubr.f32.mxu0 %v2302
    %2816 = vmatmul.mubr.f32.gmra.mrb[0].mxu0 %v2301
    %v2817 = vpop.f32.mrb[0].mxu0
    %v2818 = vadd.f32 %v2602, %v2817
    %v2819 = vpop.f32.mrb[0].mxu0
    %v2820 = vadd.f32 %v2606, %v2819
    %2821 = vmatprep.mubr.f32.mxu0 %v2306
    %2822 = vmatmul.mubr.f32.gmra.mrb[0].mxu0 %v2305
    %v2823 = vpop.f32.mrb[0].mxu0
    %v2824 = vadd.f32 %v2602, %v2823
    %v2825 = vpop.f32.mrb[0].mxu0
    %v2826 = vadd.f32 %v2606, %v2825
    %2827 = vmatprep.mubr.f32.mxu0 %v2310
    %2828 = vmatmul.mubr.f32.gmra.mrb[0].mxu0 %v2309
    %v2829 = vpop.f32.mrb[0].mxu0
    %v2830 = vadd.f32 %v2602, %v2829
    %v2831 = vpop.f32.mrb[0].mxu0
    %v2832 = vadd.f32 %v2606, %v2831
    %2833 = vmatprep.mubr.f32.mxu0 %v2314
    %2834 = vmatmul.mubr.f32.gmra.mrb[0].mxu0 %v2313
    %v2835 = vpop.f32.mrb[0].mxu0
    %v2836 = vadd.f32 %v2602, %v2835
    %v2837 = vpop.f32.mrb[0].mxu0
    %v2838 = vadd.f32 %v2606, %v2837
    %2839 = vmatprep.mubr.f32.mxu0 %v2318
    %2840 = vmatmul.mubr.f32.gmra.mrb[0].mxu0 %v2317
    %v2841 = vpop.f32.mrb[0].mxu0
    %v2842 = vadd.f32 %v2602, %v2841
    %v2843 = vpop.f32.mrb[0].mxu0
    %v2844 = vadd.f32 %v2606, %v2843
    %2845 = vmatprep.mubr.f32.mxu0 %v2322
    %2846 = vmatmul.mubr.f32.gmra.mrb[0].mxu0 %v2321
    %v2847 = vpop.f32.mrb[0].mxu0
    %v2848 = vadd.f32 %v2602, %v2847
    %v2849 = vpop.f32.mrb[0].mxu0
    %v2850 = vadd.f32 %v2606, %v2849
    %2851 = vmatprep.mubr.f32.mxu0 %v2326
    %2852 = vmatmul.mubr.f32.gmra.mrb[0].mxu0 %v2325
    %v2853 = vpop.f32.mrb[0].mxu0
    %v2854 = vadd.f32 %v2602, %v2853
    %v2855 = vpop.f32.mrb[0].mxu0
    %v2856 = vadd.f32 %v2606, %v2855
    %2857 = vmatprep.mubr.f32.mxu0 %v2330
    %2858 = vmatmul.mubr.f32.gmra.mrb[0].mxu0 %v2329
    %v2859 = vpop.f32.mrb[0].mxu0
    %v2860 = vadd.f32 %v2602, %v2859
    %v2861 = vpop.f32.mrb[0].mxu0
    %v2862 = vadd.f32 %v2606, %v2861
    %2863 = vmatprep.mubr.f32.mxu0 %v2334
    %2864 = vmatmul.mubr.f32.gmra.mrb[0].mxu0 %v2333
    %v2865 = vpop.f32.mrb[0].mxu0
    %v2866 = vadd.f32 %v2602, %v2865
    %v2867 = vpop.f32.mrb[0].mxu0
    %v2868 = vadd.f32 %v2606, %v2867
    %2869 = vmatprep.mubr.f32.mxu0 %v2338
    %2870 = vmatmul.mubr.f32.gmra.mrb[0].mxu0 %v2337
    %v2871 = vpop.f32.mrb[0].mxu0
    %v2872 = vadd.f32 %v2602, %v2871
    %v2873 = vpop.f32.mrb[0].mxu0
    %v2874 = vadd.f32 %v2606, %v2873
    %2875 = vdwg.mxu0
    %2876 = vmatprep.subr.mxu0 %v2470
    %2877 = vmatpush1.msra.mxu0 %v2469
    %2878 = vmatprep.subr.mxu0 %v2474
    %2879 = vmatpush1.msra.mxu0 %v2473
    %2880 = vmatprep.subr.mxu0 %v2478
    %2881 = vmatpush1.msra.mxu0 %v2477
    %2882 = vmatprep.subr.mxu0 %v2482
    %2883 = vmatpush1.msra.mxu0 %v2481
    %2884 = vmatprep.subr.mxu0 %v2486
    %2885 = vmatpush1.msra.mxu0 %v2485
    %2886 = vmatprep.subr.mxu0 %v2490
    %2887 = vmatpush1.msra.mxu0 %v2489
    %2888 = vmatprep.subr.mxu0 %v2494
    %2889 = vmatpush1.msra.mxu0 %v2493
    %2890 = vmatprep.subr.mxu0 %v2498
    %2891 = vmatpush1.msra.mxu0 %v2497
    %2892 = vmatprep.subr.mxu0 %v2502
    %2893 = vmatpush1.msra.mxu0 %v2501
    %2894 = vmatprep.subr.mxu0 %v2506
    %2895 = vmatpush1.msra.mxu0 %v2505
    %2896 = vmatprep.subr.mxu0 %v2510
    %2897 = vmatpush1.msra.mxu0 %v2509
    %2898 = vmatprep.subr.mxu0 %v2514
    %2899 = vmatpush1.msra.mxu0 %v2513
    %2900 = vmatprep.subr.mxu0 %v2518
    %2901 = vmatpush1.msra.mxu0 %v2517
    %2902 = vmatprep.subr.mxu0 %v2522
    %2903 = vmatpush1.msra.mxu0 %v2521
    %2904 = vmatprep.subr.mxu0 %v2526
    %2905 = vmatpush1.msra.mxu0 %v2525
    %2906 = vmatprep.subr.mxu0 %v2530
    %2907 = vmatpush1.msra.mxu0 %v2529
    %2908 = vmatprep.subr.mxu0 %v2534
    %2909 = vmatpush1.msra.mxu0 %v2533
    %2910 = vmatprep.subr.mxu0 %v2538
    %2911 = vmatpush1.msra.mxu0 %v2537
    %2912 = vmatprep.subr.mxu0 %v2542
    %2913 = vmatpush1.msra.mxu0 %v2541
    %2914 = vmatprep.subr.mxu0 %v2546
    %2915 = vmatpush1.msra.mxu0 %v2545
    %2916 = vmatprep.subr.mxu0 %v2550
    %2917 = vmatpush1.msra.mxu0 %v2549
    %2918 = vmatprep.subr.mxu0 %v2554
    %2919 = vmatpush1.msra.mxu0 %v2553
    %2920 = vmatprep.subr.mxu0 %v2558
    %2921 = vmatpush1.msra.mxu0 %v2557
    %2922 = vmatprep.subr.mxu0 %v2562
    %2923 = vmatpush1.msra.mxu0 %v2561
    %2924 = vmatprep.subr.mxu0 %v2566
    %2925 = vmatpush1.msra.mxu0 %v2565
    %2926 = vmatprep.subr.mxu0 %v2570
    %2927 = vmatpush1.msra.mxu0 %v2569
    %2928 = vmatprep.subr.mxu0 %v2574
    %2929 = vmatpush1.msra.mxu0 %v2573
    %2930 = vmatprep.subr.mxu0 %v2578
    %2931 = vmatpush1.msra.mxu0 %v2577
    %2932 = vmatprep.subr.mxu0 %v2582
    %2933 = vmatpush1.msra.mxu0 %v2581
    %2934 = vmatprep.subr.mxu0 %v2586
    %2935 = vmatpush1.msra.mxu0 %v2585
    %2936 = vmatprep.subr.mxu0 %v2590
    %2937 = vmatpush1.msra.mxu0 %v2589
    %2938 = vmatprep.subr.mxu0 %v2594
    %2939 = vmatpush1.msra.mxu0 %v2593
    %2940 = vmatprep.mubr.f32.mxu0 %v2216
    %2941 = vmatmul.mubr.f32.gmra.mrb[0].mxu0 %v2215
    %v2942 = vpop.f32.mrb[0].mxu0
    %v2943 = vadd.f32 %v2686, %v2942
    %v2944 = vpop.f32.mrb[0].mxu0
    %v2945 = vadd.f32 %v2688, %v2944
    %2946 = vmatprep.mubr.f32.mxu0 %v2220
    %2947 = vmatmul.mubr.f32.gmra.mrb[0].mxu0 %v2219
    %v2948 = vpop.f32.mrb[0].mxu0
    %v2949 = vadd.f32 %v2692, %v2948
    %v2950 = vpop.f32.mrb[0].mxu0
    %v2951 = vadd.f32 %v2694, %v2950
    %2952 = vmatprep.mubr.f32.mxu0 %v2224
    %2953 = vmatmul.mubr.f32.gmra.mrb[0].mxu0 %v2223
    %v2954 = vpop.f32.mrb[0].mxu0
    %v2955 = vadd.f32 %v2698, %v2954
    %v2956 = vpop.f32.mrb[0].mxu0
    %v2957 = vadd.f32 %v2700, %v2956
    %2958 = vmatprep.mubr.f32.mxu0 %v2228
    %2959 = vmatmul.mubr.f32.gmra.mrb[0].mxu0 %v2227
    %v2960 = vpop.f32.mrb[0].mxu0
    %v2961 = vadd.f32 %v2704, %v2960
    %v2962 = vpop.f32.mrb[0].mxu0
    %v2963 = vadd.f32 %v2706, %v2962
    %2964 = vmatprep.mubr.f32.mxu0 %v2232
    %2965 = vmatmul.mubr.f32.gmra.mrb[0].mxu0 %v2231
    %v2966 = vpop.f32.mrb[0].mxu0
    %v2967 = vadd.f32 %v2710, %v2966
    %v2968 = vpop.f32.mrb[0].mxu0
    %v2969 = vadd.f32 %v2712, %v2968
    %2970 = vmatprep.mubr.f32.mxu0 %v2236
    %2971 = vmatmul.mubr.f32.gmra.mrb[0].mxu0 %v2235
    %v2972 = vpop.f32.mrb[0].mxu0
    %v2973 = vadd.f32 %v2716, %v2972
    %v2974 = vpop.f32.mrb[0].mxu0
    %v2975 = vadd.f32 %v2718, %v2974
    %2976 = vmatprep.mubr.f32.mxu0 %v2240
    %2977 = vmatmul.mubr.f32.gmra.mrb[0].mxu0 %v2239
    %v2978 = vpop.f32.mrb[0].mxu0
    %v2979 = vadd.f32 %v2722, %v2978
    %v2980 = vpop.f32.mrb[0].mxu0
    %v2981 = vadd.f32 %v2724, %v2980
    %2982 = vmatprep.mubr.f32.mxu0 %v2244
    %2983 = vmatmul.mubr.f32.gmra.mrb[0].mxu0 %v2243
    %v2984 = vpop.f32.mrb[0].mxu0
    %v2985 = vadd.f32 %v2728, %v2984
    %v2986 = vpop.f32.mrb[0].mxu0
    %v2987 = vadd.f32 %v2730, %v2986
    %2988 = vmatprep.mubr.f32.mxu0 %v2248
    %2989 = vmatmul.mubr.f32.gmra.mrb[0].mxu0 %v2247
    %v2990 = vpop.f32.mrb[0].mxu0
    %v2991 = vadd.f32 %v2734, %v2990
    %v2992 = vpop.f32.mrb[0].mxu0
    %v2993 = vadd.f32 %v2736, %v2992
    %2994 = vmatprep.mubr.f32.mxu0 %v2252
    %2995 = vmatmul.mubr.f32.gmra.mrb[0].mxu0 %v2251
    %v2996 = vpop.f32.mrb[0].mxu0
    %v2997 = vadd.f32 %v2740, %v2996
    %v2998 = vpop.f32.mrb[0].mxu0
    %v2999 = vadd.f32 %v2742, %v2998
    %3000 = vmatprep.mubr.f32.mxu0 %v2256
    %3001 = vmatmul.mubr.f32.gmra.mrb[0].mxu0 %v2255
    %v3002 = vpop.f32.mrb[0].mxu0
    %v3003 = vadd.f32 %v2746, %v3002
    %v3004 = vpop.f32.mrb[0].mxu0
    %v3005 = vadd.f32 %v2748, %v3004
    %3006 = vmatprep.mubr.f32.mxu0 %v2260
    %3007 = vmatmul.mubr.f32.gmra.mrb[0].mxu0 %v2259
    %v3008 = vpop.f32.mrb[0].mxu0
    %v3009 = vadd.f32 %v2752, %v3008
    %v3010 = vpop.f32.mrb[0].mxu0
    %v3011 = vadd.f32 %v2754, %v3010
    %3012 = vmatprep.mubr.f32.mxu0 %v2264
    %3013 = vmatmul.mubr.f32.gmra.mrb[0].mxu0 %v2263
    %v3014 = vpop.f32.mrb[0].mxu0
    %v3015 = vadd.f32 %v2758, %v3014
    %v3016 = vpop.f32.mrb[0].mxu0
    %v3017 = vadd.f32 %v2760, %v3016
    %3018 = vmatprep.mubr.f32.mxu0 %v2268
    %3019 = vmatmul.mubr.f32.gmra.mrb[0].mxu0 %v2267
    %v3020 = vpop.f32.mrb[0].mxu0
    %v3021 = vadd.f32 %v2764, %v3020
    %v3022 = vpop.f32.mrb[0].mxu0
    %v3023 = vadd.f32 %v2766, %v3022
    %3024 = vmatprep.mubr.f32.mxu0 %v2272
    %3025 = vmatmul.mubr.f32.gmra.mrb[0].mxu0 %v2271
    %v3026 = vpop.f32.mrb[0].mxu0
    %v3027 = vadd.f32 %v2770, %v3026
    %v3028 = vpop.f32.mrb[0].mxu0
    %v3029 = vadd.f32 %v2772, %v3028
    %3030 = vmatprep.mubr.f32.mxu0 %v2276
    %3031 = vmatmul.mubr.f32.gmra.mrb[0].mxu0 %v2275
    %v3032 = vpop.f32.mrb[0].mxu0
    %v3033 = vadd.f32 %v2776, %v3032
    %v3034 = vpop.f32.mrb[0].mxu0
    %v3035 = vadd.f32 %v2778, %v3034
    %3036 = vmatprep.mubr.f32.mxu0 %v2280
    %3037 = vmatmul.mubr.f32.gmra.mrb[0].mxu0 %v2279
    %v3038 = vpop.f32.mrb[0].mxu0
    %v3039 = vadd.f32 %v2782, %v3038
    %v3040 = vpop.f32.mrb[0].mxu0
    %v3041 = vadd.f32 %v2784, %v3040
    %3042 = vmatprep.mubr.f32.mxu0 %v2284
    %3043 = vmatmul.mubr.f32.gmra.mrb[0].mxu0 %v2283
    %v3044 = vpop.f32.mrb[0].mxu0
    %v3045 = vadd.f32 %v2788, %v3044
    %v3046 = vpop.f32.mrb[0].mxu0
    %v3047 = vadd.f32 %v2790, %v3046
    %3048 = vmatprep.mubr.f32.mxu0 %v2288
    %3049 = vmatmul.mubr.f32.gmra.mrb[0].mxu0 %v2287
    %v3050 = vpop.f32.mrb[0].mxu0
    %v3051 = vadd.f32 %v2794, %v3050
    %v3052 = vpop.f32.mrb[0].mxu0
    %v3053 = vadd.f32 %v2796, %v3052
    %3054 = vmatprep.mubr.f32.mxu0 %v2292
    %3055 = vmatmul.mubr.f32.gmra.mrb[0].mxu0 %v2291
    %v3056 = vpop.f32.mrb[0].mxu0
    %v3057 = vadd.f32 %v2800, %v3056
    %v3058 = vpop.f32.mrb[0].mxu0
    %v3059 = vadd.f32 %v2802, %v3058
    %3060 = vmatprep.mubr.f32.mxu0 %v2296
    %3061 = vmatmul.mubr.f32.gmra.mrb[0].mxu0 %v2295
    %v3062 = vpop.f32.mrb[0].mxu0
    %v3063 = vadd.f32 %v2806, %v3062
    %v3064 = vpop.f32.mrb[0].mxu0
    %v3065 = vadd.f32 %v2808, %v3064
    %3066 = vmatprep.mubr.f32.mxu0 %v2300
    %3067 = vmatmul.mubr.f32.gmra.mrb[0].mxu0 %v2299
    %v3068 = vpop.f32.mrb[0].mxu0
    %v3069 = vadd.f32 %v2812, %v3068
    %v3070 = vpop.f32.mrb[0].mxu0
    %v3071 = vadd.f32 %v2814, %v3070
    %3072 = vmatprep.mubr.f32.mxu0 %v2304
    %3073 = vmatmul.mubr.f32.gmra.mrb[0].mxu0 %v2303
    %v3074 = vpop.f32.mrb[0].mxu0
    %v3075 = vadd.f32 %v2818, %v3074
    %v3076 = vpop.f32.mrb[0].mxu0
    %v3077 = vadd.f32 %v2820, %v3076
    %3078 = vmatprep.mubr.f32.mxu0 %v2308
    %3079 = vmatmul.mubr.f32.gmra.mrb[0].mxu0 %v2307
    %v3080 = vpop.f32.mrb[0].mxu0
    %v3081 = vadd.f32 %v2824, %v3080
    %v3082 = vpop.f32.mrb[0].mxu0
    %v3083 = vadd.f32 %v2826, %v3082
    %3084 = vmatprep.mubr.f32.mxu0 %v2312
    %3085 = vmatmul.mubr.f32.gmra.mrb[0].mxu0 %v2311
    %v3086 = vpop.f32.mrb[0].mxu0
    %v3087 = vadd.f32 %v2830, %v3086
    %v3088 = vpop.f32.mrb[0].mxu0
    %v3089 = vadd.f32 %v2832, %v3088
    %3090 = vmatprep.mubr.f32.mxu0 %v2316
    %3091 = vmatmul.mubr.f32.gmra.mrb[0].mxu0 %v2315
    %v3092 = vpop.f32.mrb[0].mxu0
    %v3093 = vadd.f32 %v2836, %v3092
    %v3094 = vpop.f32.mrb[0].mxu0
    %v3095 = vadd.f32 %v2838, %v3094
    %3096 = vmatprep.mubr.f32.mxu0 %v2320
    %3097 = vmatmul.mubr.f32.gmra.mrb[0].mxu0 %v2319
    %v3098 = vpop.f32.mrb[0].mxu0
    %v3099 = vadd.f32 %v2842, %v3098
    %v3100 = vpop.f32.mrb[0].mxu0
    %v3101 = vadd.f32 %v2844, %v3100
    %3102 = vmatprep.mubr.f32.mxu0 %v2324
    %3103 = vmatmul.mubr.f32.gmra.mrb[0].mxu0 %v2323
    %v3104 = vpop.f32.mrb[0].mxu0
    %v3105 = vadd.f32 %v2848, %v3104
    %v3106 = vpop.f32.mrb[0].mxu0
    %v3107 = vadd.f32 %v2850, %v3106
    %3108 = vmatprep.mubr.f32.mxu0 %v2328
    %3109 = vmatmul.mubr.f32.gmra.mrb[0].mxu0 %v2327
    %v3110 = vpop.f32.mrb[0].mxu0
    %v3111 = vadd.f32 %v2854, %v3110
    %v3112 = vpop.f32.mrb[0].mxu0
    %v3113 = vadd.f32 %v2856, %v3112
    %3114 = vmatprep.mubr.f32.mxu0 %v2332
    %3115 = vmatmul.mubr.f32.gmra.mrb[0].mxu0 %v2331
    %v3116 = vpop.f32.mrb[0].mxu0
    %v3117 = vadd.f32 %v2860, %v3116
    %v3118 = vpop.f32.mrb[0].mxu0
    %v3119 = vadd.f32 %v2862, %v3118
    %3120 = vmatprep.mubr.f32.mxu0 %v2336
    %3121 = vmatmul.mubr.f32.gmra.mrb[0].mxu0 %v2335
    %v3122 = vpop.f32.mrb[0].mxu0
    %v3123 = vadd.f32 %v2866, %v3122
    %v3124 = vpop.f32.mrb[0].mxu0
    %v3125 = vadd.f32 %v2868, %v3124
    %3126 = vmatprep.mubr.f32.mxu0 %v2340
    %3127 = vmatmul.mubr.f32.gmra.mrb[0].mxu0 %v2339
    %v3128 = vpop.f32.mrb[0].mxu0
    %v3129 = vadd.f32 %v2872, %v3128
    %v3130 = vpop.f32.mrb[0].mxu0
    %v3131 = vadd.f32 %v2874, %v3130
    %3132 = vdwg.mxu0
    %3133 = vmatprep.subr.mxu0 %v2344
    %3134 = vmatpush1.msra.mxu0 %v2343
    %3135 = vmatprep.subr.mxu0 %v2348
    %3136 = vmatpush1.msra.mxu0 %v2347
    %3137 = vmatprep.subr.mxu0 %v2352
    %3138 = vmatpush1.msra.mxu0 %v2351
    %3139 = vmatprep.subr.mxu0 %v2356
    %3140 = vmatpush1.msra.mxu0 %v2355
    %3141 = vmatprep.subr.mxu0 %v2360
    %3142 = vmatpush1.msra.mxu0 %v2359
    %3143 = vmatprep.subr.mxu0 %v2364
    %3144 = vmatpush1.msra.mxu0 %v2363
    %3145 = vmatprep.subr.mxu0 %v2368
    %3146 = vmatpush1.msra.mxu0 %v2367
    %3147 = vmatprep.subr.mxu0 %v2372
    %3148 = vmatpush1.msra.mxu0 %v2371
    %3149 = vmatprep.subr.mxu0 %v2376
    %3150 = vmatpush1.msra.mxu0 %v2375
    %3151 = vmatprep.subr.mxu0 %v2380
    %3152 = vmatpush1.msra.mxu0 %v2379
    %3153 = vmatprep.subr.mxu0 %v2384
    %3154 = vmatpush1.msra.mxu0 %v2383
    %3155 = vmatprep.subr.mxu0 %v2388
    %3156 = vmatpush1.msra.mxu0 %v2387
    %3157 = vmatprep.subr.mxu0 %v2392
    %3158 = vmatpush1.msra.mxu0 %v2391
    %3159 = vmatprep.subr.mxu0 %v2396
    %3160 = vmatpush1.msra.mxu0 %v2395
    %3161 = vmatprep.subr.mxu0 %v2400
    %3162 = vmatpush1.msra.mxu0 %v2399
    %3163 = vmatprep.subr.mxu0 %v2404
    %3164 = vmatpush1.msra.mxu0 %v2403
    %3165 = vmatprep.subr.mxu0 %v2408
    %3166 = vmatpush1.msra.mxu0 %v2407
    %3167 = vmatprep.subr.mxu0 %v2412
    %3168 = vmatpush1.msra.mxu0 %v2411
    %3169 = vmatprep.subr.mxu0 %v2416
    %3170 = vmatpush1.msra.mxu0 %v2415
    %3171 = vmatprep.subr.mxu0 %v2420
    %3172 = vmatpush1.msra.mxu0 %v2419
    %3173 = vmatprep.subr.mxu0 %v2424
    %3174 = vmatpush1.msra.mxu0 %v2423
    %3175 = vmatprep.subr.mxu0 %v2428
    %3176 = vmatpush1.msra.mxu0 %v2427
    %3177 = vmatprep.subr.mxu0 %v2432
    %3178 = vmatpush1.msra.mxu0 %v2431
    %3179 = vmatprep.subr.mxu0 %v2436
    %3180 = vmatpush1.msra.mxu0 %v2435
    %3181 = vmatprep.subr.mxu0 %v2440
    %3182 = vmatpush1.msra.mxu0 %v2439
    %3183 = vmatprep.subr.mxu0 %v2444
    %3184 = vmatpush1.msra.mxu0 %v2443
    %3185 = vmatprep.subr.mxu0 %v2448
    %3186 = vmatpush1.msra.mxu0 %v2447
    %3187 = vmatprep.subr.mxu0 %v2452
    %3188 = vmatpush1.msra.mxu0 %v2451
    %3189 = vmatprep.subr.mxu0 %v2456
    %3190 = vmatpush1.msra.mxu0 %v2455
    %3191 = vmatprep.subr.mxu0 %v2460
    %3192 = vmatpush1.msra.mxu0 %v2459
    %3193 = vmatprep.subr.mxu0 %v2464
    %3194 = vmatpush1.msra.mxu0 %v2463
    %3195 = vmatprep.subr.mxu0 %v2468
    %3196 = vmatpush1.msra.mxu0 %v2467
    %3197 = vmatprep.mubr.f32.mxu0 %v2214
    %3198 = vmatmul.mubr.f32.gmra.mrb[0].mxu0 %v2213
    %v3199 = vpop.f32.mrb[0].mxu0
    %v3200 = vadd.f32 %v2610, %v3199
    %v3201 = vpop.f32.mrb[0].mxu0
    %v3202 = vadd.f32 %v2614, %v3201
    %3203 = vmatprep.mubr.f32.mxu0 %v2218
    %3204 = vmatmul.mubr.f32.gmra.mrb[0].mxu0 %v2217
    %v3205 = vpop.f32.mrb[0].mxu0
    %v3206 = vadd.f32 %v2610, %v3205
    %v3207 = vpop.f32.mrb[0].mxu0
    %v3208 = vadd.f32 %v2614, %v3207
    %3209 = vmatprep.mubr.f32.mxu0 %v2222
    %3210 = vmatmul.mubr.f32.gmra.mrb[0].mxu0 %v2221
    %v3211 = vpop.f32.mrb[0].mxu0
    %v3212 = vadd.f32 %v2610, %v3211
    %v3213 = vpop.f32.mrb[0].mxu0
    %v3214 = vadd.f32 %v2614, %v3213
    %3215 = vmatprep.mubr.f32.mxu0 %v2226
    %3216 = vmatmul.mubr.f32.gmra.mrb[0].mxu0 %v2225
    %v3217 = vpop.f32.mrb[0].mxu0
    %v3218 = vadd.f32 %v2610, %v3217
    %v3219 = vpop.f32.mrb[0].mxu0
    %v3220 = vadd.f32 %v2614, %v3219
    %3221 = vmatprep.mubr.f32.mxu0 %v2230
    %3222 = vmatmul.mubr.f32.gmra.mrb[0].mxu0 %v2229
    %v3223 = vpop.f32.mrb[0].mxu0
    %v3224 = vadd.f32 %v2610, %v3223
    %v3225 = vpop.f32.mrb[0].mxu0
    %v3226 = vadd.f32 %v2614, %v3225
    %3227 = vmatprep.mubr.f32.mxu0 %v2234
    %3228 = vmatmul.mubr.f32.gmra.mrb[0].mxu0 %v2233
    %v3229 = vpop.f32.mrb[0].mxu0
    %v3230 = vadd.f32 %v2610, %v3229
    %v3231 = vpop.f32.mrb[0].mxu0
    %v3232 = vadd.f32 %v2614, %v3231
    %3233 = vmatprep.mubr.f32.mxu0 %v2238
    %3234 = vmatmul.mubr.f32.gmra.mrb[0].mxu0 %v2237
    %v3235 = vpop.f32.mrb[0].mxu0
    %v3236 = vadd.f32 %v2610, %v3235
    %v3237 = vpop.f32.mrb[0].mxu0
    %v3238 = vadd.f32 %v2614, %v3237
    %3239 = vmatprep.mubr.f32.mxu0 %v2242
    %3240 = vmatmul.mubr.f32.gmra.mrb[0].mxu0 %v2241
    %v3241 = vpop.f32.mrb[0].mxu0
    %v3242 = vadd.f32 %v2610, %v3241
    %v3243 = vpop.f32.mrb[0].mxu0
    %v3244 = vadd.f32 %v2614, %v3243
    %3245 = vmatprep.mubr.f32.mxu0 %v2246
    %3246 = vmatmul.mubr.f32.gmra.mrb[0].mxu0 %v2245
    %v3247 = vpop.f32.mrb[0].mxu0
    %v3248 = vadd.f32 %v2610, %v3247
    %v3249 = vpop.f32.mrb[0].mxu0
    %v3250 = vadd.f32 %v2614, %v3249
    %3251 = vmatprep.mubr.f32.mxu0 %v2250
    %3252 = vmatmul.mubr.f32.gmra.mrb[0].mxu0 %v2249
    %v3253 = vpop.f32.mrb[0].mxu0
    %v3254 = vadd.f32 %v2610, %v3253
    %v3255 = vpop.f32.mrb[0].mxu0
    %v3256 = vadd.f32 %v2614, %v3255
    %3257 = vmatprep.mubr.f32.mxu0 %v2254
    %3258 = vmatmul.mubr.f32.gmra.mrb[0].mxu0 %v2253
    %v3259 = vpop.f32.mrb[0].mxu0
    %v3260 = vadd.f32 %v2610, %v3259
    %v3261 = vpop.f32.mrb[0].mxu0
    %v3262 = vadd.f32 %v2614, %v3261
    %3263 = vmatprep.mubr.f32.mxu0 %v2258
    %3264 = vmatmul.mubr.f32.gmra.mrb[0].mxu0 %v2257
    %v3265 = vpop.f32.mrb[0].mxu0
    %v3266 = vadd.f32 %v2610, %v3265
    %v3267 = vpop.f32.mrb[0].mxu0
    %v3268 = vadd.f32 %v2614, %v3267
    %3269 = vmatprep.mubr.f32.mxu0 %v2262
    %3270 = vmatmul.mubr.f32.gmra.mrb[0].mxu0 %v2261
    %v3271 = vpop.f32.mrb[0].mxu0
    %v3272 = vadd.f32 %v2610, %v3271
    %v3273 = vpop.f32.mrb[0].mxu0
    %v3274 = vadd.f32 %v2614, %v3273
    %3275 = vmatprep.mubr.f32.mxu0 %v2266
    %3276 = vmatmul.mubr.f32.gmra.mrb[0].mxu0 %v2265
    %v3277 = vpop.f32.mrb[0].mxu0
    %v3278 = vadd.f32 %v2610, %v3277
    %v3279 = vpop.f32.mrb[0].mxu0
    %v3280 = vadd.f32 %v2614, %v3279
    %3281 = vmatprep.mubr.f32.mxu0 %v2270
    %3282 = vmatmul.mubr.f32.gmra.mrb[0].mxu0 %v2269
    %v3283 = vpop.f32.mrb[0].mxu0
    %v3284 = vadd.f32 %v2610, %v3283
    %v3285 = vpop.f32.mrb[0].mxu0
    %v3286 = vadd.f32 %v2614, %v3285
    %3287 = vmatprep.mubr.f32.mxu0 %v2274
    %3288 = vmatmul.mubr.f32.gmra.mrb[0].mxu0 %v2273
    %v3289 = vpop.f32.mrb[0].mxu0
    %v3290 = vadd.f32 %v2610, %v3289
    %v3291 = vpop.f32.mrb[0].mxu0
    %v3292 = vadd.f32 %v2614, %v3291
    %3293 = vmatprep.mubr.f32.mxu0 %v2278
    %3294 = vmatmul.mubr.f32.gmra.mrb[0].mxu0 %v2277
    %v3295 = vpop.f32.mrb[0].mxu0
    %v3296 = vadd.f32 %v2610, %v3295
    %v3297 = vpop.f32.mrb[0].mxu0
    %v3298 = vadd.f32 %v2614, %v3297
    %3299 = vmatprep.mubr.f32.mxu0 %v2282
    %3300 = vmatmul.mubr.f32.gmra.mrb[0].mxu0 %v2281
    %v3301 = vpop.f32.mrb[0].mxu0
    %v3302 = vadd.f32 %v2610, %v3301
    %v3303 = vpop.f32.mrb[0].mxu0
    %v3304 = vadd.f32 %v2614, %v3303
    %3305 = vmatprep.mubr.f32.mxu0 %v2286
    %3306 = vmatmul.mubr.f32.gmra.mrb[0].mxu0 %v2285
    %v3307 = vpop.f32.mrb[0].mxu0
    %v3308 = vadd.f32 %v2610, %v3307
    %v3309 = vpop.f32.mrb[0].mxu0
    %v3310 = vadd.f32 %v2614, %v3309
    %3311 = vmatprep.mubr.f32.mxu0 %v2290
    %3312 = vmatmul.mubr.f32.gmra.mrb[0].mxu0 %v2289
    %v3313 = vpop.f32.mrb[0].mxu0
    %v3314 = vadd.f32 %v2610, %v3313
    %v3315 = vpop.f32.mrb[0].mxu0
    %v3316 = vadd.f32 %v2614, %v3315
    %3317 = vmatprep.mubr.f32.mxu0 %v2294
    %3318 = vmatmul.mubr.f32.gmra.mrb[0].mxu0 %v2293
    %v3319 = vpop.f32.mrb[0].mxu0
    %v3320 = vadd.f32 %v2610, %v3319
    %v3321 = vpop.f32.mrb[0].mxu0
    %v3322 = vadd.f32 %v2614, %v3321
    %3323 = vmatprep.mubr.f32.mxu0 %v2298
    %3324 = vmatmul.mubr.f32.gmra.mrb[0].mxu0 %v2297
    %v3325 = vpop.f32.mrb[0].mxu0
    %v3326 = vadd.f32 %v2610, %v3325
    %v3327 = vpop.f32.mrb[0].mxu0
    %v3328 = vadd.f32 %v2614, %v3327
    %3329 = vmatprep.mubr.f32.mxu0 %v2302
    %3330 = vmatmul.mubr.f32.gmra.mrb[0].mxu0 %v2301
    %v3331 = vpop.f32.mrb[0].mxu0
    %v3332 = vadd.f32 %v2610, %v3331
    %v3333 = vpop.f32.mrb[0].mxu0
    %v3334 = vadd.f32 %v2614, %v3333
    %3335 = vmatprep.mubr.f32.mxu0 %v2306
    %3336 = vmatmul.mubr.f32.gmra.mrb[0].mxu0 %v2305
    %v3337 = vpop.f32.mrb[0].mxu0
    %v3338 = vadd.f32 %v2610, %v3337
    %v3339 = vpop.f32.mrb[0].mxu0
    %v3340 = vadd.f32 %v2614, %v3339
    %3341 = vmatprep.mubr.f32.mxu0 %v2310
    %3342 = vmatmul.mubr.f32.gmra.mrb[0].mxu0 %v2309
    %v3343 = vpop.f32.mrb[0].mxu0
    %v3344 = vadd.f32 %v2610, %v3343
    %v3345 = vpop.f32.mrb[0].mxu0
    %v3346 = vadd.f32 %v2614, %v3345
    %3347 = vmatprep.mubr.f32.mxu0 %v2314
    %3348 = vmatmul.mubr.f32.gmra.mrb[0].mxu0 %v2313
    %v3349 = vpop.f32.mrb[0].mxu0
    %v3350 = vadd.f32 %v2610, %v3349
    %v3351 = vpop.f32.mrb[0].mxu0
    %v3352 = vadd.f32 %v2614, %v3351
    %3353 = vmatprep.mubr.f32.mxu0 %v2318
    %3354 = vmatmul.mubr.f32.gmra.mrb[0].mxu0 %v2317
    %v3355 = vpop.f32.mrb[0].mxu0
    %v3356 = vadd.f32 %v2610, %v3355
    %v3357 = vpop.f32.mrb[0].mxu0
    %v3358 = vadd.f32 %v2614, %v3357
    %3359 = vmatprep.mubr.f32.mxu0 %v2322
    %3360 = vmatmul.mubr.f32.gmra.mrb[0].mxu0 %v2321
    %v3361 = vpop.f32.mrb[0].mxu0
    %v3362 = vadd.f32 %v2610, %v3361
    %v3363 = vpop.f32.mrb[0].mxu0
    %v3364 = vadd.f32 %v2614, %v3363
    %3365 = vmatprep.mubr.f32.mxu0 %v2326
    %3366 = vmatmul.mubr.f32.gmra.mrb[0].mxu0 %v2325
    %v3367 = vpop.f32.mrb[0].mxu0
    %v3368 = vadd.f32 %v2610, %v3367
    %v3369 = vpop.f32.mrb[0].mxu0
    %v3370 = vadd.f32 %v2614, %v3369
    %3371 = vmatprep.mubr.f32.mxu0 %v2330
    %3372 = vmatmul.mubr.f32.gmra.mrb[0].mxu0 %v2329
    %v3373 = vpop.f32.mrb[0].mxu0
    %v3374 = vadd.f32 %v2610, %v3373
    %v3375 = vpop.f32.mrb[0].mxu0
    %v3376 = vadd.f32 %v2614, %v3375
    %3377 = vmatprep.mubr.f32.mxu0 %v2334
    %3378 = vmatmul.mubr.f32.gmra.mrb[0].mxu0 %v2333
    %v3379 = vpop.f32.mrb[0].mxu0
    %v3380 = vadd.f32 %v2610, %v3379
    %v3381 = vpop.f32.mrb[0].mxu0
    %v3382 = vadd.f32 %v2614, %v3381
    %3383 = vmatprep.mubr.f32.mxu0 %v2338
    %3384 = vmatmul.mubr.f32.gmra.mrb[0].mxu0 %v2337
    %v3385 = vpop.f32.mrb[0].mxu0
    %v3386 = vadd.f32 %v2610, %v3385
    %v3387 = vpop.f32.mrb[0].mxu0
    %v3388 = vadd.f32 %v2614, %v3387
    %3389 = vdwg.mxu0
    %3390 = vmatprep.subr.mxu0 %v2472
    %3391 = vmatpush1.msra.mxu0 %v2471
    %3392 = vmatprep.subr.mxu0 %v2476
    %3393 = vmatpush1.msra.mxu0 %v2475
    %3394 = vmatprep.subr.mxu0 %v2480
    %3395 = vmatpush1.msra.mxu0 %v2479
    %3396 = vmatprep.subr.mxu0 %v2484
    %3397 = vmatpush1.msra.mxu0 %v2483
    %3398 = vmatprep.subr.mxu0 %v2488
    %3399 = vmatpush1.msra.mxu0 %v2487
    %3400 = vmatprep.subr.mxu0 %v2492
    %3401 = vmatpush1.msra.mxu0 %v2491
    %3402 = vmatprep.subr.mxu0 %v2496
    %3403 = vmatpush1.msra.mxu0 %v2495
    %3404 = vmatprep.subr.mxu0 %v2500
    %3405 = vmatpush1.msra.mxu0 %v2499
    %3406 = vmatprep.subr.mxu0 %v2504
    %3407 = vmatpush1.msra.mxu0 %v2503
    %3408 = vmatprep.subr.mxu0 %v2508
    %3409 = vmatpush1.msra.mxu0 %v2507
    %3410 = vmatprep.subr.mxu0 %v2512
    %3411 = vmatpush1.msra.mxu0 %v2511
    %3412 = vmatprep.subr.mxu0 %v2516
    %3413 = vmatpush1.msra.mxu0 %v2515
    %3414 = vmatprep.subr.mxu0 %v2520
    %3415 = vmatpush1.msra.mxu0 %v2519
    %3416 = vmatprep.subr.mxu0 %v2524
    %3417 = vmatpush1.msra.mxu0 %v2523
    %3418 = vmatprep.subr.mxu0 %v2528
    %3419 = vmatpush1.msra.mxu0 %v2527
    %3420 = vmatprep.subr.mxu0 %v2532
    %3421 = vmatpush1.msra.mxu0 %v2531
    %3422 = vmatprep.subr.mxu0 %v2536
    %3423 = vmatpush1.msra.mxu0 %v2535
    %3424 = vmatprep.subr.mxu0 %v2540
    %3425 = vmatpush1.msra.mxu0 %v2539
    %3426 = vmatprep.subr.mxu0 %v2544
    %3427 = vmatpush1.msra.mxu0 %v2543
    %3428 = vmatprep.subr.mxu0 %v2548
    %3429 = vmatpush1.msra.mxu0 %v2547
    %3430 = vmatprep.subr.mxu0 %v2552
    %3431 = vmatpush1.msra.mxu0 %v2551
    %3432 = vmatprep.subr.mxu0 %v2556
    %3433 = vmatpush1.msra.mxu0 %v2555
    %3434 = vmatprep.subr.mxu0 %v2560
    %3435 = vmatpush1.msra.mxu0 %v2559
    %3436 = vmatprep.subr.mxu0 %v2564
    %3437 = vmatpush1.msra.mxu0 %v2563
    %3438 = vmatprep.subr.mxu0 %v2568
    %3439 = vmatpush1.msra.mxu0 %v2567
    %3440 = vmatprep.subr.mxu0 %v2572
    %3441 = vmatpush1.msra.mxu0 %v2571
    %3442 = vmatprep.subr.mxu0 %v2576
    %3443 = vmatpush1.msra.mxu0 %v2575
    %3444 = vmatprep.subr.mxu0 %v2580
    %3445 = vmatpush1.msra.mxu0 %v2579
    %3446 = vmatprep.subr.mxu0 %v2584
    %3447 = vmatpush1.msra.mxu0 %v2583
    %3448 = vmatprep.subr.mxu0 %v2588
    %3449 = vmatpush1.msra.mxu0 %v2587
    %3450 = vmatprep.subr.mxu0 %v2592
    %3451 = vmatpush1.msra.mxu0 %v2591
    %3452 = vmatprep.subr.mxu0 %v2596
    %3453 = vmatpush1.msra.mxu0 %v2595
    %3454 = vmatprep.mubr.f32.mxu0 %v2216
    %3455 = vmatmul.mubr.f32.gmra.mrb[0].mxu0 %v2215
    %v3456 = vpop.f32.mrb[0].mxu0
    %v3457 = vadd.f32 %v3200, %v3456
    %v3458 = vpop.f32.mrb[0].mxu0
    %v3459 = vadd.f32 %v3202, %v3458
    %3460 = vmatprep.mubr.f32.mxu0 %v2220
    %3461 = vmatmul.mubr.f32.gmra.mrb[0].mxu0 %v2219
    %v3462 = vpop.f32.mrb[0].mxu0
    %v3463 = vadd.f32 %v3206, %v3462
    %v3464 = vpop.f32.mrb[0].mxu0
    %v3465 = vadd.f32 %v3208, %v3464
    %3466 = vmatprep.mubr.f32.mxu0 %v2224
    %3467 = vmatmul.mubr.f32.gmra.mrb[0].mxu0 %v2223
    %v3468 = vpop.f32.mrb[0].mxu0
    %v3469 = vadd.f32 %v3212, %v3468
    %v3470 = vpop.f32.mrb[0].mxu0
    %v3471 = vadd.f32 %v3214, %v3470
    %3472 = vmatprep.mubr.f32.mxu0 %v2228
    %3473 = vmatmul.mubr.f32.gmra.mrb[0].mxu0 %v2227
    %v3474 = vpop.f32.mrb[0].mxu0
    %v3475 = vadd.f32 %v3218, %v3474
    %v3476 = vpop.f32.mrb[0].mxu0
    %v3477 = vadd.f32 %v3220, %v3476
    %3478 = vmatprep.mubr.f32.mxu0 %v2232
    %3479 = vmatmul.mubr.f32.gmra.mrb[0].mxu0 %v2231
    %v3480 = vpop.f32.mrb[0].mxu0
    %v3481 = vadd.f32 %v3224, %v3480
    %v3482 = vpop.f32.mrb[0].mxu0
    %v3483 = vadd.f32 %v3226, %v3482
    %3484 = vmatprep.mubr.f32.mxu0 %v2236
    %3485 = vmatmul.mubr.f32.gmra.mrb[0].mxu0 %v2235
    %v3486 = vpop.f32.mrb[0].mxu0
    %v3487 = vadd.f32 %v3230, %v3486
    %v3488 = vpop.f32.mrb[0].mxu0
    %v3489 = vadd.f32 %v3232, %v3488
    %3490 = vmatprep.mubr.f32.mxu0 %v2240
    %3491 = vmatmul.mubr.f32.gmra.mrb[0].mxu0 %v2239
    %v3492 = vpop.f32.mrb[0].mxu0
    %v3493 = vadd.f32 %v3236, %v3492
    %v3494 = vpop.f32.mrb[0].mxu0
    %v3495 = vadd.f32 %v3238, %v3494
    %3496 = vmatprep.mubr.f32.mxu0 %v2244
    %3497 = vmatmul.mubr.f32.gmra.mrb[0].mxu0 %v2243
    %v3498 = vpop.f32.mrb[0].mxu0
    %v3499 = vadd.f32 %v3242, %v3498
    %v3500 = vpop.f32.mrb[0].mxu0
    %v3501 = vadd.f32 %v3244, %v3500
    %3502 = vmatprep.mubr.f32.mxu0 %v2248
    %3503 = vmatmul.mubr.f32.gmra.mrb[0].mxu0 %v2247
    %v3504 = vpop.f32.mrb[0].mxu0
    %v3505 = vadd.f32 %v3248, %v3504
    %v3506 = vpop.f32.mrb[0].mxu0
    %v3507 = vadd.f32 %v3250, %v3506
    %3508 = vmatprep.mubr.f32.mxu0 %v2252
    %3509 = vmatmul.mubr.f32.gmra.mrb[0].mxu0 %v2251
    %v3510 = vpop.f32.mrb[0].mxu0
    %v3511 = vadd.f32 %v3254, %v3510
    %v3512 = vpop.f32.mrb[0].mxu0
    %v3513 = vadd.f32 %v3256, %v3512
    %3514 = vmatprep.mubr.f32.mxu0 %v2256
    %3515 = vmatmul.mubr.f32.gmra.mrb[0].mxu0 %v2255
    %v3516 = vpop.f32.mrb[0].mxu0
    %v3517 = vadd.f32 %v3260, %v3516
    %v3518 = vpop.f32.mrb[0].mxu0
    %v3519 = vadd.f32 %v3262, %v3518
    %3520 = vmatprep.mubr.f32.mxu0 %v2260
    %3521 = vmatmul.mubr.f32.gmra.mrb[0].mxu0 %v2259
    %v3522 = vpop.f32.mrb[0].mxu0
    %v3523 = vadd.f32 %v3266, %v3522
    %v3524 = vpop.f32.mrb[0].mxu0
    %v3525 = vadd.f32 %v3268, %v3524
    %3526 = vmatprep.mubr.f32.mxu0 %v2264
    %3527 = vmatmul.mubr.f32.gmra.mrb[0].mxu0 %v2263
    %v3528 = vpop.f32.mrb[0].mxu0
    %v3529 = vadd.f32 %v3272, %v3528
    %v3530 = vpop.f32.mrb[0].mxu0
    %v3531 = vadd.f32 %v3274, %v3530
    %3532 = vmatprep.mubr.f32.mxu0 %v2268
    %3533 = vmatmul.mubr.f32.gmra.mrb[0].mxu0 %v2267
    %v3534 = vpop.f32.mrb[0].mxu0
    %v3535 = vadd.f32 %v3278, %v3534
    %v3536 = vpop.f32.mrb[0].mxu0
    %v3537 = vadd.f32 %v3280, %v3536
    %3538 = vmatprep.mubr.f32.mxu0 %v2272
    %3539 = vmatmul.mubr.f32.gmra.mrb[0].mxu0 %v2271
    %v3540 = vpop.f32.mrb[0].mxu0
    %v3541 = vadd.f32 %v3284, %v3540
    %v3542 = vpop.f32.mrb[0].mxu0
    %v3543 = vadd.f32 %v3286, %v3542
    %3544 = vmatprep.mubr.f32.mxu0 %v2276
    %3545 = vmatmul.mubr.f32.gmra.mrb[0].mxu0 %v2275
    %v3546 = vpop.f32.mrb[0].mxu0
    %v3547 = vadd.f32 %v3290, %v3546
    %v3548 = vpop.f32.mrb[0].mxu0
    %v3549 = vadd.f32 %v3292, %v3548
    %3550 = vmatprep.mubr.f32.mxu0 %v2280
    %3551 = vmatmul.mubr.f32.gmra.mrb[0].mxu0 %v2279
    %v3552 = vpop.f32.mrb[0].mxu0
    %v3553 = vadd.f32 %v3296, %v3552
    %v3554 = vpop.f32.mrb[0].mxu0
    %v3555 = vadd.f32 %v3298, %v3554
    %3556 = vmatprep.mubr.f32.mxu0 %v2284
    %3557 = vmatmul.mubr.f32.gmra.mrb[0].mxu0 %v2283
    %v3558 = vpop.f32.mrb[0].mxu0
    %v3559 = vadd.f32 %v3302, %v3558
    %v3560 = vpop.f32.mrb[0].mxu0
    %v3561 = vadd.f32 %v3304, %v3560
    %3562 = vmatprep.mubr.f32.mxu0 %v2288
    %3563 = vmatmul.mubr.f32.gmra.mrb[0].mxu0 %v2287
    %v3564 = vpop.f32.mrb[0].mxu0
    %v3565 = vadd.f32 %v3308, %v3564
    %v3566 = vpop.f32.mrb[0].mxu0
    %v3567 = vadd.f32 %v3310, %v3566
    %3568 = vmatprep.mubr.f32.mxu0 %v2292
    %3569 = vmatmul.mubr.f32.gmra.mrb[0].mxu0 %v2291
    %v3570 = vpop.f32.mrb[0].mxu0
    %v3571 = vadd.f32 %v3314, %v3570
    %v3572 = vpop.f32.mrb[0].mxu0
    %v3573 = vadd.f32 %v3316, %v3572
    %3574 = vmatprep.mubr.f32.mxu0 %v2296
    %3575 = vmatmul.mubr.f32.gmra.mrb[0].mxu0 %v2295
    %v3576 = vpop.f32.mrb[0].mxu0
    %v3577 = vadd.f32 %v3320, %v3576
    %v3578 = vpop.f32.mrb[0].mxu0
    %v3579 = vadd.f32 %v3322, %v3578
    %3580 = vmatprep.mubr.f32.mxu0 %v2300
    %3581 = vmatmul.mubr.f32.gmra.mrb[0].mxu0 %v2299
    %v3582 = vpop.f32.mrb[0].mxu0
    %v3583 = vadd.f32 %v3326, %v3582
    %v3584 = vpop.f32.mrb[0].mxu0
    %v3585 = vadd.f32 %v3328, %v3584
    %3586 = vmatprep.mubr.f32.mxu0 %v2304
    %3587 = vmatmul.mubr.f32.gmra.mrb[0].mxu0 %v2303
    %v3588 = vpop.f32.mrb[0].mxu0
    %v3589 = vadd.f32 %v3332, %v3588
    %v3590 = vpop.f32.mrb[0].mxu0
    %v3591 = vadd.f32 %v3334, %v3590
    %3592 = vmatprep.mubr.f32.mxu0 %v2308
    %3593 = vmatmul.mubr.f32.gmra.mrb[0].mxu0 %v2307
    %v3594 = vpop.f32.mrb[0].mxu0
    %v3595 = vadd.f32 %v3338, %v3594
    %v3596 = vpop.f32.mrb[0].mxu0
    %v3597 = vadd.f32 %v3340, %v3596
    %3598 = vmatprep.mubr.f32.mxu0 %v2312
    %3599 = vmatmul.mubr.f32.gmra.mrb[0].mxu0 %v2311
    %v3600 = vpop.f32.mrb[0].mxu0
    %v3601 = vadd.f32 %v3344, %v3600
    %v3602 = vpop.f32.mrb[0].mxu0
    %v3603 = vadd.f32 %v3346, %v3602
    %3604 = vmatprep.mubr.f32.mxu0 %v2316
    %3605 = vmatmul.mubr.f32.gmra.mrb[0].mxu0 %v2315
    %v3606 = vpop.f32.mrb[0].mxu0
    %v3607 = vadd.f32 %v3350, %v3606
    %v3608 = vpop.f32.mrb[0].mxu0
    %v3609 = vadd.f32 %v3352, %v3608
    %3610 = vmatprep.mubr.f32.mxu0 %v2320
    %3611 = vmatmul.mubr.f32.gmra.mrb[0].mxu0 %v2319
    %v3612 = vpop.f32.mrb[0].mxu0
    %v3613 = vadd.f32 %v3356, %v3612
    %v3614 = vpop.f32.mrb[0].mxu0
    %v3615 = vadd.f32 %v3358, %v3614
    %3616 = vmatprep.mubr.f32.mxu0 %v2324
    %3617 = vmatmul.mubr.f32.gmra.mrb[0].mxu0 %v2323
    %v3618 = vpop.f32.mrb[0].mxu0
    %v3619 = vadd.f32 %v3362, %v3618
    %v3620 = vpop.f32.mrb[0].mxu0
    %v3621 = vadd.f32 %v3364, %v3620
    %3622 = vmatprep.mubr.f32.mxu0 %v2328
    %3623 = vmatmul.mubr.f32.gmra.mrb[0].mxu0 %v2327
    %v3624 = vpop.f32.mrb[0].mxu0
    %v3625 = vadd.f32 %v3368, %v3624
    %v3626 = vpop.f32.mrb[0].mxu0
    %v3627 = vadd.f32 %v3370, %v3626
    %3628 = vmatprep.mubr.f32.mxu0 %v2332
    %3629 = vmatmul.mubr.f32.gmra.mrb[0].mxu0 %v2331
    %v3630 = vpop.f32.mrb[0].mxu0
    %v3631 = vadd.f32 %v3374, %v3630
    %v3632 = vpop.f32.mrb[0].mxu0
    %v3633 = vadd.f32 %v3376, %v3632
    %3634 = vmatprep.mubr.f32.mxu0 %v2336
    %3635 = vmatmul.mubr.f32.gmra.mrb[0].mxu0 %v2335
    %v3636 = vpop.f32.mrb[0].mxu0
    %v3637 = vadd.f32 %v3380, %v3636
    %v3638 = vpop.f32.mrb[0].mxu0
    %v3639 = vadd.f32 %v3382, %v3638
    %3640 = vmatprep.mubr.f32.mxu0 %v2340
    %3641 = vmatmul.mubr.f32.gmra.mrb[0].mxu0 %v2339
    %v3642 = vpop.f32.mrb[0].mxu0
    %v3643 = vadd.f32 %v3386, %v3642
    %v3644 = vpop.f32.mrb[0].mxu0
    %v3645 = vadd.f32 %v3388, %v3644
    %3646 = vdwg.mxu0
    %v3647 = vmax.f32 %v2943, 0.0
    %v3648 = vmax.f32 %v2945, 0.0
    %v3649 = vmax.f32 %v3457, 0.0
    %v3650 = vmax.f32 %v3459, 0.0
    %v3651 = vmax.f32 %v2949, 0.0
    %v3652 = vmax.f32 %v2951, 0.0
    %v3653 = vmax.f32 %v3463, 0.0
    %v3654 = vmax.f32 %v3465, 0.0
    %v3655 = vmax.f32 %v2955, 0.0
    %v3656 = vmax.f32 %v2957, 0.0
    %v3657 = vmax.f32 %v3469, 0.0
    %v3658 = vmax.f32 %v3471, 0.0
    %v3659 = vmax.f32 %v2961, 0.0
    %v3660 = vmax.f32 %v2963, 0.0
    %v3661 = vmax.f32 %v3475, 0.0
    %v3662 = vmax.f32 %v3477, 0.0
    %v3663 = vmax.f32 %v2967, 0.0
    %v3664 = vmax.f32 %v2969, 0.0
    %v3665 = vmax.f32 %v3481, 0.0
    %v3666 = vmax.f32 %v3483, 0.0
    %v3667 = vmax.f32 %v2973, 0.0
    %v3668 = vmax.f32 %v2975, 0.0
    %v3669 = vmax.f32 %v3487, 0.0
    %v3670 = vmax.f32 %v3489, 0.0
    %v3671 = vmax.f32 %v2979, 0.0
    %v3672 = vmax.f32 %v2981, 0.0
    %v3673 = vmax.f32 %v3493, 0.0
    %v3674 = vmax.f32 %v3495, 0.0
    %v3675 = vmax.f32 %v2985, 0.0
    %v3676 = vmax.f32 %v2987, 0.0
    %v3677 = vmax.f32 %v3499, 0.0
    %v3678 = vmax.f32 %v3501, 0.0
    %v3679 = vmax.f32 %v2991, 0.0
    %v3680 = vmax.f32 %v2993, 0.0
    %v3681 = vmax.f32 %v3505, 0.0
    %v3682 = vmax.f32 %v3507, 0.0
    %v3683 = vmax.f32 %v2997, 0.0
    %v3684 = vmax.f32 %v2999, 0.0
    %v3685 = vmax.f32 %v3511, 0.0
    %v3686 = vmax.f32 %v3513, 0.0
    %v3687 = vmax.f32 %v3003, 0.0
    %v3688 = vmax.f32 %v3005, 0.0
    %v3689 = vmax.f32 %v3517, 0.0
    %v3690 = vmax.f32 %v3519, 0.0
    %v3691 = vmax.f32 %v3009, 0.0
    %v3692 = vmax.f32 %v3011, 0.0
    %v3693 = vmax.f32 %v3523, 0.0
    %v3694 = vmax.f32 %v3525, 0.0
    %v3695 = vmax.f32 %v3015, 0.0
    %v3696 = vmax.f32 %v3017, 0.0
    %v3697 = vmax.f32 %v3529, 0.0
    %v3698 = vmax.f32 %v3531, 0.0
    %v3699 = vmax.f32 %v3021, 0.0
    %v3700 = vmax.f32 %v3023, 0.0
    %v3701 = vmax.f32 %v3535, 0.0
    %v3702 = vmax.f32 %v3537, 0.0
    %v3703 = vmax.f32 %v3027, 0.0
    %v3704 = vmax.f32 %v3029, 0.0
    %v3705 = vmax.f32 %v3541, 0.0
    %v3706 = vmax.f32 %v3543, 0.0
    %v3707 = vmax.f32 %v3033, 0.0
    %v3708 = vmax.f32 %v3035, 0.0
    %v3709 = vmax.f32 %v3547, 0.0
    %v3710 = vmax.f32 %v3549, 0.0
    %v3711 = vmax.f32 %v3039, 0.0
    %v3712 = vmax.f32 %v3041, 0.0
    %v3713 = vmax.f32 %v3553, 0.0
    %v3714 = vmax.f32 %v3555, 0.0
    %v3715 = vmax.f32 %v3045, 0.0
    %v3716 = vmax.f32 %v3047, 0.0
    %v3717 = vmax.f32 %v3559, 0.0
    %v3718 = vmax.f32 %v3561, 0.0
    %v3719 = vmax.f32 %v3051, 0.0
    %v3720 = vmax.f32 %v3053, 0.0
    %v3721 = vmax.f32 %v3565, 0.0
    %v3722 = vmax.f32 %v3567, 0.0
    %v3723 = vmax.f32 %v3057, 0.0
    %v3724 = vmax.f32 %v3059, 0.0
    %v3725 = vmax.f32 %v3571, 0.0
    %v3726 = vmax.f32 %v3573, 0.0
    %v3727 = vmax.f32 %v3063, 0.0
    %v3728 = vmax.f32 %v3065, 0.0
    %v3729 = vmax.f32 %v3577, 0.0
    %v3730 = vmax.f32 %v3579, 0.0
    %v3731 = vmax.f32 %v3069, 0.0
    %v3732 = vmax.f32 %v3071, 0.0
    %v3733 = vmax.f32 %v3583, 0.0
    %v3734 = vmax.f32 %v3585, 0.0
    %v3735 = vmax.f32 %v3075, 0.0
    %v3736 = vmax.f32 %v3077, 0.0
    %v3737 = vmax.f32 %v3589, 0.0
    %v3738 = vmax.f32 %v3591, 0.0
    %v3739 = vmax.f32 %v3081, 0.0
    %v3740 = vmax.f32 %v3083, 0.0
    %v3741 = vmax.f32 %v3595, 0.0
    %v3742 = vmax.f32 %v3597, 0.0
    %v3743 = vmax.f32 %v3087, 0.0
    %v3744 = vmax.f32 %v3089, 0.0
    %v3745 = vmax.f32 %v3601, 0.0
    %v3746 = vmax.f32 %v3603, 0.0
    %v3747 = vmax.f32 %v3093, 0.0
    %v3748 = vmax.f32 %v3095, 0.0
    %v3749 = vmax.f32 %v3607, 0.0
    %v3750 = vmax.f32 %v3609, 0.0
    %v3751 = vmax.f32 %v3099, 0.0
    %v3752 = vmax.f32 %v3101, 0.0
    %v3753 = vmax.f32 %v3613, 0.0
    %v3754 = vmax.f32 %v3615, 0.0
    %v3755 = vmax.f32 %v3105, 0.0
    %v3756 = vmax.f32 %v3107, 0.0
    %v3757 = vmax.f32 %v3619, 0.0
    %v3758 = vmax.f32 %v3621, 0.0
    %v3759 = vmax.f32 %v3111, 0.0
    %v3760 = vmax.f32 %v3113, 0.0
    %v3761 = vmax.f32 %v3625, 0.0
    %v3762 = vmax.f32 %v3627, 0.0
    %v3763 = vmax.f32 %v3117, 0.0
    %v3764 = vmax.f32 %v3119, 0.0
    %v3765 = vmax.f32 %v3631, 0.0
    %v3766 = vmax.f32 %v3633, 0.0
    %v3767 = vmax.f32 %v3123, 0.0
    %v3768 = vmax.f32 %v3125, 0.0
    %v3769 = vmax.f32 %v3637, 0.0
    %v3770 = vmax.f32 %v3639, 0.0
    %v3771 = vmax.f32 %v3129, 0.0
    %v3772 = vmax.f32 %v3131, 0.0
    %v3773 = vmax.f32 %v3643, 0.0
    %v3774 = vmax.f32 %v3645, 0.0
    %v3775 = vld [vmem:[#allocation14] sm:$0xff]
    %v3776 = vld [vmem:[#allocation14 + $0x8] sm:$0xff]
    %v3777 = vld [vmem:[#allocation14 + $0x10] sm:$0xff]
    %v3778 = vld [vmem:[#allocation14 + $0x18] sm:$0xff]
    %v3779 = vld [vmem:[#allocation14 + $0x20] sm:$0xff]
    %v3780 = vld [vmem:[#allocation14 + $0x28] sm:$0xff]
    %v3781 = vld [vmem:[#allocation14 + $0x30] sm:$0xff]
    %v3782 = vld [vmem:[#allocation14 + $0x38] sm:$0xff]
    %v3783 = vld [vmem:[#allocation14 + $0x40] sm:$0xff]
    %v3784 = vld [vmem:[#allocation14 + $0x48] sm:$0xff]
    %v3785 = vld [vmem:[#allocation14 + $0x50] sm:$0xff]
    %v3786 = vld [vmem:[#allocation14 + $0x58] sm:$0xff]
    %v3787 = vld [vmem:[#allocation14 + $0x60] sm:$0xff]
    %v3788 = vld [vmem:[#allocation14 + $0x68] sm:$0xff]
    %v3789 = vld [vmem:[#allocation14 + $0x70] sm:$0xff]
    %v3790 = vld [vmem:[#allocation14 + $0x78] sm:$0xff]
    %v3791 = vld [vmem:[#allocation14 + $0x80] sm:$0xff]
    %v3792 = vld [vmem:[#allocation14 + $0x88] sm:$0xff]
    %v3793 = vld [vmem:[#allocation14 + $0x90] sm:$0xff]
    %v3794 = vld [vmem:[#allocation14 + $0x98] sm:$0xff]
    %v3795 = vld [vmem:[#allocation14 + $0xa0] sm:$0xff]
    %v3796 = vld [vmem:[#allocation14 + $0xa8] sm:$0xff]
    %v3797 = vld [vmem:[#allocation14 + $0xb0] sm:$0xff]
    %v3798 = vld [vmem:[#allocation14 + $0xb8] sm:$0xff]
    %v3799 = vld [vmem:[#allocation14 + $0xc0] sm:$0xff]
    %v3800 = vld [vmem:[#allocation14 + $0xc8] sm:$0xff]
    %v3801 = vld [vmem:[#allocation14 + $0xd0] sm:$0xff]
    %v3802 = vld [vmem:[#allocation14 + $0xd8] sm:$0xff]
    %v3803 = vld [vmem:[#allocation14 + $0xe0] sm:$0xff]
    %v3804 = vld [vmem:[#allocation14 + $0xe8] sm:$0xff]
    %v3805 = vld [vmem:[#allocation14 + $0xf0] sm:$0xff]
    %v3806 = vld [vmem:[#allocation14 + $0xf8] sm:$0xff]
    %v3807 = vld [vmem:[#allocation14 + $0x100] sm:$0xff]
    %v3808 = vld [vmem:[#allocation14 + $0x108] sm:$0xff]
    %v3809 = vld [vmem:[#allocation14 + $0x110] sm:$0xff]
    %v3810 = vld [vmem:[#allocation14 + $0x118] sm:$0xff]
    %v3811 = vld [vmem:[#allocation14 + $0x120] sm:$0xff]
    %v3812 = vld [vmem:[#allocation14 + $0x128] sm:$0xff]
    %v3813 = vld [vmem:[#allocation14 + $0x130] sm:$0xff]
    %v3814 = vld [vmem:[#allocation14 + $0x138] sm:$0xff]
    %v3815 = vld [vmem:[#allocation14 + $0x140] sm:$0xff]
    %v3816 = vld [vmem:[#allocation14 + $0x148] sm:$0xff]
    %v3817 = vld [vmem:[#allocation14 + $0x150] sm:$0xff]
    %v3818 = vld [vmem:[#allocation14 + $0x158] sm:$0xff]
    %v3819 = vld [vmem:[#allocation14 + $0x160] sm:$0xff]
    %v3820 = vld [vmem:[#allocation14 + $0x168] sm:$0xff]
    %v3821 = vld [vmem:[#allocation14 + $0x170] sm:$0xff]
    %v3822 = vld [vmem:[#allocation14 + $0x178] sm:$0xff]
    %v3823 = vld [vmem:[#allocation14 + $0x180] sm:$0xff]
    %v3824 = vld [vmem:[#allocation14 + $0x188] sm:$0xff]
    %v3825 = vld [vmem:[#allocation14 + $0x190] sm:$0xff]
    %v3826 = vld [vmem:[#allocation14 + $0x198] sm:$0xff]
    %v3827 = vld [vmem:[#allocation14 + $0x1a0] sm:$0xff]
    %v3828 = vld [vmem:[#allocation14 + $0x1a8] sm:$0xff]
    %v3829 = vld [vmem:[#allocation14 + $0x1b0] sm:$0xff]
    %v3830 = vld [vmem:[#allocation14 + $0x1b8] sm:$0xff]
    %v3831 = vld [vmem:[#allocation14 + $0x1c0] sm:$0xff]
    %v3832 = vld [vmem:[#allocation14 + $0x1c8] sm:$0xff]
    %v3833 = vld [vmem:[#allocation14 + $0x1d0] sm:$0xff]
    %v3834 = vld [vmem:[#allocation14 + $0x1d8] sm:$0xff]
    %v3835 = vld [vmem:[#allocation14 + $0x1e0] sm:$0xff]
    %v3836 = vld [vmem:[#allocation14 + $0x1e8] sm:$0xff]
    %v3837 = vld [vmem:[#allocation14 + $0x1f0] sm:$0xff]
    %v3838 = vld [vmem:[#allocation14 + $0x1f8] sm:$0xff]
    %v3839 = vld [vmem:[#allocation16] sm:$0x1]
    %v3841 = vlaneseq
    %v3842 = vshrl.u32 %v3841, 7
    %v3843 = vsub.s32 0, %v3842
    %v3844 = vrot.slane %v3839, %v3843
    %3846 = vmatprep.subr.mxu0 0.0
    %3847 = vmatpush1.msra.mxu0 %v3775
    %3848 = vmatprep.subr.mxu0 0.0
    %3849 = vmatpush1.msra.mxu0 %v3776
    %3850 = vmatprep.subr.mxu0 0.0
    %3851 = vmatpush1.msra.mxu0 %v3777
    %3852 = vmatprep.subr.mxu0 0.0
    %3853 = vmatpush1.msra.mxu0 %v3778
    %3854 = vmatprep.subr.mxu0 0.0
    %3855 = vmatpush1.msra.mxu0 %v3779
    %3856 = vmatprep.subr.mxu0 0.0
    %3857 = vmatpush1.msra.mxu0 %v3780
    %3858 = vmatprep.subr.mxu0 0.0
    %3859 = vmatpush1.msra.mxu0 %v3781
    %3860 = vmatprep.subr.mxu0 0.0
    %3861 = vmatpush1.msra.mxu0 %v3782
    %3862 = vmatprep.subr.mxu0 0.0
    %3863 = vmatpush1.msra.mxu0 %v3783
    %3864 = vmatprep.subr.mxu0 0.0
    %3865 = vmatpush1.msra.mxu0 %v3784
    %3866 = vmatprep.subr.mxu0 0.0
    %3867 = vmatpush1.msra.mxu0 %v3785
    %3868 = vmatprep.subr.mxu0 0.0
    %3869 = vmatpush1.msra.mxu0 %v3786
    %3870 = vmatprep.subr.mxu0 0.0
    %3871 = vmatpush1.msra.mxu0 %v3787
    %3872 = vmatprep.subr.mxu0 0.0
    %3873 = vmatpush1.msra.mxu0 %v3788
    %3874 = vmatprep.subr.mxu0 0.0
    %3875 = vmatpush1.msra.mxu0 %v3789
    %3876 = vmatprep.subr.mxu0 0.0
    %3877 = vmatpush1.msra.mxu0 %v3790
    %3878 = vmatprep.subr.mxu0 0.0
    %3879 = vmatpush1.msra.mxu0 %v3791
    %3880 = vmatprep.subr.mxu0 0.0
    %3881 = vmatpush1.msra.mxu0 %v3792
    %3882 = vmatprep.subr.mxu0 0.0
    %3883 = vmatpush1.msra.mxu0 %v3793
    %3884 = vmatprep.subr.mxu0 0.0
    %3885 = vmatpush1.msra.mxu0 %v3794
    %3886 = vmatprep.subr.mxu0 0.0
    %3887 = vmatpush1.msra.mxu0 %v3795
    %3888 = vmatprep.subr.mxu0 0.0
    %3889 = vmatpush1.msra.mxu0 %v3796
    %3890 = vmatprep.subr.mxu0 0.0
    %3891 = vmatpush1.msra.mxu0 %v3797
    %3892 = vmatprep.subr.mxu0 0.0
    %3893 = vmatpush1.msra.mxu0 %v3798
    %3894 = vmatprep.subr.mxu0 0.0
    %3895 = vmatpush1.msra.mxu0 %v3799
    %3896 = vmatprep.subr.mxu0 0.0
    %3897 = vmatpush1.msra.mxu0 %v3800
    %3898 = vmatprep.subr.mxu0 0.0
    %3899 = vmatpush1.msra.mxu0 %v3801
    %3900 = vmatprep.subr.mxu0 0.0
    %3901 = vmatpush1.msra.mxu0 %v3802
    %3902 = vmatprep.subr.mxu0 0.0
    %3903 = vmatpush1.msra.mxu0 %v3803
    %3904 = vmatprep.subr.mxu0 0.0
    %3905 = vmatpush1.msra.mxu0 %v3804
    %3906 = vmatprep.subr.mxu0 0.0
    %3907 = vmatpush1.msra.mxu0 %v3805
    %3908 = vmatprep.subr.mxu0 0.0
    %3909 = vmatpush1.msra.mxu0 %v3806
    %3910 = vmatprep.mubr.f32.mxu0 %v3648
    %3911 = vmatmul.mubr.f32.gmra.mrb[0].mxu0 %v3647
    %v3912 = vpop.f32.mrb[0].mxu0
    %v3913 = vadd.f32 %v3844, %v3912
    %v3914 = vpop.f32.mrb[0].mxu0
    %3915 = vmatprep.mubr.f32.mxu0 %v3652
    %3916 = vmatmul.mubr.f32.gmra.mrb[0].mxu0 %v3651
    %v3917 = vpop.f32.mrb[0].mxu0
    %v3918 = vadd.f32 %v3844, %v3917
    %v3919 = vpop.f32.mrb[0].mxu0
    %3920 = vmatprep.mubr.f32.mxu0 %v3656
    %3921 = vmatmul.mubr.f32.gmra.mrb[0].mxu0 %v3655
    %v3922 = vpop.f32.mrb[0].mxu0
    %v3923 = vadd.f32 %v3844, %v3922
    %v3924 = vpop.f32.mrb[0].mxu0
    %3925 = vmatprep.mubr.f32.mxu0 %v3660
    %3926 = vmatmul.mubr.f32.gmra.mrb[0].mxu0 %v3659
    %v3927 = vpop.f32.mrb[0].mxu0
    %v3928 = vadd.f32 %v3844, %v3927
    %v3929 = vpop.f32.mrb[0].mxu0
    %3930 = vmatprep.mubr.f32.mxu0 %v3664
    %3931 = vmatmul.mubr.f32.gmra.mrb[0].mxu0 %v3663
    %v3932 = vpop.f32.mrb[0].mxu0
    %v3933 = vadd.f32 %v3844, %v3932
    %v3934 = vpop.f32.mrb[0].mxu0
    %3935 = vmatprep.mubr.f32.mxu0 %v3668
    %3936 = vmatmul.mubr.f32.gmra.mrb[0].mxu0 %v3667
    %v3937 = vpop.f32.mrb[0].mxu0
    %v3938 = vadd.f32 %v3844, %v3937
    %v3939 = vpop.f32.mrb[0].mxu0
    %3940 = vmatprep.mubr.f32.mxu0 %v3672
    %3941 = vmatmul.mubr.f32.gmra.mrb[0].mxu0 %v3671
    %v3942 = vpop.f32.mrb[0].mxu0
    %v3943 = vadd.f32 %v3844, %v3942
    %v3944 = vpop.f32.mrb[0].mxu0
    %3945 = vmatprep.mubr.f32.mxu0 %v3676
    %3946 = vmatmul.mubr.f32.gmra.mrb[0].mxu0 %v3675
    %v3947 = vpop.f32.mrb[0].mxu0
    %v3948 = vadd.f32 %v3844, %v3947
    %v3949 = vpop.f32.mrb[0].mxu0
    %3950 = vmatprep.mubr.f32.mxu0 %v3680
    %3951 = vmatmul.mubr.f32.gmra.mrb[0].mxu0 %v3679
    %v3952 = vpop.f32.mrb[0].mxu0
    %v3953 = vadd.f32 %v3844, %v3952
    %v3954 = vpop.f32.mrb[0].mxu0
    %3955 = vmatprep.mubr.f32.mxu0 %v3684
    %3956 = vmatmul.mubr.f32.gmra.mrb[0].mxu0 %v3683
    %v3957 = vpop.f32.mrb[0].mxu0
    %v3958 = vadd.f32 %v3844, %v3957
    %v3959 = vpop.f32.mrb[0].mxu0
    %3960 = vmatprep.mubr.f32.mxu0 %v3688
    %3961 = vmatmul.mubr.f32.gmra.mrb[0].mxu0 %v3687
    %v3962 = vpop.f32.mrb[0].mxu0
    %v3963 = vadd.f32 %v3844, %v3962
    %v3964 = vpop.f32.mrb[0].mxu0
    %3965 = vmatprep.mubr.f32.mxu0 %v3692
    %3966 = vmatmul.mubr.f32.gmra.mrb[0].mxu0 %v3691
    %v3967 = vpop.f32.mrb[0].mxu0
    %v3968 = vadd.f32 %v3844, %v3967
    %v3969 = vpop.f32.mrb[0].mxu0
    %3970 = vmatprep.mubr.f32.mxu0 %v3696
    %3971 = vmatmul.mubr.f32.gmra.mrb[0].mxu0 %v3695
    %v3972 = vpop.f32.mrb[0].mxu0
    %v3973 = vadd.f32 %v3844, %v3972
    %v3974 = vpop.f32.mrb[0].mxu0
    %3975 = vmatprep.mubr.f32.mxu0 %v3700
    %3976 = vmatmul.mubr.f32.gmra.mrb[0].mxu0 %v3699
    %v3977 = vpop.f32.mrb[0].mxu0
    %v3978 = vadd.f32 %v3844, %v3977
    %v3979 = vpop.f32.mrb[0].mxu0
    %3980 = vmatprep.mubr.f32.mxu0 %v3704
    %3981 = vmatmul.mubr.f32.gmra.mrb[0].mxu0 %v3703
    %v3982 = vpop.f32.mrb[0].mxu0
    %v3983 = vadd.f32 %v3844, %v3982
    %v3984 = vpop.f32.mrb[0].mxu0
    %3985 = vmatprep.mubr.f32.mxu0 %v3708
    %3986 = vmatmul.mubr.f32.gmra.mrb[0].mxu0 %v3707
    %v3987 = vpop.f32.mrb[0].mxu0
    %v3988 = vadd.f32 %v3844, %v3987
    %v3989 = vpop.f32.mrb[0].mxu0
    %3990 = vmatprep.mubr.f32.mxu0 %v3712
    %3991 = vmatmul.mubr.f32.gmra.mrb[0].mxu0 %v3711
    %v3992 = vpop.f32.mrb[0].mxu0
    %v3993 = vadd.f32 %v3844, %v3992
    %v3994 = vpop.f32.mrb[0].mxu0
    %3995 = vmatprep.mubr.f32.mxu0 %v3716
    %3996 = vmatmul.mubr.f32.gmra.mrb[0].mxu0 %v3715
    %v3997 = vpop.f32.mrb[0].mxu0
    %v3998 = vadd.f32 %v3844, %v3997
    %v3999 = vpop.f32.mrb[0].mxu0
    %4000 = vmatprep.mubr.f32.mxu0 %v3720
    %4001 = vmatmul.mubr.f32.gmra.mrb[0].mxu0 %v3719
    %v4002 = vpop.f32.mrb[0].mxu0
    %v4003 = vadd.f32 %v3844, %v4002
    %v4004 = vpop.f32.mrb[0].mxu0
    %4005 = vmatprep.mubr.f32.mxu0 %v3724
    %4006 = vmatmul.mubr.f32.gmra.mrb[0].mxu0 %v3723
    %v4007 = vpop.f32.mrb[0].mxu0
    %v4008 = vadd.f32 %v3844, %v4007
    %v4009 = vpop.f32.mrb[0].mxu0
    %4010 = vmatprep.mubr.f32.mxu0 %v3728
    %4011 = vmatmul.mubr.f32.gmra.mrb[0].mxu0 %v3727
    %v4012 = vpop.f32.mrb[0].mxu0
    %v4013 = vadd.f32 %v3844, %v4012
    %v4014 = vpop.f32.mrb[0].mxu0
    %4015 = vmatprep.mubr.f32.mxu0 %v3732
    %4016 = vmatmul.mubr.f32.gmra.mrb[0].mxu0 %v3731
    %v4017 = vpop.f32.mrb[0].mxu0
    %v4018 = vadd.f32 %v3844, %v4017
    %v4019 = vpop.f32.mrb[0].mxu0
    %4020 = vmatprep.mubr.f32.mxu0 %v3736
    %4021 = vmatmul.mubr.f32.gmra.mrb[0].mxu0 %v3735
    %v4022 = vpop.f32.mrb[0].mxu0
    %v4023 = vadd.f32 %v3844, %v4022
    %v4024 = vpop.f32.mrb[0].mxu0
    %4025 = vmatprep.mubr.f32.mxu0 %v3740
    %4026 = vmatmul.mubr.f32.gmra.mrb[0].mxu0 %v3739
    %v4027 = vpop.f32.mrb[0].mxu0
    %v4028 = vadd.f32 %v3844, %v4027
    %v4029 = vpop.f32.mrb[0].mxu0
    %4030 = vmatprep.mubr.f32.mxu0 %v3744
    %4031 = vmatmul.mubr.f32.gmra.mrb[0].mxu0 %v3743
    %v4032 = vpop.f32.mrb[0].mxu0
    %v4033 = vadd.f32 %v3844, %v4032
    %v4034 = vpop.f32.mrb[0].mxu0
    %4035 = vmatprep.mubr.f32.mxu0 %v3748
    %4036 = vmatmul.mubr.f32.gmra.mrb[0].mxu0 %v3747
    %v4037 = vpop.f32.mrb[0].mxu0
    %v4038 = vadd.f32 %v3844, %v4037
    %v4039 = vpop.f32.mrb[0].mxu0
    %4040 = vmatprep.mubr.f32.mxu0 %v3752
    %4041 = vmatmul.mubr.f32.gmra.mrb[0].mxu0 %v3751
    %v4042 = vpop.f32.mrb[0].mxu0
    %v4043 = vadd.f32 %v3844, %v4042
    %v4044 = vpop.f32.mrb[0].mxu0
    %4045 = vmatprep.mubr.f32.mxu0 %v3756
    %4046 = vmatmul.mubr.f32.gmra.mrb[0].mxu0 %v3755
    %v4047 = vpop.f32.mrb[0].mxu0
    %v4048 = vadd.f32 %v3844, %v4047
    %v4049 = vpop.f32.mrb[0].mxu0
    %4050 = vmatprep.mubr.f32.mxu0 %v3760
    %4051 = vmatmul.mubr.f32.gmra.mrb[0].mxu0 %v3759
    %v4052 = vpop.f32.mrb[0].mxu0
    %v4053 = vadd.f32 %v3844, %v4052
    %v4054 = vpop.f32.mrb[0].mxu0
    %4055 = vmatprep.mubr.f32.mxu0 %v3764
    %4056 = vmatmul.mubr.f32.gmra.mrb[0].mxu0 %v3763
    %v4057 = vpop.f32.mrb[0].mxu0
    %v4058 = vadd.f32 %v3844, %v4057
    %v4059 = vpop.f32.mrb[0].mxu0
    %4060 = vmatprep.mubr.f32.mxu0 %v3768
    %4061 = vmatmul.mubr.f32.gmra.mrb[0].mxu0 %v3767
    %v4062 = vpop.f32.mrb[0].mxu0
    %v4063 = vadd.f32 %v3844, %v4062
    %v4064 = vpop.f32.mrb[0].mxu0
    %4065 = vmatprep.mubr.f32.mxu0 %v3772
    %4066 = vmatmul.mubr.f32.gmra.mrb[0].mxu0 %v3771
    %v4067 = vpop.f32.mrb[0].mxu0
    %v4068 = vadd.f32 %v3844, %v4067
    %v4069 = vpop.f32.mrb[0].mxu0
    %4070 = vdwg.mxu0
    %4071 = vmatprep.subr.mxu0 0.0
    %4072 = vmatpush1.msra.mxu0 %v3807
    %4073 = vmatprep.subr.mxu0 0.0
    %4074 = vmatpush1.msra.mxu0 %v3808
    %4075 = vmatprep.subr.mxu0 0.0
    %4076 = vmatpush1.msra.mxu0 %v3809
    %4077 = vmatprep.subr.mxu0 0.0
    %4078 = vmatpush1.msra.mxu0 %v3810
    %4079 = vmatprep.subr.mxu0 0.0
    %4080 = vmatpush1.msra.mxu0 %v3811
    %4081 = vmatprep.subr.mxu0 0.0
    %4082 = vmatpush1.msra.mxu0 %v3812
    %4083 = vmatprep.subr.mxu0 0.0
    %4084 = vmatpush1.msra.mxu0 %v3813
    %4085 = vmatprep.subr.mxu0 0.0
    %4086 = vmatpush1.msra.mxu0 %v3814
    %4087 = vmatprep.subr.mxu0 0.0
    %4088 = vmatpush1.msra.mxu0 %v3815
    %4089 = vmatprep.subr.mxu0 0.0
    %4090 = vmatpush1.msra.mxu0 %v3816
    %4091 = vmatprep.subr.mxu0 0.0
    %4092 = vmatpush1.msra.mxu0 %v3817
    %4093 = vmatprep.subr.mxu0 0.0
    %4094 = vmatpush1.msra.mxu0 %v3818
    %4095 = vmatprep.subr.mxu0 0.0
    %4096 = vmatpush1.msra.mxu0 %v3819
    %4097 = vmatprep.subr.mxu0 0.0
    %4098 = vmatpush1.msra.mxu0 %v3820
    %4099 = vmatprep.subr.mxu0 0.0
    %4100 = vmatpush1.msra.mxu0 %v3821
    %4101 = vmatprep.subr.mxu0 0.0
    %4102 = vmatpush1.msra.mxu0 %v3822
    %4103 = vmatprep.subr.mxu0 0.0
    %4104 = vmatpush1.msra.mxu0 %v3823
    %4105 = vmatprep.subr.mxu0 0.0
    %4106 = vmatpush1.msra.mxu0 %v3824
    %4107 = vmatprep.subr.mxu0 0.0
    %4108 = vmatpush1.msra.mxu0 %v3825
    %4109 = vmatprep.subr.mxu0 0.0
    %4110 = vmatpush1.msra.mxu0 %v3826
    %4111 = vmatprep.subr.mxu0 0.0
    %4112 = vmatpush1.msra.mxu0 %v3827
    %4113 = vmatprep.subr.mxu0 0.0
    %4114 = vmatpush1.msra.mxu0 %v3828
    %4115 = vmatprep.subr.mxu0 0.0
    %4116 = vmatpush1.msra.mxu0 %v3829
    %4117 = vmatprep.subr.mxu0 0.0
    %4118 = vmatpush1.msra.mxu0 %v3830
    %4119 = vmatprep.subr.mxu0 0.0
    %4120 = vmatpush1.msra.mxu0 %v3831
    %4121 = vmatprep.subr.mxu0 0.0
    %4122 = vmatpush1.msra.mxu0 %v3832
    %4123 = vmatprep.subr.mxu0 0.0
    %4124 = vmatpush1.msra.mxu0 %v3833
    %4125 = vmatprep.subr.mxu0 0.0
    %4126 = vmatpush1.msra.mxu0 %v3834
    %4127 = vmatprep.subr.mxu0 0.0
    %4128 = vmatpush1.msra.mxu0 %v3835
    %4129 = vmatprep.subr.mxu0 0.0
    %4130 = vmatpush1.msra.mxu0 %v3836
    %4131 = vmatprep.subr.mxu0 0.0
    %4132 = vmatpush1.msra.mxu0 %v3837
    %4133 = vmatprep.subr.mxu0 0.0
    %4134 = vmatpush1.msra.mxu0 %v3838
    %4135 = vmatprep.mubr.f32.mxu0 %v3650
    %4136 = vmatmul.mubr.f32.gmra.mrb[0].mxu0 %v3649
    %v4137 = vpop.f32.mrb[0].mxu0
    %v4138 = vadd.f32 %v3913, %v4137
    %v4139 = vpop.f32.mrb[0].mxu0
    %4140 = vmatprep.mubr.f32.mxu0 %v3654
    %4141 = vmatmul.mubr.f32.gmra.mrb[0].mxu0 %v3653
    %v4142 = vpop.f32.mrb[0].mxu0
    %v4143 = vadd.f32 %v3918, %v4142
    %v4144 = vpop.f32.mrb[0].mxu0
    %4145 = vmatprep.mubr.f32.mxu0 %v3658
    %4146 = vmatmul.mubr.f32.gmra.mrb[0].mxu0 %v3657
    %v4147 = vpop.f32.mrb[0].mxu0
    %v4148 = vadd.f32 %v3923, %v4147
    %v4149 = vpop.f32.mrb[0].mxu0
    %4150 = vmatprep.mubr.f32.mxu0 %v3662
    %4151 = vmatmul.mubr.f32.gmra.mrb[0].mxu0 %v3661
    %v4152 = vpop.f32.mrb[0].mxu0
    %v4153 = vadd.f32 %v3928, %v4152
    %v4154 = vpop.f32.mrb[0].mxu0
    %4155 = vmatprep.mubr.f32.mxu0 %v3666
    %4156 = vmatmul.mubr.f32.gmra.mrb[0].mxu0 %v3665
    %v4157 = vpop.f32.mrb[0].mxu0
    %v4158 = vadd.f32 %v3933, %v4157
    %v4159 = vpop.f32.mrb[0].mxu0
    %4160 = vmatprep.mubr.f32.mxu0 %v3670
    %4161 = vmatmul.mubr.f32.gmra.mrb[0].mxu0 %v3669
    %v4162 = vpop.f32.mrb[0].mxu0
    %v4163 = vadd.f32 %v3938, %v4162
    %v4164 = vpop.f32.mrb[0].mxu0
    %4165 = vmatprep.mubr.f32.mxu0 %v3674
    %4166 = vmatmul.mubr.f32.gmra.mrb[0].mxu0 %v3673
    %v4167 = vpop.f32.mrb[0].mxu0
    %v4168 = vadd.f32 %v3943, %v4167
    %v4169 = vpop.f32.mrb[0].mxu0
    %4170 = vmatprep.mubr.f32.mxu0 %v3678
    %4171 = vmatmul.mubr.f32.gmra.mrb[0].mxu0 %v3677
    %v4172 = vpop.f32.mrb[0].mxu0
    %v4173 = vadd.f32 %v3948, %v4172
    %v4174 = vpop.f32.mrb[0].mxu0
    %4175 = vmatprep.mubr.f32.mxu0 %v3682
    %4176 = vmatmul.mubr.f32.gmra.mrb[0].mxu0 %v3681
    %v4177 = vpop.f32.mrb[0].mxu0
    %v4178 = vadd.f32 %v3953, %v4177
    %v4179 = vpop.f32.mrb[0].mxu0
    %4180 = vmatprep.mubr.f32.mxu0 %v3686
    %4181 = vmatmul.mubr.f32.gmra.mrb[0].mxu0 %v3685
    %v4182 = vpop.f32.mrb[0].mxu0
    %v4183 = vadd.f32 %v3958, %v4182
    %v4184 = vpop.f32.mrb[0].mxu0
    %4185 = vmatprep.mubr.f32.mxu0 %v3690
    %4186 = vmatmul.mubr.f32.gmra.mrb[0].mxu0 %v3689
    %v4187 = vpop.f32.mrb[0].mxu0
    %v4188 = vadd.f32 %v3963, %v4187
    %v4189 = vpop.f32.mrb[0].mxu0
    %4190 = vmatprep.mubr.f32.mxu0 %v3694
    %4191 = vmatmul.mubr.f32.gmra.mrb[0].mxu0 %v3693
    %v4192 = vpop.f32.mrb[0].mxu0
    %v4193 = vadd.f32 %v3968, %v4192
    %v4194 = vpop.f32.mrb[0].mxu0
    %4195 = vmatprep.mubr.f32.mxu0 %v3698
    %4196 = vmatmul.mubr.f32.gmra.mrb[0].mxu0 %v3697
    %v4197 = vpop.f32.mrb[0].mxu0
    %v4198 = vadd.f32 %v3973, %v4197
    %v4199 = vpop.f32.mrb[0].mxu0
    %4200 = vmatprep.mubr.f32.mxu0 %v3702
    %4201 = vmatmul.mubr.f32.gmra.mrb[0].mxu0 %v3701
    %v4202 = vpop.f32.mrb[0].mxu0
    %v4203 = vadd.f32 %v3978, %v4202
    %v4204 = vpop.f32.mrb[0].mxu0
    %4205 = vmatprep.mubr.f32.mxu0 %v3706
    %4206 = vmatmul.mubr.f32.gmra.mrb[0].mxu0 %v3705
    %v4207 = vpop.f32.mrb[0].mxu0
    %v4208 = vadd.f32 %v3983, %v4207
    %v4209 = vpop.f32.mrb[0].mxu0
    %4210 = vmatprep.mubr.f32.mxu0 %v3710
    %4211 = vmatmul.mubr.f32.gmra.mrb[0].mxu0 %v3709
    %v4212 = vpop.f32.mrb[0].mxu0
    %v4213 = vadd.f32 %v3988, %v4212
    %v4214 = vpop.f32.mrb[0].mxu0
    %4215 = vmatprep.mubr.f32.mxu0 %v3714
    %4216 = vmatmul.mubr.f32.gmra.mrb[0].mxu0 %v3713
    %v4217 = vpop.f32.mrb[0].mxu0
    %v4218 = vadd.f32 %v3993, %v4217
    %v4219 = vpop.f32.mrb[0].mxu0
    %4220 = vmatprep.mubr.f32.mxu0 %v3718
    %4221 = vmatmul.mubr.f32.gmra.mrb[0].mxu0 %v3717
    %v4222 = vpop.f32.mrb[0].mxu0
    %v4223 = vadd.f32 %v3998, %v4222
    %v4224 = vpop.f32.mrb[0].mxu0
    %4225 = vmatprep.mubr.f32.mxu0 %v3722
    %4226 = vmatmul.mubr.f32.gmra.mrb[0].mxu0 %v3721
    %v4227 = vpop.f32.mrb[0].mxu0
    %v4228 = vadd.f32 %v4003, %v4227
    %v4229 = vpop.f32.mrb[0].mxu0
    %4230 = vmatprep.mubr.f32.mxu0 %v3726
    %4231 = vmatmul.mubr.f32.gmra.mrb[0].mxu0 %v3725
    %v4232 = vpop.f32.mrb[0].mxu0
    %v4233 = vadd.f32 %v4008, %v4232
    %v4234 = vpop.f32.mrb[0].mxu0
    %4235 = vmatprep.mubr.f32.mxu0 %v3730
    %4236 = vmatmul.mubr.f32.gmra.mrb[0].mxu0 %v3729
    %v4237 = vpop.f32.mrb[0].mxu0
    %v4238 = vadd.f32 %v4013, %v4237
    %v4239 = vpop.f32.mrb[0].mxu0
    %4240 = vmatprep.mubr.f32.mxu0 %v3734
    %4241 = vmatmul.mubr.f32.gmra.mrb[0].mxu0 %v3733
    %v4242 = vpop.f32.mrb[0].mxu0
    %v4243 = vadd.f32 %v4018, %v4242
    %v4244 = vpop.f32.mrb[0].mxu0
    %4245 = vmatprep.mubr.f32.mxu0 %v3738
    %4246 = vmatmul.mubr.f32.gmra.mrb[0].mxu0 %v3737
    %v4247 = vpop.f32.mrb[0].mxu0
    %v4248 = vadd.f32 %v4023, %v4247
    %v4249 = vpop.f32.mrb[0].mxu0
    %4250 = vmatprep.mubr.f32.mxu0 %v3742
    %4251 = vmatmul.mubr.f32.gmra.mrb[0].mxu0 %v3741
    %v4252 = vpop.f32.mrb[0].mxu0
    %v4253 = vadd.f32 %v4028, %v4252
    %v4254 = vpop.f32.mrb[0].mxu0
    %4255 = vmatprep.mubr.f32.mxu0 %v3746
    %4256 = vmatmul.mubr.f32.gmra.mrb[0].mxu0 %v3745
    %v4257 = vpop.f32.mrb[0].mxu0
    %v4258 = vadd.f32 %v4033, %v4257
    %v4259 = vpop.f32.mrb[0].mxu0
    %4260 = vmatprep.mubr.f32.mxu0 %v3750
    %4261 = vmatmul.mubr.f32.gmra.mrb[0].mxu0 %v3749
    %v4262 = vpop.f32.mrb[0].mxu0
    %v4263 = vadd.f32 %v4038, %v4262
    %v4264 = vpop.f32.mrb[0].mxu0
    %4265 = vmatprep.mubr.f32.mxu0 %v3754
    %4266 = vmatmul.mubr.f32.gmra.mrb[0].mxu0 %v3753
    %v4267 = vpop.f32.mrb[0].mxu0
    %v4268 = vadd.f32 %v4043, %v4267
    %v4269 = vpop.f32.mrb[0].mxu0
    %4270 = vmatprep.mubr.f32.mxu0 %v3758
    %4271 = vmatmul.mubr.f32.gmra.mrb[0].mxu0 %v3757
    %v4272 = vpop.f32.mrb[0].mxu0
    %v4273 = vadd.f32 %v4048, %v4272
    %v4274 = vpop.f32.mrb[0].mxu0
    %4275 = vmatprep.mubr.f32.mxu0 %v3762
    %4276 = vmatmul.mubr.f32.gmra.mrb[0].mxu0 %v3761
    %v4277 = vpop.f32.mrb[0].mxu0
    %v4278 = vadd.f32 %v4053, %v4277
    %v4279 = vpop.f32.mrb[0].mxu0
    %4280 = vmatprep.mubr.f32.mxu0 %v3766
    %4281 = vmatmul.mubr.f32.gmra.mrb[0].mxu0 %v3765
    %v4282 = vpop.f32.mrb[0].mxu0
    %v4283 = vadd.f32 %v4058, %v4282
    %v4284 = vpop.f32.mrb[0].mxu0
    %4285 = vmatprep.mubr.f32.mxu0 %v3770
    %4286 = vmatmul.mubr.f32.gmra.mrb[0].mxu0 %v3769
    %v4287 = vpop.f32.mrb[0].mxu0
    %v4288 = vadd.f32 %v4063, %v4287
    %v4289 = vpop.f32.mrb[0].mxu0
    %4290 = vmatprep.mubr.f32.mxu0 %v3774
    %4291 = vmatmul.mubr.f32.gmra.mrb[0].mxu0 %v3773
    %v4292 = vpop.f32.mrb[0].mxu0
    %v4293 = vadd.f32 %v4068, %v4292
    %v4294 = vpop.f32.mrb[0].mxu0
    %4295 = vdwg.mxu0
    %4296 = vst [vmem:[#allocation17] sm:$0xff] %v4138
    %4297 = vst [vmem:[#allocation17 + $0x8] sm:$0xff] %v4143
    %4298 = vst [vmem:[#allocation17 + $0x10] sm:$0xff] %v4148
    %4299 = vst [vmem:[#allocation17 + $0x18] sm:$0xff] %v4153
    %4300 = vst [vmem:[#allocation17 + $0x20] sm:$0xff] %v4158
    %4301 = vst [vmem:[#allocation17 + $0x28] sm:$0xff] %v4163
    %4302 = vst [vmem:[#allocation17 + $0x30] sm:$0xff] %v4168
    %4303 = vst [vmem:[#allocation17 + $0x38] sm:$0xff] %v4173
    %4304 = vst [vmem:[#allocation17 + $0x40] sm:$0xff] %v4178
    %4305 = vst [vmem:[#allocation17 + $0x48] sm:$0xff] %v4183
    %4306 = vst [vmem:[#allocation17 + $0x50] sm:$0xff] %v4188
    %4307 = vst [vmem:[#allocation17 + $0x58] sm:$0xff] %v4193
    %4308 = vst [vmem:[#allocation17 + $0x60] sm:$0xff] %v4198
    %4309 = vst [vmem:[#allocation17 + $0x68] sm:$0xff] %v4203
    %4310 = vst [vmem:[#allocation17 + $0x70] sm:$0xff] %v4208
    %4311 = vst [vmem:[#allocation17 + $0x78] sm:$0xff] %v4213
    %4312 = vst [vmem:[#allocation17 + $0x80] sm:$0xff] %v4218
    %4313 = vst [vmem:[#allocation17 + $0x88] sm:$0xff] %v4223
    %4314 = vst [vmem:[#allocation17 + $0x90] sm:$0xff] %v4228
    %4315 = vst [vmem:[#allocation17 + $0x98] sm:$0xff] %v4233
    %4316 = vst [vmem:[#allocation17 + $0xa0] sm:$0xff] %v4238
    %4317 = vst [vmem:[#allocation17 + $0xa8] sm:$0xff] %v4243
    %4318 = vst [vmem:[#allocation17 + $0xb0] sm:$0xff] %v4248
    %4319 = vst [vmem:[#allocation17 + $0xb8] sm:$0xff] %v4253
    %4320 = vst [vmem:[#allocation17 + $0xc0] sm:$0xff] %v4258
    %4321 = vst [vmem:[#allocation17 + $0xc8] sm:$0xff] %v4263
    %4322 = vst [vmem:[#allocation17 + $0xd0] sm:$0xff] %v4268
    %4323 = vst [vmem:[#allocation17 + $0xd8] sm:$0xff] %v4273
    %4324 = vst [vmem:[#allocation17 + $0xe0] sm:$0xff] %v4278
    %4325 = vst [vmem:[#allocation17 + $0xe8] sm:$0xff] %v4283
    %4326 = vst [vmem:[#allocation17 + $0xf0] sm:$0xff] %v4288
    %4327 = vst [vmem:[#allocation17 + $0xf8] sm:$0xff] %v4293
    // Predicated region
    $region74: #{top_decoder_forward.1} parent=1 // pred_check
      _
    $region75: #{top_decoder_forward.1} parent=1 // pred_check_branch
      %4329 = sbr.rel (0) target = $region77
    $region76: #{top_decoder_forward.1} parent=1 // pred_region
      %s4331 = ssub.s32 4096, 4096
      %4332 = vsyncadd [#allocation4], %s4331
      %s4333 = sshll.u32 [#allocation17], 4
      %s4334 = int_to_ptr.vmem [resolvable:$true] %s4333
      %4339 = dma.vmem_to_hbm [thread:$0]  %s4334, 4096, %s9, [#allocation4], 128, 128, 8
    $region77: #{top_decoder_forward.1} parent=1 // pred_fallthru
      _
    // Predicated region
    $region78: #{top_decoder_forward.1} parent=1 // pred_check
      _
    $region79: #{top_decoder_forward.1} parent=1 // pred_check_branch
      %4341 = sbr.rel (0) target = $region81
    $region80: #{top_decoder_forward.1} parent=1 // pred_region
      %4342 = dma.done [#allocation4], 4096
    $region81: #{top_decoder_forward.1} parent=1 // pred_fallthru
      _
    %4343 = vsyncpa [#allocation3], 1
    %4344 = vsyncpa [#allocation6], 1
    %4345 = vsyncpa [#allocation9], 1
    %4346 = vsyncpa [#allocation12], 1
    %4347 = vsyncpa [#allocation15], 1
    %4348 = vsyncpa [#allocation4], 1

</llo_original>
